<compile_context>
chip_gen: v7x
topology: tpu7x:2x2x1
jax: 0.10.0
libtpu: 0.0.40
codegen_flags: <defaults>
</compile_context>

<pallas_src>
import numpy as np

import jax
import jax.numpy as jnp
from jax.experimental import pallas as pl
from jax.experimental.pallas import tpu as pltpu


# ----------------------------------------------------------------------------
# Problem dimensions (16x16 single-channel input; LazyLinear captures 576)
# ----------------------------------------------------------------------------
IN_H = IN_W = 16
CT_K, CT_CO = 10, 3                 # ConvTranspose2d(1, 3, kernel_size=10, stride=1)
CT_O = IN_H + CT_K - 1              # 25
C2_K, C2_CO, C2_S = 3, 4, 2         # base_model: Conv2d(3, 4, kernel_size=3, stride=2)
C2_O = (CT_O - C2_K) // C2_S + 1    # 12
EMB = 32

D_IN = IN_H * IN_W                  # 256
D1 = CT_CO * CT_O * CT_O            # 1875  (convT output, (h,c,w) flatten)
D1P = 1920                          # padded to multiple of 128
BAND = C2_K * CT_CO * CT_O          # 225   width of one conv2 output-row input band
BANDP = 240                         # padded to multiple of 16 (bf16 sublanes)
ROW_STRIDE = C2_S * CT_CO * CT_O    # 150   band start step between output rows
N2 = C2_CO * C2_O                   # 48    one conv2 output row (o, j)
D2 = C2_CO * C2_O * C2_O            # 576   full conv2 flatten (fc1 contraction)
D3 = 256
D4 = 126
D4P = 128

_HI = jax.lax.Precision.HIGHEST


# ----------------------------------------------------------------------------
# Pallas kernel: entire forward for one row-block, all intermediates in VMEM
# ----------------------------------------------------------------------------
def _fused_kernel(x_ref, w1_ref, b1_ref, w2_ref, b2_ref, w3_ref, b3_ref,
                  w4_ref, b4_ref, w5_ref, b5_ref, o_ref):
    f32 = jnp.float32
    bf16 = jnp.bfloat16

    # L1: dense-lifted ConvTranspose2d(1,3,10,1) + bias + ReLU.
    # Columns ordered (h, c, w) so conv2's per-output-row bands are contiguous.
    h1 = jnp.dot(x_ref[...], w1_ref[...], preferred_element_type=f32) + b1_ref[...]
    h1 = jnp.maximum(h1, 0.0).astype(bf16)                        # (TM, 1920)

    # L2 + L3 fused: row-banded Conv2d(3,4,3,s=2) + bias + ReLU, each output
    # row accumulated directly into the (row-permuted) fc1 GEMM.
    acc = jnp.zeros((x_ref.shape[0], D3), f32)
    for i in range(C2_O):                                         # static unroll, 12
        band = h1[:, ROW_STRIDE * i: ROW_STRIDE * i + BANDP]      # (TM, 240)
        zi = jnp.dot(band, w2_ref[...], preferred_element_type=f32) + b2_ref[...]
        zi = jnp.maximum(zi, 0.0).astype(bf16)                    # (TM, 48)
        acc = acc + jnp.dot(zi, w3_ref[N2 * i: N2 * (i + 1), :],
                            preferred_element_type=f32)
    h3 = jnp.maximum(acc + b3_ref[...], 0.0).astype(bf16)         # (TM, 256)

    # fc2 (256 -> 126, padded 128) + ReLU, fc3 (-> 32)
    h4 = jnp.dot(h3, w4_ref[...], preferred_element_type=f32) + b4_ref[...]
    h4 = jnp.maximum(h4, 0.0).astype(bf16)                        # (TM, 128)
    o_ref[...] = jnp.dot(h4, w5_ref[...], preferred_element_type=f32) + b5_ref[...]


def fused_forward(fp, x, tm):
    """x: (M, 256) bf16 with M % tm == 0. Returns (M, EMB) f32."""
    M = x.shape[0]
    weights = (fp["w1"], fp["b1"], fp["w2"], fp["b2"], fp["w3"], fp["b3"],
               fp["w4"], fp["b4"], fp["w5"], fp["b5"])
    # Constant index maps: weights are not re-DMA'd across row-block steps.
    w_specs = [pl.BlockSpec(w.shape, lambda r: (0, 0)) for w in weights]
    return pl.pallas_call(
        _fused_kernel,
        out_shape=jax.ShapeDtypeStruct((M, EMB), jnp.float32),
        grid=(M // tm,),
        in_specs=[pl.BlockSpec((tm, D_IN), lambda r: (r, 0))] + w_specs,
        out_specs=pl.BlockSpec((tm, EMB), lambda r: (r, 0)),
        compiler_params=pltpu.CompilerParams(
            dimension_semantics=("parallel",)),
    )(x, *weights)


def _round_up(n, m):
    return ((n + m - 1) // m) * m


@jax.jit
def siamese_forward(fp, input1, input2):
    """Both Siamese branches batched into one kernel call (concat on batch)."""
    B = input1.shape[0]
    x = jnp.concatenate([input1, input2], axis=0).reshape(2 * B, -1)  # NCHW flatten
    tm = 256 if 2 * B >= 256 else _round_up(max(2 * B, 8), 8)
    M = _round_up(2 * B, tm)
    x = jnp.pad(x, ((0, M - 2 * B), (0, 0))).astype(jnp.bfloat16)
    out = fused_forward(fp, x, tm)[: 2 * B]
    return out[:B], out[B:]


# ----------------------------------------------------------------------------
# Pure-JAX conv helpers (init-time dense lift + reference only; never in the
# jitted hot path)
# ----------------------------------------------------------------------------
def _im2col_nhwc(x, kh, kw, stride):
    B, H, W, C = x.shape
    OH = (H - kh) // stride + 1
    OW = (W - kw) // stride + 1
    cols = []
    for i in range(kh):
        for j in range(kw):
            cols.append(x[:, i:i + stride * OH:stride, j:j + stride * OW:stride, :])
    patches = jnp.stack(cols, axis=3)              # (B, OH, OW, kh*kw, C)
    return patches.reshape(B * OH * OW, kh * kw * C), (B, OH, OW)


def _convt_nchw(x_nchw, ct_w):
    """ConvTranspose2d(1, 3, kernel_size=10, stride=1), no bias. NCHW in/out."""
    B = x_nchw.shape[0]
    K = CT_K
    x = jnp.transpose(x_nchw, (0, 2, 3, 1))
    x = jnp.pad(x, ((0, 0), (K - 1, K - 1), (K - 1, K - 1), (0, 0)))
    cols, (_, OH, OW) = _im2col_nhwc(x, K, K, stride=1)
    w = jnp.flip(ct_w, axis=(2, 3))
    w = jnp.transpose(w, (2, 3, 0, 1)).reshape(K * K * 1, CT_CO)
    y = jnp.dot(cols, w, precision=_HI).reshape(B, OH, OW, CT_CO)
    return jnp.transpose(y, (0, 3, 1, 2))          # (B, 3, 25, 25)


def _conv2_nchw(x_nchw, c2_w):
    """Conv2d(3, 4, kernel_size=3, stride=2), no bias. NCHW in/out."""
    B = x_nchw.shape[0]
    x = jnp.transpose(x_nchw, (0, 2, 3, 1))
    cols, (_, OH, OW) = _im2col_nhwc(x, C2_K, C2_K, stride=C2_S)
    w = jnp.transpose(c2_w, (2, 3, 1, 0)).reshape(C2_K * C2_K * CT_CO, C2_CO)
    y = jnp.dot(cols, w, precision=_HI).reshape(B, OH, OW, C2_CO)
    return jnp.transpose(y, (0, 3, 1, 2))          # (B, 4, 12, 12)


# ----------------------------------------------------------------------------
# Parameters (PyTorch layout) and one-time fused preprocessing
# ----------------------------------------------------------------------------
def init_params(key, embedding_dim=EMB):
    ks = jax.random.split(key, 10)
    s = 0.05
    p = {}
    p["ct_w"] = jax.random.normal(ks[0], (1, CT_CO, CT_K, CT_K), jnp.float32) * s
    p["ct_b"] = jax.random.normal(ks[1], (CT_CO,), jnp.float32) * s
    p["c2_w"] = jax.random.normal(ks[2], (C2_CO, CT_CO, C2_K, C2_K), jnp.float32) * s
    p["c2_b"] = jax.random.normal(ks[3], (C2_CO,), jnp.float32) * s
    p["fc1_w"] = jax.random.normal(ks[4], (D2, D3), jnp.float32) * s
    p["fc1_b"] = jax.random.normal(ks[5], (D3,), jnp.float32) * s
    p["fc2_w"] = jax.random.normal(ks[6], (D3, D4), jnp.float32) * s
    p["fc2_b"] = jax.random.normal(ks[7], (D4,), jnp.float32) * s
    p["fc3_w"] = jax.random.normal(ks[8], (D4, embedding_dim), jnp.float32) * s
    p["fc3_b"] = jax.random.normal(ks[9], (embedding_dim,), jnp.float32) * s
    return p


def build_fused_params(p):
    """One-time (outside jit) weight preprocessing."""
    # L1: dense lift of ConvTranspose2d via basis probing, columns in (h,c,w)
    # order so that conv2's per-output-row bands are contiguous.
    eye1 = jnp.eye(D_IN, dtype=jnp.float32).reshape(D_IN, 1, IN_H, IN_W)
    probe = _convt_nchw(eye1, p["ct_w"])                         # (256, 3, 25, 25)
    w1 = jnp.transpose(probe, (0, 2, 1, 3)).reshape(D_IN, D1)    # (256, 1875)
    b1 = jnp.broadcast_to(p["ct_b"][None, :, None],
                          (CT_O, CT_CO, CT_O)).reshape(-1)       # (1875,) (h,c,w)

    # L2: shared row-banded conv2 matrix (true 3x3 weights, no dense lift).
    # Rows s = ki*75 + c*25 + w (band-local, (h,c,w) order); cols q = o*12 + j.
    c2_w = np.asarray(p["c2_w"], np.float32)                     # (4, 3, 3, 3)
    w2 = np.zeros((BANDP, N2), np.float32)
    for ki in range(C2_K):
        for c in range(CT_CO):
            for j in range(C2_O):
                for kj in range(C2_K):
                    s = ki * (CT_CO * CT_O) + c * CT_O + (C2_S * j + kj)
                    w2[s, np.arange(C2_CO) * C2_O + j] = c2_w[:, c, ki, kj]
    b2 = np.repeat(np.asarray(p["c2_b"], np.float32), C2_O)      # (48,)

    # fc1 rows permuted from NCHW flatten (o,i,j) to the kernel's (i,o,j).
    w3 = jnp.transpose(p["fc1_w"].reshape(C2_CO, C2_O, C2_O, D3),
                       (1, 0, 2, 3)).reshape(D2, D3)             # (576, 256)

    padc = lambda a, n: jnp.pad(a, ((0, 0), (0, n - a.shape[1])))
    padr = lambda a, n: jnp.pad(a, ((0, n - a.shape[0]), (0, 0)))
    padv = lambda a, n: jnp.pad(a, (0, n - a.shape[0]))

    return {
        "w1": padc(w1, D1P).astype(jnp.bfloat16),                 # (256, 1920)
        "b1": padv(b1, D1P).reshape(1, D1P).astype(jnp.float32),
        "w2": jnp.asarray(w2, jnp.bfloat16),                      # (240, 48)
        "b2": jnp.asarray(b2, jnp.float32).reshape(1, N2),
        "w3": w3.astype(jnp.bfloat16),                            # (576, 256)
        "b3": p["fc1_b"].reshape(1, D3).astype(jnp.float32),
        "w4": padc(p["fc2_w"], D4P).astype(jnp.bfloat16),         # (256, 128)
        "b4": padv(p["fc2_b"], D4P).reshape(1, D4P).astype(jnp.float32),
        "w5": padr(p["fc3_w"], D4P).astype(jnp.bfloat16),         # (128, 32)
        "b5": p["fc3_b"].reshape(1, EMB).astype(jnp.float32),
    }


# ----------------------------------------------------------------------------
# Pure-JAX reference (PyTorch semantics, f32 weights) for a sanity check
# ----------------------------------------------------------------------------
def reference_forward_once(p, x_nchw):
    B = x_nchw.shape[0]
    y = _convt_nchw(x_nchw, p["ct_w"]) + p["ct_b"][None, :, None, None]
    y = jnp.maximum(y, 0.0)
    z = _conv2_nchw(y, p["c2_w"]) + p["c2_b"][None, :, None, None]
    z = jnp.maximum(z, 0.0)
    z = z.reshape(B, -1)                                          # NCHW flatten
    h = jnp.maximum(jnp.dot(z, p["fc1_w"], precision=_HI) + p["fc1_b"], 0.0)
    h = jnp.maximum(jnp.dot(h, p["fc2_w"], precision=_HI) + p["fc2_b"], 0.0)
    return jnp.dot(h, p["fc3_w"], precision=_HI) + p["fc3_b"]


# ----------------------------------------------------------------------------
# main
# ----------------------------------------------------------------------------
if __name__ == "__main__":
    key = jax.random.PRNGKey(0)
    k_p, k_x1, k_x2 = jax.random.split(key, 3)

    B = 2
    params = init_params(k_p, embedding_dim=EMB)
    fused = build_fused_params(params)     # one-time weight preprocessing

    x1 = jax.random.normal(k_x1, (B, 1, IN_H, IN_W), jnp.float32)
    x2 = jax.random.normal(k_x2, (B, 1, IN_H, IN_W), jnp.float32)

    out1, out2 = siamese_forward(fused, x1, x2)
    jax.block_until_ready((out1, out2))
    assert out1.shape == (B, EMB) and out2.shape == (B, EMB)

    # Sanity check vs a straightforward f32 reference (loose tolerance: the
    # kernel uses bf16 MXU operands with f32 accumulation).
    ref1 = reference_forward_once(params, x1)
    ref2 = reference_forward_once(params, x2)
    np.testing.assert_allclose(np.asarray(out1), np.asarray(ref1), rtol=5e-2, atol=5e-3)
    np.testing.assert_allclose(np.asarray(out2), np.asarray(ref2), rtol=5e-2, atol=5e-3)

    print("KERNEL_OK")
</pallas_src>

<mosaic_0001>
module attributes {stable_mosaic.version = 11 : i64} {
  func.func @_fused_kernel(%arg0: i32, %arg1: memref<8x256xbf16, #tpu.memory_space<vmem>>, %arg2: memref<256x1920xbf16, #tpu.memory_space<vmem>>, %arg3: memref<1x1920xf32, #tpu.memory_space<vmem>>, %arg4: memref<240x48xbf16, #tpu.memory_space<vmem>>, %arg5: memref<1x48xf32, #tpu.memory_space<vmem>>, %arg6: memref<576x256xbf16, #tpu.memory_space<vmem>>, %arg7: memref<1x256xf32, #tpu.memory_space<vmem>>, %arg8: memref<256x128xbf16, #tpu.memory_space<vmem>>, %arg9: memref<1x128xf32, #tpu.memory_space<vmem>>, %arg10: memref<128x32xbf16, #tpu.memory_space<vmem>>, %arg11: memref<1x32xf32, #tpu.memory_space<vmem>>, %arg12: memref<8x32xf32, #tpu.memory_space<vmem>>) attributes {dimension_semantics = [#tpu.dimension_semantics<parallel>], iteration_bounds = array<i64: 1>, scalar_prefetch = 0 : i64, scratch_operands = 0 : i64, tpu.core_type = #tpu.core_type<tc>, window_params = [{transform_indices = @transform_0, window_bounds = array<i64: 8, 256>}, {pipeline_mode = #tpu.pipeline_mode<synchronous>, transform_indices = @transform_1, window_bounds = array<i64: 256, 1920>}, {pipeline_mode = #tpu.pipeline_mode<synchronous>, transform_indices = @transform_2, window_bounds = array<i64: 1, 1920>}, {pipeline_mode = #tpu.pipeline_mode<synchronous>, transform_indices = @transform_3, window_bounds = array<i64: 240, 48>}, {pipeline_mode = #tpu.pipeline_mode<synchronous>, transform_indices = @transform_4, window_bounds = array<i64: 1, 48>}, {pipeline_mode = #tpu.pipeline_mode<synchronous>, transform_indices = @transform_5, window_bounds = array<i64: 576, 256>}, {pipeline_mode = #tpu.pipeline_mode<synchronous>, transform_indices = @transform_6, window_bounds = array<i64: 1, 256>}, {pipeline_mode = #tpu.pipeline_mode<synchronous>, transform_indices = @transform_7, window_bounds = array<i64: 256, 128>}, {pipeline_mode = #tpu.pipeline_mode<synchronous>, transform_indices = @transform_8, window_bounds = array<i64: 1, 128>}, {pipeline_mode = #tpu.pipeline_mode<synchronous>, transform_indices = @transform_9, window_bounds = array<i64: 128, 32>}, {pipeline_mode = #tpu.pipeline_mode<synchronous>, transform_indices = @transform_10, window_bounds = array<i64: 1, 32>}, {transform_indices = @transform_11, window_bounds = array<i64: 8, 32>}]} {
    %c0 = arith.constant 0 : index
    %c0_0 = arith.constant 0 : index
    %0 = vector.load %arg1[%c0, %c0_0] : memref<8x256xbf16, #tpu.memory_space<vmem>>, vector<8x256xbf16>
    %c0_1 = arith.constant 0 : index
    %c0_2 = arith.constant 0 : index
    %1 = vector.load %arg2[%c0_1, %c0_2] : memref<256x1920xbf16, #tpu.memory_space<vmem>>, vector<256x1920xbf16>
    %cst = arith.constant dense<0.000000e+00> : vector<8x1920xf32>
    %2 = tpu.matmul %0, %1, %cst {dimension_numbers = #tpu.dot_dimension_numbers<[1], [0], [0], [1], [0, 0, 1, 1], [], []>} : vector<8x256xbf16>, vector<256x1920xbf16>, vector<8x1920xf32> -> vector<8x1920xf32>
    %c0_3 = arith.constant 0 : index
    %c0_4 = arith.constant 0 : index
    %3 = vector.load %arg3[%c0_3, %c0_4] : memref<1x1920xf32, #tpu.memory_space<vmem>>, vector<1x1920xf32>
    %4 = vector.broadcast %3 : vector<1x1920xf32> to vector<8x1920xf32>
    %5 = arith.addf %2, %4 : vector<8x1920xf32>
    %cst_5 = arith.constant 0.000000e+00 : f32
    %6 = vector.broadcast %cst_5 : f32 to vector<8x1920xf32>
    %7 = arith.maximumf %5, %6 : vector<8x1920xf32>
    %8 = arith.truncf %7 : vector<8x1920xf32> to vector<8x1920xbf16>
    %cst_6 = arith.constant 0.000000e+00 : f32
    %9 = vector.broadcast %cst_6 : f32 to vector<8x256xf32>
    %10 = vector.extract_strided_slice %8 {offsets = [0, 0], sizes = [8, 240], strides = [1, 1]} : vector<8x1920xbf16> to vector<8x240xbf16>
    %c0_7 = arith.constant 0 : index
    %c0_8 = arith.constant 0 : index
    %11 = vector.load %arg4[%c0_7, %c0_8] : memref<240x48xbf16, #tpu.memory_space<vmem>>, vector<240x48xbf16>
    %cst_9 = arith.constant dense<0.000000e+00> : vector<8x48xf32>
    %12 = tpu.matmul %10, %11, %cst_9 {dimension_numbers = #tpu.dot_dimension_numbers<[1], [0], [0], [1], [0, 0, 1, 1], [], []>} : vector<8x240xbf16>, vector<240x48xbf16>, vector<8x48xf32> -> vector<8x48xf32>
    %c0_10 = arith.constant 0 : index
    %c0_11 = arith.constant 0 : index
    %13 = vector.load %arg5[%c0_10, %c0_11] : memref<1x48xf32, #tpu.memory_space<vmem>>, vector<1x48xf32>
    %14 = vector.broadcast %13 : vector<1x48xf32> to vector<8x48xf32>
    %15 = arith.addf %12, %14 : vector<8x48xf32>
    %cst_12 = arith.constant 0.000000e+00 : f32
    %16 = vector.broadcast %cst_12 : f32 to vector<8x48xf32>
    %17 = arith.maximumf %15, %16 : vector<8x48xf32>
    %18 = arith.truncf %17 : vector<8x48xf32> to vector<8x48xbf16>
    %c0_13 = arith.constant 0 : index
    %c0_14 = arith.constant 0 : index
    %19 = vector.load %arg6[%c0_13, %c0_14] : memref<576x256xbf16, #tpu.memory_space<vmem>>, vector<48x256xbf16>
    %cst_15 = arith.constant dense<0.000000e+00> : vector<8x256xf32>
    %20 = tpu.matmul %18, %19, %cst_15 {dimension_numbers = #tpu.dot_dimension_numbers<[1], [0], [0], [1], [0, 0, 1, 1], [], []>} : vector<8x48xbf16>, vector<48x256xbf16>, vector<8x256xf32> -> vector<8x256xf32>
    %21 = arith.addf %9, %20 : vector<8x256xf32>
    %22 = vector.extract_strided_slice %8 {offsets = [0, 150], sizes = [8, 240], strides = [1, 1]} : vector<8x1920xbf16> to vector<8x240xbf16>
    %c0_16 = arith.constant 0 : index
    %c0_17 = arith.constant 0 : index
    %23 = vector.load %arg4[%c0_16, %c0_17] : memref<240x48xbf16, #tpu.memory_space<vmem>>, vector<240x48xbf16>
    %cst_18 = arith.constant dense<0.000000e+00> : vector<8x48xf32>
    %24 = tpu.matmul %22, %23, %cst_18 {dimension_numbers = #tpu.dot_dimension_numbers<[1], [0], [0], [1], [0, 0, 1, 1], [], []>} : vector<8x240xbf16>, vector<240x48xbf16>, vector<8x48xf32> -> vector<8x48xf32>
    %c0_19 = arith.constant 0 : index
    %c0_20 = arith.constant 0 : index
    %25 = vector.load %arg5[%c0_19, %c0_20] : memref<1x48xf32, #tpu.memory_space<vmem>>, vector<1x48xf32>
    %26 = vector.broadcast %25 : vector<1x48xf32> to vector<8x48xf32>
    %27 = arith.addf %24, %26 : vector<8x48xf32>
    %cst_21 = arith.constant 0.000000e+00 : f32
    %28 = vector.broadcast %cst_21 : f32 to vector<8x48xf32>
    %29 = arith.maximumf %27, %28 : vector<8x48xf32>
    %30 = arith.truncf %29 : vector<8x48xf32> to vector<8x48xbf16>
    %c48 = arith.constant 48 : index
    %c0_22 = arith.constant 0 : index
    %31 = vector.load %arg6[%c48, %c0_22] : memref<576x256xbf16, #tpu.memory_space<vmem>>, vector<48x256xbf16>
    %cst_23 = arith.constant dense<0.000000e+00> : vector<8x256xf32>
    %32 = tpu.matmul %30, %31, %cst_23 {dimension_numbers = #tpu.dot_dimension_numbers<[1], [0], [0], [1], [0, 0, 1, 1], [], []>} : vector<8x48xbf16>, vector<48x256xbf16>, vector<8x256xf32> -> vector<8x256xf32>
    %33 = arith.addf %21, %32 : vector<8x256xf32>
    %34 = vector.extract_strided_slice %8 {offsets = [0, 300], sizes = [8, 240], strides = [1, 1]} : vector<8x1920xbf16> to vector<8x240xbf16>
    %c0_24 = arith.constant 0 : index
    %c0_25 = arith.constant 0 : index
    %35 = vector.load %arg4[%c0_24, %c0_25] : memref<240x48xbf16, #tpu.memory_space<vmem>>, vector<240x48xbf16>
    %cst_26 = arith.constant dense<0.000000e+00> : vector<8x48xf32>
    %36 = tpu.matmul %34, %35, %cst_26 {dimension_numbers = #tpu.dot_dimension_numbers<[1], [0], [0], [1], [0, 0, 1, 1], [], []>} : vector<8x240xbf16>, vector<240x48xbf16>, vector<8x48xf32> -> vector<8x48xf32>
    %c0_27 = arith.constant 0 : index
    %c0_28 = arith.constant 0 : index
    %37 = vector.load %arg5[%c0_27, %c0_28] : memref<1x48xf32, #tpu.memory_space<vmem>>, vector<1x48xf32>
    %38 = vector.broadcast %37 : vector<1x48xf32> to vector<8x48xf32>
    %39 = arith.addf %36, %38 : vector<8x48xf32>
    %cst_29 = arith.constant 0.000000e+00 : f32
    %40 = vector.broadcast %cst_29 : f32 to vector<8x48xf32>
    %41 = arith.maximumf %39, %40 : vector<8x48xf32>
    %42 = arith.truncf %41 : vector<8x48xf32> to vector<8x48xbf16>
    %c96 = arith.constant 96 : index
    %c0_30 = arith.constant 0 : index
    %43 = vector.load %arg6[%c96, %c0_30] : memref<576x256xbf16, #tpu.memory_space<vmem>>, vector<48x256xbf16>
    %cst_31 = arith.constant dense<0.000000e+00> : vector<8x256xf32>
    %44 = tpu.matmul %42, %43, %cst_31 {dimension_numbers = #tpu.dot_dimension_numbers<[1], [0], [0], [1], [0, 0, 1, 1], [], []>} : vector<8x48xbf16>, vector<48x256xbf16>, vector<8x256xf32> -> vector<8x256xf32>
    %45 = arith.addf %33, %44 : vector<8x256xf32>
    %46 = vector.extract_strided_slice %8 {offsets = [0, 450], sizes = [8, 240], strides = [1, 1]} : vector<8x1920xbf16> to vector<8x240xbf16>
    %c0_32 = arith.constant 0 : index
    %c0_33 = arith.constant 0 : index
    %47 = vector.load %arg4[%c0_32, %c0_33] : memref<240x48xbf16, #tpu.memory_space<vmem>>, vector<240x48xbf16>
    %cst_34 = arith.constant dense<0.000000e+00> : vector<8x48xf32>
    %48 = tpu.matmul %46, %47, %cst_34 {dimension_numbers = #tpu.dot_dimension_numbers<[1], [0], [0], [1], [0, 0, 1, 1], [], []>} : vector<8x240xbf16>, vector<240x48xbf16>, vector<8x48xf32> -> vector<8x48xf32>
    %c0_35 = arith.constant 0 : index
    %c0_36 = arith.constant 0 : index
    %49 = vector.load %arg5[%c0_35, %c0_36] : memref<1x48xf32, #tpu.memory_space<vmem>>, vector<1x48xf32>
    %50 = vector.broadcast %49 : vector<1x48xf32> to vector<8x48xf32>
    %51 = arith.addf %48, %50 : vector<8x48xf32>
    %cst_37 = arith.constant 0.000000e+00 : f32
    %52 = vector.broadcast %cst_37 : f32 to vector<8x48xf32>
    %53 = arith.maximumf %51, %52 : vector<8x48xf32>
    %54 = arith.truncf %53 : vector<8x48xf32> to vector<8x48xbf16>
    %c144 = arith.constant 144 : index
    %c0_38 = arith.constant 0 : index
    %55 = vector.load %arg6[%c144, %c0_38] : memref<576x256xbf16, #tpu.memory_space<vmem>>, vector<48x256xbf16>
    %cst_39 = arith.constant dense<0.000000e+00> : vector<8x256xf32>
    %56 = tpu.matmul %54, %55, %cst_39 {dimension_numbers = #tpu.dot_dimension_numbers<[1], [0], [0], [1], [0, 0, 1, 1], [], []>} : vector<8x48xbf16>, vector<48x256xbf16>, vector<8x256xf32> -> vector<8x256xf32>
    %57 = arith.addf %45, %56 : vector<8x256xf32>
    %58 = vector.extract_strided_slice %8 {offsets = [0, 600], sizes = [8, 240], strides = [1, 1]} : vector<8x1920xbf16> to vector<8x240xbf16>
    %c0_40 = arith.constant 0 : index
    %c0_41 = arith.constant 0 : index
    %59 = vector.load %arg4[%c0_40, %c0_41] : memref<240x48xbf16, #tpu.memory_space<vmem>>, vector<240x48xbf16>
    %cst_42 = arith.constant dense<0.000000e+00> : vector<8x48xf32>
    %60 = tpu.matmul %58, %59, %cst_42 {dimension_numbers = #tpu.dot_dimension_numbers<[1], [0], [0], [1], [0, 0, 1, 1], [], []>} : vector<8x240xbf16>, vector<240x48xbf16>, vector<8x48xf32> -> vector<8x48xf32>
    %c0_43 = arith.constant 0 : index
    %c0_44 = arith.constant 0 : index
    %61 = vector.load %arg5[%c0_43, %c0_44] : memref<1x48xf32, #tpu.memory_space<vmem>>, vector<1x48xf32>
    %62 = vector.broadcast %61 : vector<1x48xf32> to vector<8x48xf32>
    %63 = arith.addf %60, %62 : vector<8x48xf32>
    %cst_45 = arith.constant 0.000000e+00 : f32
    %64 = vector.broadcast %cst_45 : f32 to vector<8x48xf32>
    %65 = arith.maximumf %63, %64 : vector<8x48xf32>
    %66 = arith.truncf %65 : vector<8x48xf32> to vector<8x48xbf16>
    %c192 = arith.constant 192 : index
    %c0_46 = arith.constant 0 : index
    %67 = vector.load %arg6[%c192, %c0_46] : memref<576x256xbf16, #tpu.memory_space<vmem>>, vector<48x256xbf16>
    %cst_47 = arith.constant dense<0.000000e+00> : vector<8x256xf32>
    %68 = tpu.matmul %66, %67, %cst_47 {dimension_numbers = #tpu.dot_dimension_numbers<[1], [0], [0], [1], [0, 0, 1, 1], [], []>} : vector<8x48xbf16>, vector<48x256xbf16>, vector<8x256xf32> -> vector<8x256xf32>
    %69 = arith.addf %57, %68 : vector<8x256xf32>
    %70 = vector.extract_strided_slice %8 {offsets = [0, 750], sizes = [8, 240], strides = [1, 1]} : vector<8x1920xbf16> to vector<8x240xbf16>
    %c0_48 = arith.constant 0 : index
    %c0_49 = arith.constant 0 : index
    %71 = vector.load %arg4[%c0_48, %c0_49] : memref<240x48xbf16, #tpu.memory_space<vmem>>, vector<240x48xbf16>
    %cst_50 = arith.constant dense<0.000000e+00> : vector<8x48xf32>
    %72 = tpu.matmul %70, %71, %cst_50 {dimension_numbers = #tpu.dot_dimension_numbers<[1], [0], [0], [1], [0, 0, 1, 1], [], []>} : vector<8x240xbf16>, vector<240x48xbf16>, vector<8x48xf32> -> vector<8x48xf32>
    %c0_51 = arith.constant 0 : index
    %c0_52 = arith.constant 0 : index
    %73 = vector.load %arg5[%c0_51, %c0_52] : memref<1x48xf32, #tpu.memory_space<vmem>>, vector<1x48xf32>
    %74 = vector.broadcast %73 : vector<1x48xf32> to vector<8x48xf32>
    %75 = arith.addf %72, %74 : vector<8x48xf32>
    %cst_53 = arith.constant 0.000000e+00 : f32
    %76 = vector.broadcast %cst_53 : f32 to vector<8x48xf32>
    %77 = arith.maximumf %75, %76 : vector<8x48xf32>
    %78 = arith.truncf %77 : vector<8x48xf32> to vector<8x48xbf16>
    %c240 = arith.constant 240 : index
    %c0_54 = arith.constant 0 : index
    %79 = vector.load %arg6[%c240, %c0_54] : memref<576x256xbf16, #tpu.memory_space<vmem>>, vector<48x256xbf16>
    %cst_55 = arith.constant dense<0.000000e+00> : vector<8x256xf32>
    %80 = tpu.matmul %78, %79, %cst_55 {dimension_numbers = #tpu.dot_dimension_numbers<[1], [0], [0], [1], [0, 0, 1, 1], [], []>} : vector<8x48xbf16>, vector<48x256xbf16>, vector<8x256xf32> -> vector<8x256xf32>
    %81 = arith.addf %69, %80 : vector<8x256xf32>
    %82 = vector.extract_strided_slice %8 {offsets = [0, 900], sizes = [8, 240], strides = [1, 1]} : vector<8x1920xbf16> to vector<8x240xbf16>
    %c0_56 = arith.constant 0 : index
    %c0_57 = arith.constant 0 : index
    %83 = vector.load %arg4[%c0_56, %c0_57] : memref<240x48xbf16, #tpu.memory_space<vmem>>, vector<240x48xbf16>
    %cst_58 = arith.constant dense<0.000000e+00> : vector<8x48xf32>
    %84 = tpu.matmul %82, %83, %cst_58 {dimension_numbers = #tpu.dot_dimension_numbers<[1], [0], [0], [1], [0, 0, 1, 1], [], []>} : vector<8x240xbf16>, vector<240x48xbf16>, vector<8x48xf32> -> vector<8x48xf32>
    %c0_59 = arith.constant 0 : index
    %c0_60 = arith.constant 0 : index
    %85 = vector.load %arg5[%c0_59, %c0_60] : memref<1x48xf32, #tpu.memory_space<vmem>>, vector<1x48xf32>
    %86 = vector.broadcast %85 : vector<1x48xf32> to vector<8x48xf32>
    %87 = arith.addf %84, %86 : vector<8x48xf32>
    %cst_61 = arith.constant 0.000000e+00 : f32
    %88 = vector.broadcast %cst_61 : f32 to vector<8x48xf32>
    %89 = arith.maximumf %87, %88 : vector<8x48xf32>
    %90 = arith.truncf %89 : vector<8x48xf32> to vector<8x48xbf16>
    %c288 = arith.constant 288 : index
    %c0_62 = arith.constant 0 : index
    %91 = vector.load %arg6[%c288, %c0_62] : memref<576x256xbf16, #tpu.memory_space<vmem>>, vector<48x256xbf16>
    %cst_63 = arith.constant dense<0.000000e+00> : vector<8x256xf32>
    %92 = tpu.matmul %90, %91, %cst_63 {dimension_numbers = #tpu.dot_dimension_numbers<[1], [0], [0], [1], [0, 0, 1, 1], [], []>} : vector<8x48xbf16>, vector<48x256xbf16>, vector<8x256xf32> -> vector<8x256xf32>
    %93 = arith.addf %81, %92 : vector<8x256xf32>
    %94 = vector.extract_strided_slice %8 {offsets = [0, 1050], sizes = [8, 240], strides = [1, 1]} : vector<8x1920xbf16> to vector<8x240xbf16>
    %c0_64 = arith.constant 0 : index
    %c0_65 = arith.constant 0 : index
    %95 = vector.load %arg4[%c0_64, %c0_65] : memref<240x48xbf16, #tpu.memory_space<vmem>>, vector<240x48xbf16>
    %cst_66 = arith.constant dense<0.000000e+00> : vector<8x48xf32>
    %96 = tpu.matmul %94, %95, %cst_66 {dimension_numbers = #tpu.dot_dimension_numbers<[1], [0], [0], [1], [0, 0, 1, 1], [], []>} : vector<8x240xbf16>, vector<240x48xbf16>, vector<8x48xf32> -> vector<8x48xf32>
    %c0_67 = arith.constant 0 : index
    %c0_68 = arith.constant 0 : index
    %97 = vector.load %arg5[%c0_67, %c0_68] : memref<1x48xf32, #tpu.memory_space<vmem>>, vector<1x48xf32>
    %98 = vector.broadcast %97 : vector<1x48xf32> to vector<8x48xf32>
    %99 = arith.addf %96, %98 : vector<8x48xf32>
    %cst_69 = arith.constant 0.000000e+00 : f32
    %100 = vector.broadcast %cst_69 : f32 to vector<8x48xf32>
    %101 = arith.maximumf %99, %100 : vector<8x48xf32>
    %102 = arith.truncf %101 : vector<8x48xf32> to vector<8x48xbf16>
    %c336 = arith.constant 336 : index
    %c0_70 = arith.constant 0 : index
    %103 = vector.load %arg6[%c336, %c0_70] : memref<576x256xbf16, #tpu.memory_space<vmem>>, vector<48x256xbf16>
    %cst_71 = arith.constant dense<0.000000e+00> : vector<8x256xf32>
    %104 = tpu.matmul %102, %103, %cst_71 {dimension_numbers = #tpu.dot_dimension_numbers<[1], [0], [0], [1], [0, 0, 1, 1], [], []>} : vector<8x48xbf16>, vector<48x256xbf16>, vector<8x256xf32> -> vector<8x256xf32>
    %105 = arith.addf %93, %104 : vector<8x256xf32>
    %106 = vector.extract_strided_slice %8 {offsets = [0, 1200], sizes = [8, 240], strides = [1, 1]} : vector<8x1920xbf16> to vector<8x240xbf16>
    %c0_72 = arith.constant 0 : index
    %c0_73 = arith.constant 0 : index
    %107 = vector.load %arg4[%c0_72, %c0_73] : memref<240x48xbf16, #tpu.memory_space<vmem>>, vector<240x48xbf16>
    %cst_74 = arith.constant dense<0.000000e+00> : vector<8x48xf32>
    %108 = tpu.matmul %106, %107, %cst_74 {dimension_numbers = #tpu.dot_dimension_numbers<[1], [0], [0], [1], [0, 0, 1, 1], [], []>} : vector<8x240xbf16>, vector<240x48xbf16>, vector<8x48xf32> -> vector<8x48xf32>
    %c0_75 = arith.constant 0 : index
    %c0_76 = arith.constant 0 : index
    %109 = vector.load %arg5[%c0_75, %c0_76] : memref<1x48xf32, #tpu.memory_space<vmem>>, vector<1x48xf32>
    %110 = vector.broadcast %109 : vector<1x48xf32> to vector<8x48xf32>
    %111 = arith.addf %108, %110 : vector<8x48xf32>
    %cst_77 = arith.constant 0.000000e+00 : f32
    %112 = vector.broadcast %cst_77 : f32 to vector<8x48xf32>
    %113 = arith.maximumf %111, %112 : vector<8x48xf32>
    %114 = arith.truncf %113 : vector<8x48xf32> to vector<8x48xbf16>
    %c384 = arith.constant 384 : index
    %c0_78 = arith.constant 0 : index
    %115 = vector.load %arg6[%c384, %c0_78] : memref<576x256xbf16, #tpu.memory_space<vmem>>, vector<48x256xbf16>
    %cst_79 = arith.constant dense<0.000000e+00> : vector<8x256xf32>
    %116 = tpu.matmul %114, %115, %cst_79 {dimension_numbers = #tpu.dot_dimension_numbers<[1], [0], [0], [1], [0, 0, 1, 1], [], []>} : vector<8x48xbf16>, vector<48x256xbf16>, vector<8x256xf32> -> vector<8x256xf32>
    %117 = arith.addf %105, %116 : vector<8x256xf32>
    %118 = vector.extract_strided_slice %8 {offsets = [0, 1350], sizes = [8, 240], strides = [1, 1]} : vector<8x1920xbf16> to vector<8x240xbf16>
    %c0_80 = arith.constant 0 : index
    %c0_81 = arith.constant 0 : index
    %119 = vector.load %arg4[%c0_80, %c0_81] : memref<240x48xbf16, #tpu.memory_space<vmem>>, vector<240x48xbf16>
    %cst_82 = arith.constant dense<0.000000e+00> : vector<8x48xf32>
    %120 = tpu.matmul %118, %119, %cst_82 {dimension_numbers = #tpu.dot_dimension_numbers<[1], [0], [0], [1], [0, 0, 1, 1], [], []>} : vector<8x240xbf16>, vector<240x48xbf16>, vector<8x48xf32> -> vector<8x48xf32>
    %c0_83 = arith.constant 0 : index
    %c0_84 = arith.constant 0 : index
    %121 = vector.load %arg5[%c0_83, %c0_84] : memref<1x48xf32, #tpu.memory_space<vmem>>, vector<1x48xf32>
    %122 = vector.broadcast %121 : vector<1x48xf32> to vector<8x48xf32>
    %123 = arith.addf %120, %122 : vector<8x48xf32>
    %cst_85 = arith.constant 0.000000e+00 : f32
    %124 = vector.broadcast %cst_85 : f32 to vector<8x48xf32>
    %125 = arith.maximumf %123, %124 : vector<8x48xf32>
    %126 = arith.truncf %125 : vector<8x48xf32> to vector<8x48xbf16>
    %c432 = arith.constant 432 : index
    %c0_86 = arith.constant 0 : index
    %127 = vector.load %arg6[%c432, %c0_86] : memref<576x256xbf16, #tpu.memory_space<vmem>>, vector<48x256xbf16>
    %cst_87 = arith.constant dense<0.000000e+00> : vector<8x256xf32>
    %128 = tpu.matmul %126, %127, %cst_87 {dimension_numbers = #tpu.dot_dimension_numbers<[1], [0], [0], [1], [0, 0, 1, 1], [], []>} : vector<8x48xbf16>, vector<48x256xbf16>, vector<8x256xf32> -> vector<8x256xf32>
    %129 = arith.addf %117, %128 : vector<8x256xf32>
    %130 = vector.extract_strided_slice %8 {offsets = [0, 1500], sizes = [8, 240], strides = [1, 1]} : vector<8x1920xbf16> to vector<8x240xbf16>
    %c0_88 = arith.constant 0 : index
    %c0_89 = arith.constant 0 : index
    %131 = vector.load %arg4[%c0_88, %c0_89] : memref<240x48xbf16, #tpu.memory_space<vmem>>, vector<240x48xbf16>
    %cst_90 = arith.constant dense<0.000000e+00> : vector<8x48xf32>
    %132 = tpu.matmul %130, %131, %cst_90 {dimension_numbers = #tpu.dot_dimension_numbers<[1], [0], [0], [1], [0, 0, 1, 1], [], []>} : vector<8x240xbf16>, vector<240x48xbf16>, vector<8x48xf32> -> vector<8x48xf32>
    %c0_91 = arith.constant 0 : index
    %c0_92 = arith.constant 0 : index
    %133 = vector.load %arg5[%c0_91, %c0_92] : memref<1x48xf32, #tpu.memory_space<vmem>>, vector<1x48xf32>
    %134 = vector.broadcast %133 : vector<1x48xf32> to vector<8x48xf32>
    %135 = arith.addf %132, %134 : vector<8x48xf32>
    %cst_93 = arith.constant 0.000000e+00 : f32
    %136 = vector.broadcast %cst_93 : f32 to vector<8x48xf32>
    %137 = arith.maximumf %135, %136 : vector<8x48xf32>
    %138 = arith.truncf %137 : vector<8x48xf32> to vector<8x48xbf16>
    %c480 = arith.constant 480 : index
    %c0_94 = arith.constant 0 : index
    %139 = vector.load %arg6[%c480, %c0_94] : memref<576x256xbf16, #tpu.memory_space<vmem>>, vector<48x256xbf16>
    %cst_95 = arith.constant dense<0.000000e+00> : vector<8x256xf32>
    %140 = tpu.matmul %138, %139, %cst_95 {dimension_numbers = #tpu.dot_dimension_numbers<[1], [0], [0], [1], [0, 0, 1, 1], [], []>} : vector<8x48xbf16>, vector<48x256xbf16>, vector<8x256xf32> -> vector<8x256xf32>
    %141 = arith.addf %129, %140 : vector<8x256xf32>
    %142 = vector.extract_strided_slice %8 {offsets = [0, 1650], sizes = [8, 240], strides = [1, 1]} : vector<8x1920xbf16> to vector<8x240xbf16>
    %c0_96 = arith.constant 0 : index
    %c0_97 = arith.constant 0 : index
    %143 = vector.load %arg4[%c0_96, %c0_97] : memref<240x48xbf16, #tpu.memory_space<vmem>>, vector<240x48xbf16>
    %cst_98 = arith.constant dense<0.000000e+00> : vector<8x48xf32>
    %144 = tpu.matmul %142, %143, %cst_98 {dimension_numbers = #tpu.dot_dimension_numbers<[1], [0], [0], [1], [0, 0, 1, 1], [], []>} : vector<8x240xbf16>, vector<240x48xbf16>, vector<8x48xf32> -> vector<8x48xf32>
    %c0_99 = arith.constant 0 : index
    %c0_100 = arith.constant 0 : index
    %145 = vector.load %arg5[%c0_99, %c0_100] : memref<1x48xf32, #tpu.memory_space<vmem>>, vector<1x48xf32>
    %146 = vector.broadcast %145 : vector<1x48xf32> to vector<8x48xf32>
    %147 = arith.addf %144, %146 : vector<8x48xf32>
    %cst_101 = arith.constant 0.000000e+00 : f32
    %148 = vector.broadcast %cst_101 : f32 to vector<8x48xf32>
    %149 = arith.maximumf %147, %148 : vector<8x48xf32>
    %150 = arith.truncf %149 : vector<8x48xf32> to vector<8x48xbf16>
    %c528 = arith.constant 528 : index
    %c0_102 = arith.constant 0 : index
    %151 = vector.load %arg6[%c528, %c0_102] : memref<576x256xbf16, #tpu.memory_space<vmem>>, vector<48x256xbf16>
    %cst_103 = arith.constant dense<0.000000e+00> : vector<8x256xf32>
    %152 = tpu.matmul %150, %151, %cst_103 {dimension_numbers = #tpu.dot_dimension_numbers<[1], [0], [0], [1], [0, 0, 1, 1], [], []>} : vector<8x48xbf16>, vector<48x256xbf16>, vector<8x256xf32> -> vector<8x256xf32>
    %153 = arith.addf %141, %152 : vector<8x256xf32>
    %c0_104 = arith.constant 0 : index
    %c0_105 = arith.constant 0 : index
    %154 = vector.load %arg7[%c0_104, %c0_105] : memref<1x256xf32, #tpu.memory_space<vmem>>, vector<1x256xf32>
    %155 = vector.broadcast %154 : vector<1x256xf32> to vector<8x256xf32>
    %156 = arith.addf %153, %155 : vector<8x256xf32>
    %cst_106 = arith.constant 0.000000e+00 : f32
    %157 = vector.broadcast %cst_106 : f32 to vector<8x256xf32>
    %158 = arith.maximumf %156, %157 : vector<8x256xf32>
    %159 = arith.truncf %158 : vector<8x256xf32> to vector<8x256xbf16>
    %c0_107 = arith.constant 0 : index
    %c0_108 = arith.constant 0 : index
    %160 = vector.load %arg8[%c0_107, %c0_108] : memref<256x128xbf16, #tpu.memory_space<vmem>>, vector<256x128xbf16>
    %cst_109 = arith.constant dense<0.000000e+00> : vector<8x128xf32>
    %161 = tpu.matmul %159, %160, %cst_109 {dimension_numbers = #tpu.dot_dimension_numbers<[1], [0], [0], [1], [0, 0, 1, 1], [], []>} : vector<8x256xbf16>, vector<256x128xbf16>, vector<8x128xf32> -> vector<8x128xf32>
    %c0_110 = arith.constant 0 : index
    %c0_111 = arith.constant 0 : index
    %162 = vector.load %arg9[%c0_110, %c0_111] : memref<1x128xf32, #tpu.memory_space<vmem>>, vector<1x128xf32>
    %163 = vector.broadcast %162 : vector<1x128xf32> to vector<8x128xf32>
    %164 = arith.addf %161, %163 : vector<8x128xf32>
    %cst_112 = arith.constant 0.000000e+00 : f32
    %165 = vector.broadcast %cst_112 : f32 to vector<8x128xf32>
    %166 = arith.maximumf %164, %165 : vector<8x128xf32>
    %167 = arith.truncf %166 : vector<8x128xf32> to vector<8x128xbf16>
    %c0_113 = arith.constant 0 : index
    %c0_114 = arith.constant 0 : index
    %168 = vector.load %arg10[%c0_113, %c0_114] : memref<128x32xbf16, #tpu.memory_space<vmem>>, vector<128x32xbf16>
    %cst_115 = arith.constant dense<0.000000e+00> : vector<8x32xf32>
    %169 = tpu.matmul %167, %168, %cst_115 {dimension_numbers = #tpu.dot_dimension_numbers<[1], [0], [0], [1], [0, 0, 1, 1], [], []>} : vector<8x128xbf16>, vector<128x32xbf16>, vector<8x32xf32> -> vector<8x32xf32>
    %c0_116 = arith.constant 0 : index
    %c0_117 = arith.constant 0 : index
    %170 = vector.load %arg11[%c0_116, %c0_117] : memref<1x32xf32, #tpu.memory_space<vmem>>, vector<1x32xf32>
    %171 = vector.broadcast %170 : vector<1x32xf32> to vector<8x32xf32>
    %172 = arith.addf %169, %171 : vector<8x32xf32>
    %c0_118 = arith.constant 0 : index
    %c0_119 = arith.constant 0 : index
    %173 = vector.load %arg12[%c0_118, %c0_119] : memref<8x32xf32, #tpu.memory_space<vmem>>, vector<8x32xf32>
    tpu.vector_store %arg12[%c0_118, %c0_119], %172 {strides = array<i32>} : memref<8x32xf32, #tpu.memory_space<vmem>>, vector<8x32xf32>,
    return
  }
  func.func @transform_0(%arg0: i32) -> (i32, i32) {
    %c0_i32 = arith.constant 0 : i32
    %c0_i32_0 = arith.constant 0 : i32
    return %arg0, %c0_i32 : i32, i32
  }
  func.func @transform_1(%arg0: i32) -> (i32, i32) {
    %c0_i32 = arith.constant 0 : i32
    %c0_i32_0 = arith.constant 0 : i32
    %c0_i32_1 = arith.constant 0 : i32
    return %c0_i32, %c0_i32_0 : i32, i32
  }
  func.func @transform_2(%arg0: i32) -> (i32, i32) {
    %c0_i32 = arith.constant 0 : i32
    %c0_i32_0 = arith.constant 0 : i32
    %c0_i32_1 = arith.constant 0 : i32
    return %c0_i32, %c0_i32_0 : i32, i32
  }
  func.func @transform_3(%arg0: i32) -> (i32, i32) {
    %c0_i32 = arith.constant 0 : i32
    %c0_i32_0 = arith.constant 0 : i32
    %c0_i32_1 = arith.constant 0 : i32
    return %c0_i32, %c0_i32_0 : i32, i32
  }
  func.func @transform_4(%arg0: i32) -> (i32, i32) {
    %c0_i32 = arith.constant 0 : i32
    %c0_i32_0 = arith.constant 0 : i32
    %c0_i32_1 = arith.constant 0 : i32
    return %c0_i32, %c0_i32_0 : i32, i32
  }
  func.func @transform_5(%arg0: i32) -> (i32, i32) {
    %c0_i32 = arith.constant 0 : i32
    %c0_i32_0 = arith.constant 0 : i32
    %c0_i32_1 = arith.constant 0 : i32
    return %c0_i32, %c0_i32_0 : i32, i32
  }
  func.func @transform_6(%arg0: i32) -> (i32, i32) {
    %c0_i32 = arith.constant 0 : i32
    %c0_i32_0 = arith.constant 0 : i32
    %c0_i32_1 = arith.constant 0 : i32
    return %c0_i32, %c0_i32_0 : i32, i32
  }
  func.func @transform_7(%arg0: i32) -> (i32, i32) {
    %c0_i32 = arith.constant 0 : i32
    %c0_i32_0 = arith.constant 0 : i32
    %c0_i32_1 = arith.constant 0 : i32
    return %c0_i32, %c0_i32_0 : i32, i32
  }
  func.func @transform_8(%arg0: i32) -> (i32, i32) {
    %c0_i32 = arith.constant 0 : i32
    %c0_i32_0 = arith.constant 0 : i32
    %c0_i32_1 = arith.constant 0 : i32
    return %c0_i32, %c0_i32_0 : i32, i32
  }
  func.func @transform_9(%arg0: i32) -> (i32, i32) {
    %c0_i32 = arith.constant 0 : i32
    %c0_i32_0 = arith.constant 0 : i32
    %c0_i32_1 = arith.constant 0 : i32
    return %c0_i32, %c0_i32_0 : i32, i32
  }
  func.func @transform_10(%arg0: i32) -> (i32, i32) {
    %c0_i32 = arith.constant 0 : i32
    %c0_i32_0 = arith.constant 0 : i32
    %c0_i32_1 = arith.constant 0 : i32
    return %c0_i32, %c0_i32_0 : i32, i32
  }
  func.func @transform_11(%arg0: i32) -> (i32, i32) {
    %c0_i32 = arith.constant 0 : i32
    %c0_i32_0 = arith.constant 0 : i32
    return %arg0, %c0_i32 : i32, i32
  }
}

</mosaic_0001>

<llo_original>
// kernel: siamese_forward.1
$region0: #{siamese_forward.1}
  #allocation0 [shape = 'u32[]', space=smem, size = 0x4, offset = 0x4, fixed_abs, tag = 'smem constant byte address 0x4 - core index']
  #allocation1 [shape = 'u32[144,128]{1,0:T(1,128)}', space=vmem, size = 0x12000, scoped, tag = 'internal scratch']
  %s0 = inlined_call_operand.vmem [shape: bf16[8,256], index: 0, kind: input, shape index: {}]
  %s1 = inlined_call_operand.hbm [shape: bf16[256,1920], index: 1, kind: input, shape index: {}]
  %s2 = inlined_call_operand.vmem [shape: f32[1,1920], index: 2, kind: input, shape index: {}]
  %s3 = inlined_call_operand.vmem [shape: bf16[240,48], index: 3, kind: input, shape index: {}]
  %s4 = inlined_call_operand.vmem [shape: f32[1,48], index: 4, kind: input, shape index: {}]
  %s5 = inlined_call_operand.hbm [shape: bf16[576,256], index: 5, kind: input, shape index: {}]
  %s6 = inlined_call_operand.vmem [shape: f32[1,256], index: 6, kind: input, shape index: {}]
  %s7 = inlined_call_operand.vmem [shape: bf16[256,128], index: 7, kind: input, shape index: {}]
  %s8 = inlined_call_operand.vmem [shape: f32[1,128], index: 8, kind: input, shape index: {}]
  %s9 = inlined_call_operand.vmem [shape: bf16[128,32], index: 9, kind: input, shape index: {}]
  %s10 = inlined_call_operand.vmem [shape: f32[1,32], index: 10, kind: input, shape index: {}]
  %s11 = inlined_call_operand.vmem [shape: f32[8,32], index: 11, kind: output, shape index: {}]
  %s12 = sld [smem:[#allocation0]]
  $region62: #{siamese_forward.1} parent=0
    _
  %s14 = ssub.s32 1, %s12
  %s15 = scalar_select 0, %s14, %s12
  $region1: #{siamese_forward.1} parent=0
    #allocation2 [shape = 'u8[983040]{0}', space=vmem, size = 0xf0000, scoped, tag = 'input window, operand 1, single buffered']
    #allocation3 [shape = 's32[1]{0}', space=sflag, size = 0x4, scoped, tag = 'scoped memory for siamese_forward.1']
    #allocation4 [shape = 'u8[294912]{0}', space=vmem, size = 0x48000, scoped, tag = 'input window, operand 5, single buffered']
    #allocation5 [shape = 's32[1]{0}', space=sflag, size = 0x4, scoped, tag = 'scoped memory for siamese_forward.1']
    %16 = vsyncpa [#allocation3], 0
    %17 = vsyncpa [#allocation5], 0
    // Predicated region
    $region2: #{siamese_forward.1} parent=1 // pred_check
      _
    $region3: #{siamese_forward.1} parent=1 // pred_check_branch
      %19 = sbr.rel (0) target = $region5
    $region4: #{siamese_forward.1} parent=1 // pred_region
      _
    $region5: #{siamese_forward.1} parent=1 // pred_fallthru
      _
    // Predicated region
    $region6: #{siamese_forward.1} parent=1 // pred_check
      _
    $region7: #{siamese_forward.1} parent=1 // pred_check_branch
      %21 = sbr.rel (0) target = $region9
    $region8: #{siamese_forward.1} parent=1 // pred_region
      %s23 = ssub.s32 30720, 30720
      %24 = vsyncadd [#allocation3], %s23
      %s25 = sshll.u32 [#allocation2], 4
      %s26 = int_to_ptr.vmem [resolvable:$true] %s25
      %31 = dma.hbm_to_vmem [thread:$0]  %s1, 30720, %s26, [#allocation3], 960, 960, 60
    $region9: #{siamese_forward.1} parent=1 // pred_fallthru
      _
    // Predicated region
    $region10: #{siamese_forward.1} parent=1 // pred_check
      _
    $region11: #{siamese_forward.1} parent=1 // pred_check_branch
      %33 = sbr.rel (0) target = $region13
    $region12: #{siamese_forward.1} parent=1 // pred_region
      _
    $region13: #{siamese_forward.1} parent=1 // pred_fallthru
      _
    // Predicated region
    $region14: #{siamese_forward.1} parent=1 // pred_check
      _
    $region15: #{siamese_forward.1} parent=1 // pred_check_branch
      %35 = sbr.rel (0) target = $region17
    $region16: #{siamese_forward.1} parent=1 // pred_region
      _
    $region17: #{siamese_forward.1} parent=1 // pred_fallthru
      _
    // Predicated region
    $region18: #{siamese_forward.1} parent=1 // pred_check
      _
    $region19: #{siamese_forward.1} parent=1 // pred_check_branch
      %37 = sbr.rel (0) target = $region21
    $region20: #{siamese_forward.1} parent=1 // pred_region
      _
    $region21: #{siamese_forward.1} parent=1 // pred_fallthru
      _
    // Predicated region
    $region22: #{siamese_forward.1} parent=1 // pred_check
      _
    $region23: #{siamese_forward.1} parent=1 // pred_check_branch
      %39 = sbr.rel (0) target = $region25
    $region24: #{siamese_forward.1} parent=1 // pred_region
      %s41 = ssub.s32 9216, 9216
      %42 = vsyncadd [#allocation5], %s41
      %s43 = sshll.u32 [#allocation4], 4
      %s44 = int_to_ptr.vmem [resolvable:$true] %s43
      %49 = dma.hbm_to_vmem [thread:$0]  %s5, 9216, %s44, [#allocation5], 128, 128, 8
    $region25: #{siamese_forward.1} parent=1 // pred_fallthru
      _
    // Predicated region
    $region26: #{siamese_forward.1} parent=1 // pred_check
      _
    $region27: #{siamese_forward.1} parent=1 // pred_check_branch
      %51 = sbr.rel (0) target = $region29
    $region28: #{siamese_forward.1} parent=1 // pred_region
      _
    $region29: #{siamese_forward.1} parent=1 // pred_fallthru
      _
    // Predicated region
    $region30: #{siamese_forward.1} parent=1 // pred_check
      _
    $region31: #{siamese_forward.1} parent=1 // pred_check_branch
      %53 = sbr.rel (0) target = $region33
    $region32: #{siamese_forward.1} parent=1 // pred_region
      _
    $region33: #{siamese_forward.1} parent=1 // pred_fallthru
      _
    // Predicated region
    $region34: #{siamese_forward.1} parent=1 // pred_check
      _
    $region35: #{siamese_forward.1} parent=1 // pred_check_branch
      %55 = sbr.rel (0) target = $region37
    $region36: #{siamese_forward.1} parent=1 // pred_region
      _
    $region37: #{siamese_forward.1} parent=1 // pred_fallthru
      _
    // Predicated region
    $region38: #{siamese_forward.1} parent=1 // pred_check
      _
    $region39: #{siamese_forward.1} parent=1 // pred_check_branch
      %57 = sbr.rel (0) target = $region41
    $region40: #{siamese_forward.1} parent=1 // pred_region
      _
    $region41: #{siamese_forward.1} parent=1 // pred_fallthru
      _
    // Predicated region
    $region42: #{siamese_forward.1} parent=1 // pred_check
      _
    $region43: #{siamese_forward.1} parent=1 // pred_check_branch
      %59 = sbr.rel (0) target = $region45
    $region44: #{siamese_forward.1} parent=1 // pred_region
      _
    $region45: #{siamese_forward.1} parent=1 // pred_fallthru
      _
    // Predicated region
    $region46: #{siamese_forward.1} parent=1 // pred_check
      _
    $region47: #{siamese_forward.1} parent=1 // pred_check_branch
      %61 = sbr.rel (0) target = $region49
    $region48: #{siamese_forward.1} parent=1 // pred_region
      %62 = dma.done [#allocation3], 30720
    $region49: #{siamese_forward.1} parent=1 // pred_fallthru
      _
    // Predicated region
    $region50: #{siamese_forward.1} parent=1 // pred_check
      _
    $region51: #{siamese_forward.1} parent=1 // pred_check_branch
      %64 = sbr.rel (0) target = $region53
    $region52: #{siamese_forward.1} parent=1 // pred_region
      %65 = dma.done [#allocation5], 9216
    $region53: #{siamese_forward.1} parent=1 // pred_fallthru
      _
    %v67 = vld [vmem:[%s0] sm:$0xff]
    %v68 = vld [vmem:[#allocation2] sm:$0xff]
    %v69 = vld [vmem:[#allocation2 + $0x8] sm:$0xff]
    %v70 = vld [vmem:[#allocation2 + $0x10] sm:$0xff]
    %v71 = vld [vmem:[#allocation2 + $0x18] sm:$0xff]
    %v72 = vld [vmem:[#allocation2 + $0x20] sm:$0xff]
    %v73 = vld [vmem:[#allocation2 + $0x28] sm:$0xff]
    %v74 = vld [vmem:[#allocation2 + $0x30] sm:$0xff]
    %v75 = vld [vmem:[#allocation2 + $0x38] sm:$0xf]
    %v76 = vld [vmem:[#allocation2 + $0x3c] sm:$0xff]
    %v77 = vld [vmem:[#allocation2 + $0x44] sm:$0xff]
    %v78 = vld [vmem:[#allocation2 + $0x4c] sm:$0xff]
    %v79 = vld [vmem:[#allocation2 + $0x54] sm:$0xff]
    %v80 = vld [vmem:[#allocation2 + $0x5c] sm:$0xff]
    %v81 = vld [vmem:[#allocation2 + $0x64] sm:$0xff]
    %v82 = vld [vmem:[#allocation2 + $0x6c] sm:$0xff]
    %v83 = vld [vmem:[#allocation2 + $0x74] sm:$0xf]
    %v84 = vld [vmem:[#allocation2 + $0x78] sm:$0xff]
    %v85 = vld [vmem:[#allocation2 + $0x80] sm:$0xff]
    %v86 = vld [vmem:[#allocation2 + $0x88] sm:$0xff]
    %v87 = vld [vmem:[#allocation2 + $0x90] sm:$0xff]
    %v88 = vld [vmem:[#allocation2 + $0x98] sm:$0xff]
    %v89 = vld [vmem:[#allocation2 + $0xa0] sm:$0xff]
    %v90 = vld [vmem:[#allocation2 + $0xa8] sm:$0xff]
    %v91 = vld [vmem:[#allocation2 + $0xb0] sm:$0xf]
    %v92 = vld [vmem:[#allocation2 + $0xb4] sm:$0xff]
    %v93 = vld [vmem:[#allocation2 + $0xbc] sm:$0xff]
    %v94 = vld [vmem:[#allocation2 + $0xc4] sm:$0xff]
    %v95 = vld [vmem:[#allocation2 + $0xcc] sm:$0xff]
    %v96 = vld [vmem:[#allocation2 + $0xd4] sm:$0xff]
    %v97 = vld [vmem:[#allocation2 + $0xdc] sm:$0xff]
    %v98 = vld [vmem:[#allocation2 + $0xe4] sm:$0xff]
    %v99 = vld [vmem:[#allocation2 + $0xec] sm:$0xf]
    %v100 = vld [vmem:[#allocation2 + $0xf0] sm:$0xff]
    %v101 = vld [vmem:[#allocation2 + $0xf8] sm:$0xff]
    %v102 = vld [vmem:[#allocation2 + $0x100] sm:$0xff]
    %v103 = vld [vmem:[#allocation2 + $0x108] sm:$0xff]
    %v104 = vld [vmem:[#allocation2 + $0x110] sm:$0xff]
    %v105 = vld [vmem:[#allocation2 + $0x118] sm:$0xff]
    %v106 = vld [vmem:[#allocation2 + $0x120] sm:$0xff]
    %v107 = vld [vmem:[#allocation2 + $0x128] sm:$0xf]
    %v108 = vld [vmem:[#allocation2 + $0x12c] sm:$0xff]
    %v109 = vld [vmem:[#allocation2 + $0x134] sm:$0xff]
    %v110 = vld [vmem:[#allocation2 + $0x13c] sm:$0xff]
    %v111 = vld [vmem:[#allocation2 + $0x144] sm:$0xff]
    %v112 = vld [vmem:[#allocation2 + $0x14c] sm:$0xff]
    %v113 = vld [vmem:[#allocation2 + $0x154] sm:$0xff]
    %v114 = vld [vmem:[#allocation2 + $0x15c] sm:$0xff]
    %v115 = vld [vmem:[#allocation2 + $0x164] sm:$0xf]
    %v116 = vld [vmem:[#allocation2 + $0x168] sm:$0xff]
    %v117 = vld [vmem:[#allocation2 + $0x170] sm:$0xff]
    %v118 = vld [vmem:[#allocation2 + $0x178] sm:$0xff]
    %v119 = vld [vmem:[#allocation2 + $0x180] sm:$0xff]
    %v120 = vld [vmem:[#allocation2 + $0x188] sm:$0xff]
    %v121 = vld [vmem:[#allocation2 + $0x190] sm:$0xff]
    %v122 = vld [vmem:[#allocation2 + $0x198] sm:$0xff]
    %v123 = vld [vmem:[#allocation2 + $0x1a0] sm:$0xf]
    %v124 = vld [vmem:[#allocation2 + $0x1a4] sm:$0xff]
    %v125 = vld [vmem:[#allocation2 + $0x1ac] sm:$0xff]
    %v126 = vld [vmem:[#allocation2 + $0x1b4] sm:$0xff]
    %v127 = vld [vmem:[#allocation2 + $0x1bc] sm:$0xff]
    %v128 = vld [vmem:[#allocation2 + $0x1c4] sm:$0xff]
    %v129 = vld [vmem:[#allocation2 + $0x1cc] sm:$0xff]
    %v130 = vld [vmem:[#allocation2 + $0x1d4] sm:$0xff]
    %v131 = vld [vmem:[#allocation2 + $0x1dc] sm:$0xf]
    %v132 = vld [vmem:[#allocation2 + $0x1e0] sm:$0xff]
    %v133 = vld [vmem:[#allocation2 + $0x1e8] sm:$0xff]
    %v134 = vld [vmem:[#allocation2 + $0x1f0] sm:$0xff]
    %v135 = vld [vmem:[#allocation2 + $0x1f8] sm:$0xff]
    %v136 = vld [vmem:[#allocation2 + $0x200] sm:$0xff]
    %v137 = vld [vmem:[#allocation2 + $0x208] sm:$0xff]
    %v138 = vld [vmem:[#allocation2 + $0x210] sm:$0xff]
    %v139 = vld [vmem:[#allocation2 + $0x218] sm:$0xf]
    %v140 = vld [vmem:[#allocation2 + $0x21c] sm:$0xff]
    %v141 = vld [vmem:[#allocation2 + $0x224] sm:$0xff]
    %v142 = vld [vmem:[#allocation2 + $0x22c] sm:$0xff]
    %v143 = vld [vmem:[#allocation2 + $0x234] sm:$0xff]
    %v144 = vld [vmem:[#allocation2 + $0x23c] sm:$0xff]
    %v145 = vld [vmem:[#allocation2 + $0x244] sm:$0xff]
    %v146 = vld [vmem:[#allocation2 + $0x24c] sm:$0xff]
    %v147 = vld [vmem:[#allocation2 + $0x254] sm:$0xf]
    %v148 = vld [vmem:[#allocation2 + $0x258] sm:$0xff]
    %v149 = vld [vmem:[#allocation2 + $0x260] sm:$0xff]
    %v150 = vld [vmem:[#allocation2 + $0x268] sm:$0xff]
    %v151 = vld [vmem:[#allocation2 + $0x270] sm:$0xff]
    %v152 = vld [vmem:[#allocation2 + $0x278] sm:$0xff]
    %v153 = vld [vmem:[#allocation2 + $0x280] sm:$0xff]
    %v154 = vld [vmem:[#allocation2 + $0x288] sm:$0xff]
    %v155 = vld [vmem:[#allocation2 + $0x290] sm:$0xf]
    %v156 = vld [vmem:[#allocation2 + $0x294] sm:$0xff]
    %v157 = vld [vmem:[#allocation2 + $0x29c] sm:$0xff]
    %v158 = vld [vmem:[#allocation2 + $0x2a4] sm:$0xff]
    %v159 = vld [vmem:[#allocation2 + $0x2ac] sm:$0xff]
    %v160 = vld [vmem:[#allocation2 + $0x2b4] sm:$0xff]
    %v161 = vld [vmem:[#allocation2 + $0x2bc] sm:$0xff]
    %v162 = vld [vmem:[#allocation2 + $0x2c4] sm:$0xff]
    %v163 = vld [vmem:[#allocation2 + $0x2cc] sm:$0xf]
    %v164 = vld [vmem:[#allocation2 + $0x2d0] sm:$0xff]
    %v165 = vld [vmem:[#allocation2 + $0x2d8] sm:$0xff]
    %v166 = vld [vmem:[#allocation2 + $0x2e0] sm:$0xff]
    %v167 = vld [vmem:[#allocation2 + $0x2e8] sm:$0xff]
    %v168 = vld [vmem:[#allocation2 + $0x2f0] sm:$0xff]
    %v169 = vld [vmem:[#allocation2 + $0x2f8] sm:$0xff]
    %v170 = vld [vmem:[#allocation2 + $0x300] sm:$0xff]
    %v171 = vld [vmem:[#allocation2 + $0x308] sm:$0xf]
    %v172 = vld [vmem:[#allocation2 + $0x30c] sm:$0xff]
    %v173 = vld [vmem:[#allocation2 + $0x314] sm:$0xff]
    %v174 = vld [vmem:[#allocation2 + $0x31c] sm:$0xff]
    %v175 = vld [vmem:[#allocation2 + $0x324] sm:$0xff]
    %v176 = vld [vmem:[#allocation2 + $0x32c] sm:$0xff]
    %v177 = vld [vmem:[#allocation2 + $0x334] sm:$0xff]
    %v178 = vld [vmem:[#allocation2 + $0x33c] sm:$0xff]
    %v179 = vld [vmem:[#allocation2 + $0x344] sm:$0xf]
    %v180 = vld [vmem:[#allocation2 + $0x348] sm:$0xff]
    %v181 = vld [vmem:[#allocation2 + $0x350] sm:$0xff]
    %v182 = vld [vmem:[#allocation2 + $0x358] sm:$0xff]
    %v183 = vld [vmem:[#allocation2 + $0x360] sm:$0xff]
    %v184 = vld [vmem:[#allocation2 + $0x368] sm:$0xff]
    %v185 = vld [vmem:[#allocation2 + $0x370] sm:$0xff]
    %v186 = vld [vmem:[#allocation2 + $0x378] sm:$0xff]
    %v187 = vld [vmem:[#allocation2 + $0x380] sm:$0xf]
    %v188 = vld [vmem:[#allocation2 + $0x384] sm:$0xff]
    %v189 = vld [vmem:[#allocation2 + $0x38c] sm:$0xff]
    %v190 = vld [vmem:[#allocation2 + $0x394] sm:$0xff]
    %v191 = vld [vmem:[#allocation2 + $0x39c] sm:$0xff]
    %v192 = vld [vmem:[#allocation2 + $0x3a4] sm:$0xff]
    %v193 = vld [vmem:[#allocation2 + $0x3ac] sm:$0xff]
    %v194 = vld [vmem:[#allocation2 + $0x3b4] sm:$0xff]
    %v195 = vld [vmem:[#allocation2 + $0x3bc] sm:$0xf]
    %v196 = vld [vmem:[#allocation2 + $0x3c0] sm:$0xff]
    %v197 = vld [vmem:[#allocation2 + $0x3c8] sm:$0xff]
    %v198 = vld [vmem:[#allocation2 + $0x3d0] sm:$0xff]
    %v199 = vld [vmem:[#allocation2 + $0x3d8] sm:$0xff]
    %v200 = vld [vmem:[#allocation2 + $0x3e0] sm:$0xff]
    %v201 = vld [vmem:[#allocation2 + $0x3e8] sm:$0xff]
    %v202 = vld [vmem:[#allocation2 + $0x3f0] sm:$0xff]
    %v203 = vld [vmem:[#allocation2 + $0x3f8] sm:$0xf]
    %v204 = vld [vmem:[#allocation2 + $0x3fc] sm:$0xff]
    %v205 = vld [vmem:[#allocation2 + $0x404] sm:$0xff]
    %v206 = vld [vmem:[#allocation2 + $0x40c] sm:$0xff]
    %v207 = vld [vmem:[#allocation2 + $0x414] sm:$0xff]
    %v208 = vld [vmem:[#allocation2 + $0x41c] sm:$0xff]
    %v209 = vld [vmem:[#allocation2 + $0x424] sm:$0xff]
    %v210 = vld [vmem:[#allocation2 + $0x42c] sm:$0xff]
    %v211 = vld [vmem:[#allocation2 + $0x434] sm:$0xf]
    %v212 = vld [vmem:[#allocation2 + $0x438] sm:$0xff]
    %v213 = vld [vmem:[#allocation2 + $0x440] sm:$0xff]
    %v214 = vld [vmem:[#allocation2 + $0x448] sm:$0xff]
    %v215 = vld [vmem:[#allocation2 + $0x450] sm:$0xff]
    %v216 = vld [vmem:[#allocation2 + $0x458] sm:$0xff]
    %v217 = vld [vmem:[#allocation2 + $0x460] sm:$0xff]
    %v218 = vld [vmem:[#allocation2 + $0x468] sm:$0xff]
    %v219 = vld [vmem:[#allocation2 + $0x470] sm:$0xf]
    %v220 = vld [vmem:[#allocation2 + $0x474] sm:$0xff]
    %v221 = vld [vmem:[#allocation2 + $0x47c] sm:$0xff]
    %v222 = vld [vmem:[#allocation2 + $0x484] sm:$0xff]
    %v223 = vld [vmem:[#allocation2 + $0x48c] sm:$0xff]
    %v224 = vld [vmem:[#allocation2 + $0x494] sm:$0xff]
    %v225 = vld [vmem:[#allocation2 + $0x49c] sm:$0xff]
    %v226 = vld [vmem:[#allocation2 + $0x4a4] sm:$0xff]
    %v227 = vld [vmem:[#allocation2 + $0x4ac] sm:$0xf]
    %v228 = vld [vmem:[#allocation2 + $0x4b0] sm:$0xff]
    %v229 = vld [vmem:[#allocation2 + $0x4b8] sm:$0xff]
    %v230 = vld [vmem:[#allocation2 + $0x4c0] sm:$0xff]
    %v231 = vld [vmem:[#allocation2 + $0x4c8] sm:$0xff]
    %v232 = vld [vmem:[#allocation2 + $0x4d0] sm:$0xff]
    %v233 = vld [vmem:[#allocation2 + $0x4d8] sm:$0xff]
    %v234 = vld [vmem:[#allocation2 + $0x4e0] sm:$0xff]
    %v235 = vld [vmem:[#allocation2 + $0x4e8] sm:$0xf]
    %v236 = vld [vmem:[#allocation2 + $0x4ec] sm:$0xff]
    %v237 = vld [vmem:[#allocation2 + $0x4f4] sm:$0xff]
    %v238 = vld [vmem:[#allocation2 + $0x4fc] sm:$0xff]
    %v239 = vld [vmem:[#allocation2 + $0x504] sm:$0xff]
    %v240 = vld [vmem:[#allocation2 + $0x50c] sm:$0xff]
    %v241 = vld [vmem:[#allocation2 + $0x514] sm:$0xff]
    %v242 = vld [vmem:[#allocation2 + $0x51c] sm:$0xff]
    %v243 = vld [vmem:[#allocation2 + $0x524] sm:$0xf]
    %v244 = vld [vmem:[#allocation2 + $0x528] sm:$0xff]
    %v245 = vld [vmem:[#allocation2 + $0x530] sm:$0xff]
    %v246 = vld [vmem:[#allocation2 + $0x538] sm:$0xff]
    %v247 = vld [vmem:[#allocation2 + $0x540] sm:$0xff]
    %v248 = vld [vmem:[#allocation2 + $0x548] sm:$0xff]
    %v249 = vld [vmem:[#allocation2 + $0x550] sm:$0xff]
    %v250 = vld [vmem:[#allocation2 + $0x558] sm:$0xff]
    %v251 = vld [vmem:[#allocation2 + $0x560] sm:$0xf]
    %v252 = vld [vmem:[#allocation2 + $0x564] sm:$0xff]
    %v253 = vld [vmem:[#allocation2 + $0x56c] sm:$0xff]
    %v254 = vld [vmem:[#allocation2 + $0x574] sm:$0xff]
    %v255 = vld [vmem:[#allocation2 + $0x57c] sm:$0xff]
    %v256 = vld [vmem:[#allocation2 + $0x584] sm:$0xff]
    %v257 = vld [vmem:[#allocation2 + $0x58c] sm:$0xff]
    %v258 = vld [vmem:[#allocation2 + $0x594] sm:$0xff]
    %v259 = vld [vmem:[#allocation2 + $0x59c] sm:$0xf]
    %v260 = vld [vmem:[#allocation2 + $0x5a0] sm:$0xff]
    %v261 = vld [vmem:[#allocation2 + $0x5a8] sm:$0xff]
    %v262 = vld [vmem:[#allocation2 + $0x5b0] sm:$0xff]
    %v263 = vld [vmem:[#allocation2 + $0x5b8] sm:$0xff]
    %v264 = vld [vmem:[#allocation2 + $0x5c0] sm:$0xff]
    %v265 = vld [vmem:[#allocation2 + $0x5c8] sm:$0xff]
    %v266 = vld [vmem:[#allocation2 + $0x5d0] sm:$0xff]
    %v267 = vld [vmem:[#allocation2 + $0x5d8] sm:$0xf]
    %v268 = vld [vmem:[#allocation2 + $0x5dc] sm:$0xff]
    %v269 = vld [vmem:[#allocation2 + $0x5e4] sm:$0xff]
    %v270 = vld [vmem:[#allocation2 + $0x5ec] sm:$0xff]
    %v271 = vld [vmem:[#allocation2 + $0x5f4] sm:$0xff]
    %v272 = vld [vmem:[#allocation2 + $0x5fc] sm:$0xff]
    %v273 = vld [vmem:[#allocation2 + $0x604] sm:$0xff]
    %v274 = vld [vmem:[#allocation2 + $0x60c] sm:$0xff]
    %v275 = vld [vmem:[#allocation2 + $0x614] sm:$0xf]
    %v276 = vld [vmem:[#allocation2 + $0x618] sm:$0xff]
    %v277 = vld [vmem:[#allocation2 + $0x620] sm:$0xff]
    %v278 = vld [vmem:[#allocation2 + $0x628] sm:$0xff]
    %v279 = vld [vmem:[#allocation2 + $0x630] sm:$0xff]
    %v280 = vld [vmem:[#allocation2 + $0x638] sm:$0xff]
    %v281 = vld [vmem:[#allocation2 + $0x640] sm:$0xff]
    %v282 = vld [vmem:[#allocation2 + $0x648] sm:$0xff]
    %v283 = vld [vmem:[#allocation2 + $0x650] sm:$0xf]
    %v284 = vld [vmem:[#allocation2 + $0x654] sm:$0xff]
    %v285 = vld [vmem:[#allocation2 + $0x65c] sm:$0xff]
    %v286 = vld [vmem:[#allocation2 + $0x664] sm:$0xff]
    %v287 = vld [vmem:[#allocation2 + $0x66c] sm:$0xff]
    %v288 = vld [vmem:[#allocation2 + $0x674] sm:$0xff]
    %v289 = vld [vmem:[#allocation2 + $0x67c] sm:$0xff]
    %v290 = vld [vmem:[#allocation2 + $0x684] sm:$0xff]
    %v291 = vld [vmem:[#allocation2 + $0x68c] sm:$0xf]
    %v292 = vld [vmem:[#allocation2 + $0x690] sm:$0xff]
    %v293 = vld [vmem:[#allocation2 + $0x698] sm:$0xff]
    %v294 = vld [vmem:[#allocation2 + $0x6a0] sm:$0xff]
    %v295 = vld [vmem:[#allocation2 + $0x6a8] sm:$0xff]
    %v296 = vld [vmem:[#allocation2 + $0x6b0] sm:$0xff]
    %v297 = vld [vmem:[#allocation2 + $0x6b8] sm:$0xff]
    %v298 = vld [vmem:[#allocation2 + $0x6c0] sm:$0xff]
    %v299 = vld [vmem:[#allocation2 + $0x6c8] sm:$0xf]
    %v300 = vld [vmem:[#allocation2 + $0x6cc] sm:$0xff]
    %v301 = vld [vmem:[#allocation2 + $0x6d4] sm:$0xff]
    %v302 = vld [vmem:[#allocation2 + $0x6dc] sm:$0xff]
    %v303 = vld [vmem:[#allocation2 + $0x6e4] sm:$0xff]
    %v304 = vld [vmem:[#allocation2 + $0x6ec] sm:$0xff]
    %v305 = vld [vmem:[#allocation2 + $0x6f4] sm:$0xff]
    %v306 = vld [vmem:[#allocation2 + $0x6fc] sm:$0xff]
    %v307 = vld [vmem:[#allocation2 + $0x704] sm:$0xf]
    %v308 = vld [vmem:[#allocation2 + $0x708] sm:$0xff]
    %v309 = vld [vmem:[#allocation2 + $0x710] sm:$0xff]
    %v310 = vld [vmem:[#allocation2 + $0x718] sm:$0xff]
    %v311 = vld [vmem:[#allocation2 + $0x720] sm:$0xff]
    %v312 = vld [vmem:[#allocation2 + $0x728] sm:$0xff]
    %v313 = vld [vmem:[#allocation2 + $0x730] sm:$0xff]
    %v314 = vld [vmem:[#allocation2 + $0x738] sm:$0xff]
    %v315 = vld [vmem:[#allocation2 + $0x740] sm:$0xf]
    %v316 = vld [vmem:[#allocation2 + $0x744] sm:$0xff]
    %v317 = vld [vmem:[#allocation2 + $0x74c] sm:$0xff]
    %v318 = vld [vmem:[#allocation2 + $0x754] sm:$0xff]
    %v319 = vld [vmem:[#allocation2 + $0x75c] sm:$0xff]
    %v320 = vld [vmem:[#allocation2 + $0x764] sm:$0xff]
    %v321 = vld [vmem:[#allocation2 + $0x76c] sm:$0xff]
    %v322 = vld [vmem:[#allocation2 + $0x774] sm:$0xff]
    %v323 = vld [vmem:[#allocation2 + $0x77c] sm:$0xf]
    %v324 = vld [vmem:[%s2] sm:$0xff]
    %v325 = vld [vmem:[%s2 + $0x8] sm:$0xff]
    %v328 = vlaneseq
    %v329 = vshrl.u32 %v328, 7
    %v330 = vsub.s32 0, %v329
    %v331 = vrot.slane %v324, %v330
    %v332 = vlaneseq
    %v333 = vshrl.u32 %v332, 7
    %v334 = vsub.s32 1, %v333
    %v335 = vrot.slane %v324, %v334
    %v336 = vlaneseq
    %v337 = vshrl.u32 %v336, 7
    %v338 = vsub.s32 2, %v337
    %v339 = vrot.slane %v324, %v338
    %v340 = vlaneseq
    %v341 = vshrl.u32 %v340, 7
    %v342 = vsub.s32 3, %v341
    %v343 = vrot.slane %v324, %v342
    %v344 = vlaneseq
    %v345 = vshrl.u32 %v344, 7
    %v346 = vsub.s32 4, %v345
    %v347 = vrot.slane %v324, %v346
    %v348 = vlaneseq
    %v349 = vshrl.u32 %v348, 7
    %v350 = vsub.s32 5, %v349
    %v351 = vrot.slane %v324, %v350
    %v352 = vlaneseq
    %v353 = vshrl.u32 %v352, 7
    %v354 = vsub.s32 6, %v353
    %v355 = vrot.slane %v324, %v354
    %v356 = vlaneseq
    %v357 = vshrl.u32 %v356, 7
    %v358 = vsub.s32 7, %v357
    %v359 = vrot.slane %v324, %v358
    %v360 = vlaneseq
    %v361 = vshrl.u32 %v360, 7
    %v362 = vsub.s32 0, %v361
    %v363 = vrot.slane %v325, %v362
    %v364 = vlaneseq
    %v365 = vshrl.u32 %v364, 7
    %v366 = vsub.s32 1, %v365
    %v367 = vrot.slane %v325, %v366
    %v368 = vlaneseq
    %v369 = vshrl.u32 %v368, 7
    %v370 = vsub.s32 2, %v369
    %v371 = vrot.slane %v325, %v370
    %v372 = vlaneseq
    %v373 = vshrl.u32 %v372, 7
    %v374 = vsub.s32 3, %v373
    %v375 = vrot.slane %v325, %v374
    %v376 = vlaneseq
    %v377 = vshrl.u32 %v376, 7
    %v378 = vsub.s32 4, %v377
    %v379 = vrot.slane %v325, %v378
    %v380 = vlaneseq
    %v381 = vshrl.u32 %v380, 7
    %v382 = vsub.s32 5, %v381
    %v383 = vrot.slane %v325, %v382
    %v384 = vlaneseq
    %v385 = vshrl.u32 %v384, 7
    %v386 = vsub.s32 6, %v385
    %v387 = vrot.slane %v325, %v386
    %v404 = vunpack.c.l.b16 %v67
    %v405 = vunpack.c.h.b16 %v67
    %v406 = vpack.c.b16 %v404, %v404
    %v407 = vpack.c.b16 %v405, %v405
    %v666 = vunpack.c.l.b16 %v68
    %v667 = vunpack.c.h.b16 %v68
    %v668 = vunpack.c.l.b16 %v69
    %v669 = vunpack.c.h.b16 %v69
    %v670 = vunpack.c.l.b16 %v70
    %v671 = vunpack.c.h.b16 %v70
    %v672 = vunpack.c.l.b16 %v71
    %v673 = vunpack.c.h.b16 %v71
    %v674 = vunpack.c.l.b16 %v72
    %v675 = vunpack.c.h.b16 %v72
    %v676 = vunpack.c.l.b16 %v73
    %v677 = vunpack.c.h.b16 %v73
    %v678 = vunpack.c.l.b16 %v74
    %v679 = vunpack.c.h.b16 %v74
    %v680 = vunpack.c.l.b16 %v75
    %v681 = vunpack.c.l.b16 %v76
    %v682 = vunpack.c.h.b16 %v76
    %v683 = vunpack.c.l.b16 %v77
    %v684 = vunpack.c.h.b16 %v77
    %v685 = vunpack.c.l.b16 %v78
    %v686 = vunpack.c.h.b16 %v78
    %v687 = vunpack.c.l.b16 %v79
    %v688 = vunpack.c.h.b16 %v79
    %v689 = vunpack.c.l.b16 %v80
    %v690 = vunpack.c.h.b16 %v80
    %v691 = vunpack.c.l.b16 %v81
    %v692 = vunpack.c.h.b16 %v81
    %v693 = vunpack.c.l.b16 %v82
    %v694 = vunpack.c.h.b16 %v82
    %v695 = vunpack.c.l.b16 %v83
    %v696 = vunpack.c.l.b16 %v84
    %v697 = vunpack.c.h.b16 %v84
    %v698 = vunpack.c.l.b16 %v85
    %v699 = vunpack.c.h.b16 %v85
    %v700 = vunpack.c.l.b16 %v86
    %v701 = vunpack.c.h.b16 %v86
    %v702 = vunpack.c.l.b16 %v87
    %v703 = vunpack.c.h.b16 %v87
    %v704 = vunpack.c.l.b16 %v88
    %v705 = vunpack.c.h.b16 %v88
    %v706 = vunpack.c.l.b16 %v89
    %v707 = vunpack.c.h.b16 %v89
    %v708 = vunpack.c.l.b16 %v90
    %v709 = vunpack.c.h.b16 %v90
    %v710 = vunpack.c.l.b16 %v91
    %v711 = vunpack.c.l.b16 %v92
    %v712 = vunpack.c.h.b16 %v92
    %v713 = vunpack.c.l.b16 %v93
    %v714 = vunpack.c.h.b16 %v93
    %v715 = vunpack.c.l.b16 %v94
    %v716 = vunpack.c.h.b16 %v94
    %v717 = vunpack.c.l.b16 %v95
    %v718 = vunpack.c.h.b16 %v95
    %v719 = vunpack.c.l.b16 %v96
    %v720 = vunpack.c.h.b16 %v96
    %v721 = vunpack.c.l.b16 %v97
    %v722 = vunpack.c.h.b16 %v97
    %v723 = vunpack.c.l.b16 %v98
    %v724 = vunpack.c.h.b16 %v98
    %v725 = vunpack.c.l.b16 %v99
    %v726 = vunpack.c.l.b16 %v100
    %v727 = vunpack.c.h.b16 %v100
    %v728 = vunpack.c.l.b16 %v101
    %v729 = vunpack.c.h.b16 %v101
    %v730 = vunpack.c.l.b16 %v102
    %v731 = vunpack.c.h.b16 %v102
    %v732 = vunpack.c.l.b16 %v103
    %v733 = vunpack.c.h.b16 %v103
    %v734 = vunpack.c.l.b16 %v104
    %v735 = vunpack.c.h.b16 %v104
    %v736 = vunpack.c.l.b16 %v105
    %v737 = vunpack.c.h.b16 %v105
    %v738 = vunpack.c.l.b16 %v106
    %v739 = vunpack.c.h.b16 %v106
    %v740 = vunpack.c.l.b16 %v107
    %v741 = vunpack.c.l.b16 %v108
    %v742 = vunpack.c.h.b16 %v108
    %v743 = vunpack.c.l.b16 %v109
    %v744 = vunpack.c.h.b16 %v109
    %v745 = vunpack.c.l.b16 %v110
    %v746 = vunpack.c.h.b16 %v110
    %v747 = vunpack.c.l.b16 %v111
    %v748 = vunpack.c.h.b16 %v111
    %v749 = vunpack.c.l.b16 %v112
    %v750 = vunpack.c.h.b16 %v112
    %v751 = vunpack.c.l.b16 %v113
    %v752 = vunpack.c.h.b16 %v113
    %v753 = vunpack.c.l.b16 %v114
    %v754 = vunpack.c.h.b16 %v114
    %v755 = vunpack.c.l.b16 %v115
    %v756 = vunpack.c.l.b16 %v116
    %v757 = vunpack.c.h.b16 %v116
    %v758 = vunpack.c.l.b16 %v117
    %v759 = vunpack.c.h.b16 %v117
    %v760 = vunpack.c.l.b16 %v118
    %v761 = vunpack.c.h.b16 %v118
    %v762 = vunpack.c.l.b16 %v119
    %v763 = vunpack.c.h.b16 %v119
    %v764 = vunpack.c.l.b16 %v120
    %v765 = vunpack.c.h.b16 %v120
    %v766 = vunpack.c.l.b16 %v121
    %v767 = vunpack.c.h.b16 %v121
    %v768 = vunpack.c.l.b16 %v122
    %v769 = vunpack.c.h.b16 %v122
    %v770 = vunpack.c.l.b16 %v123
    %v771 = vunpack.c.l.b16 %v124
    %v772 = vunpack.c.h.b16 %v124
    %v773 = vunpack.c.l.b16 %v125
    %v774 = vunpack.c.h.b16 %v125
    %v775 = vunpack.c.l.b16 %v126
    %v776 = vunpack.c.h.b16 %v126
    %v777 = vunpack.c.l.b16 %v127
    %v778 = vunpack.c.h.b16 %v127
    %v779 = vunpack.c.l.b16 %v128
    %v780 = vunpack.c.h.b16 %v128
    %v781 = vunpack.c.l.b16 %v129
    %v782 = vunpack.c.h.b16 %v129
    %v783 = vunpack.c.l.b16 %v130
    %v784 = vunpack.c.h.b16 %v130
    %v785 = vunpack.c.l.b16 %v131
    %v786 = vunpack.c.l.b16 %v132
    %v787 = vunpack.c.h.b16 %v132
    %v788 = vunpack.c.l.b16 %v133
    %v789 = vunpack.c.h.b16 %v133
    %v790 = vunpack.c.l.b16 %v134
    %v791 = vunpack.c.h.b16 %v134
    %v792 = vunpack.c.l.b16 %v135
    %v793 = vunpack.c.h.b16 %v135
    %v794 = vunpack.c.l.b16 %v136
    %v795 = vunpack.c.h.b16 %v136
    %v796 = vunpack.c.l.b16 %v137
    %v797 = vunpack.c.h.b16 %v137
    %v798 = vunpack.c.l.b16 %v138
    %v799 = vunpack.c.h.b16 %v138
    %v800 = vunpack.c.l.b16 %v139
    %v801 = vunpack.c.l.b16 %v140
    %v802 = vunpack.c.h.b16 %v140
    %v803 = vunpack.c.l.b16 %v141
    %v804 = vunpack.c.h.b16 %v141
    %v805 = vunpack.c.l.b16 %v142
    %v806 = vunpack.c.h.b16 %v142
    %v807 = vunpack.c.l.b16 %v143
    %v808 = vunpack.c.h.b16 %v143
    %v809 = vunpack.c.l.b16 %v144
    %v810 = vunpack.c.h.b16 %v144
    %v811 = vunpack.c.l.b16 %v145
    %v812 = vunpack.c.h.b16 %v145
    %v813 = vunpack.c.l.b16 %v146
    %v814 = vunpack.c.h.b16 %v146
    %v815 = vunpack.c.l.b16 %v147
    %v816 = vunpack.c.l.b16 %v148
    %v817 = vunpack.c.h.b16 %v148
    %v818 = vunpack.c.l.b16 %v149
    %v819 = vunpack.c.h.b16 %v149
    %v820 = vunpack.c.l.b16 %v150
    %v821 = vunpack.c.h.b16 %v150
    %v822 = vunpack.c.l.b16 %v151
    %v823 = vunpack.c.h.b16 %v151
    %v824 = vunpack.c.l.b16 %v152
    %v825 = vunpack.c.h.b16 %v152
    %v826 = vunpack.c.l.b16 %v153
    %v827 = vunpack.c.h.b16 %v153
    %v828 = vunpack.c.l.b16 %v154
    %v829 = vunpack.c.h.b16 %v154
    %v830 = vunpack.c.l.b16 %v155
    %v831 = vunpack.c.l.b16 %v156
    %v832 = vunpack.c.h.b16 %v156
    %v833 = vunpack.c.l.b16 %v157
    %v834 = vunpack.c.h.b16 %v157
    %v835 = vunpack.c.l.b16 %v158
    %v836 = vunpack.c.h.b16 %v158
    %v837 = vunpack.c.l.b16 %v159
    %v838 = vunpack.c.h.b16 %v159
    %v839 = vunpack.c.l.b16 %v160
    %v840 = vunpack.c.h.b16 %v160
    %v841 = vunpack.c.l.b16 %v161
    %v842 = vunpack.c.h.b16 %v161
    %v843 = vunpack.c.l.b16 %v162
    %v844 = vunpack.c.h.b16 %v162
    %v845 = vunpack.c.l.b16 %v163
    %v846 = vunpack.c.l.b16 %v164
    %v847 = vunpack.c.h.b16 %v164
    %v848 = vunpack.c.l.b16 %v165
    %v849 = vunpack.c.h.b16 %v165
    %v850 = vunpack.c.l.b16 %v166
    %v851 = vunpack.c.h.b16 %v166
    %v852 = vunpack.c.l.b16 %v167
    %v853 = vunpack.c.h.b16 %v167
    %v854 = vunpack.c.l.b16 %v168
    %v855 = vunpack.c.h.b16 %v168
    %v856 = vunpack.c.l.b16 %v169
    %v857 = vunpack.c.h.b16 %v169
    %v858 = vunpack.c.l.b16 %v170
    %v859 = vunpack.c.h.b16 %v170
    %v860 = vunpack.c.l.b16 %v171
    %v861 = vunpack.c.l.b16 %v172
    %v862 = vunpack.c.h.b16 %v172
    %v863 = vunpack.c.l.b16 %v173
    %v864 = vunpack.c.h.b16 %v173
    %v865 = vunpack.c.l.b16 %v174
    %v866 = vunpack.c.h.b16 %v174
    %v867 = vunpack.c.l.b16 %v175
    %v868 = vunpack.c.h.b16 %v175
    %v869 = vunpack.c.l.b16 %v176
    %v870 = vunpack.c.h.b16 %v176
    %v871 = vunpack.c.l.b16 %v177
    %v872 = vunpack.c.h.b16 %v177
    %v873 = vunpack.c.l.b16 %v178
    %v874 = vunpack.c.h.b16 %v178
    %v875 = vunpack.c.l.b16 %v179
    %v876 = vunpack.c.l.b16 %v180
    %v877 = vunpack.c.h.b16 %v180
    %v878 = vunpack.c.l.b16 %v181
    %v879 = vunpack.c.h.b16 %v181
    %v880 = vunpack.c.l.b16 %v182
    %v881 = vunpack.c.h.b16 %v182
    %v882 = vunpack.c.l.b16 %v183
    %v883 = vunpack.c.h.b16 %v183
    %v884 = vunpack.c.l.b16 %v184
    %v885 = vunpack.c.h.b16 %v184
    %v886 = vunpack.c.l.b16 %v185
    %v887 = vunpack.c.h.b16 %v185
    %v888 = vunpack.c.l.b16 %v186
    %v889 = vunpack.c.h.b16 %v186
    %v890 = vunpack.c.l.b16 %v187
    %v891 = vunpack.c.l.b16 %v188
    %v892 = vunpack.c.h.b16 %v188
    %v893 = vunpack.c.l.b16 %v189
    %v894 = vunpack.c.h.b16 %v189
    %v895 = vunpack.c.l.b16 %v190
    %v896 = vunpack.c.h.b16 %v190
    %v897 = vunpack.c.l.b16 %v191
    %v898 = vunpack.c.h.b16 %v191
    %v899 = vunpack.c.l.b16 %v192
    %v900 = vunpack.c.h.b16 %v192
    %v901 = vunpack.c.l.b16 %v193
    %v902 = vunpack.c.h.b16 %v193
    %v903 = vunpack.c.l.b16 %v194
    %v904 = vunpack.c.h.b16 %v194
    %v905 = vunpack.c.l.b16 %v195
    %v906 = vunpack.c.l.b16 %v196
    %v907 = vunpack.c.h.b16 %v196
    %v908 = vunpack.c.l.b16 %v197
    %v909 = vunpack.c.h.b16 %v197
    %v910 = vunpack.c.l.b16 %v198
    %v911 = vunpack.c.h.b16 %v198
    %v912 = vunpack.c.l.b16 %v199
    %v913 = vunpack.c.h.b16 %v199
    %v914 = vunpack.c.l.b16 %v200
    %v915 = vunpack.c.h.b16 %v200
    %v916 = vunpack.c.l.b16 %v201
    %v917 = vunpack.c.h.b16 %v201
    %v918 = vunpack.c.l.b16 %v202
    %v919 = vunpack.c.h.b16 %v202
    %v920 = vunpack.c.l.b16 %v203
    %v921 = vunpack.c.l.b16 %v204
    %v922 = vunpack.c.h.b16 %v204
    %v923 = vunpack.c.l.b16 %v205
    %v924 = vunpack.c.h.b16 %v205
    %v925 = vunpack.c.l.b16 %v206
    %v926 = vunpack.c.h.b16 %v206
    %v927 = vunpack.c.l.b16 %v207
    %v928 = vunpack.c.h.b16 %v207
    %v929 = vunpack.c.l.b16 %v208
    %v930 = vunpack.c.h.b16 %v208
    %v931 = vunpack.c.l.b16 %v209
    %v932 = vunpack.c.h.b16 %v209
    %v933 = vunpack.c.l.b16 %v210
    %v934 = vunpack.c.h.b16 %v210
    %v935 = vunpack.c.l.b16 %v211
    %v936 = vunpack.c.l.b16 %v212
    %v937 = vunpack.c.h.b16 %v212
    %v938 = vunpack.c.l.b16 %v213
    %v939 = vunpack.c.h.b16 %v213
    %v940 = vunpack.c.l.b16 %v214
    %v941 = vunpack.c.h.b16 %v214
    %v942 = vunpack.c.l.b16 %v215
    %v943 = vunpack.c.h.b16 %v215
    %v944 = vunpack.c.l.b16 %v216
    %v945 = vunpack.c.h.b16 %v216
    %v946 = vunpack.c.l.b16 %v217
    %v947 = vunpack.c.h.b16 %v217
    %v948 = vunpack.c.l.b16 %v218
    %v949 = vunpack.c.h.b16 %v218
    %v950 = vunpack.c.l.b16 %v219
    %v951 = vunpack.c.l.b16 %v220
    %v952 = vunpack.c.h.b16 %v220
    %v953 = vunpack.c.l.b16 %v221
    %v954 = vunpack.c.h.b16 %v221
    %v955 = vunpack.c.l.b16 %v222
    %v956 = vunpack.c.h.b16 %v222
    %v957 = vunpack.c.l.b16 %v223
    %v958 = vunpack.c.h.b16 %v223
    %v959 = vunpack.c.l.b16 %v224
    %v960 = vunpack.c.h.b16 %v224
    %v961 = vunpack.c.l.b16 %v225
    %v962 = vunpack.c.h.b16 %v225
    %v963 = vunpack.c.l.b16 %v226
    %v964 = vunpack.c.h.b16 %v226
    %v965 = vunpack.c.l.b16 %v227
    %v966 = vunpack.c.l.b16 %v228
    %v967 = vunpack.c.h.b16 %v228
    %v968 = vunpack.c.l.b16 %v229
    %v969 = vunpack.c.h.b16 %v229
    %v970 = vunpack.c.l.b16 %v230
    %v971 = vunpack.c.h.b16 %v230
    %v972 = vunpack.c.l.b16 %v231
    %v973 = vunpack.c.h.b16 %v231
    %v974 = vunpack.c.l.b16 %v232
    %v975 = vunpack.c.h.b16 %v232
    %v976 = vunpack.c.l.b16 %v233
    %v977 = vunpack.c.h.b16 %v233
    %v978 = vunpack.c.l.b16 %v234
    %v979 = vunpack.c.h.b16 %v234
    %v980 = vunpack.c.l.b16 %v235
    %v981 = vunpack.c.l.b16 %v236
    %v982 = vunpack.c.h.b16 %v236
    %v983 = vunpack.c.l.b16 %v237
    %v984 = vunpack.c.h.b16 %v237
    %v985 = vunpack.c.l.b16 %v238
    %v986 = vunpack.c.h.b16 %v238
    %v987 = vunpack.c.l.b16 %v239
    %v988 = vunpack.c.h.b16 %v239
    %v989 = vunpack.c.l.b16 %v240
    %v990 = vunpack.c.h.b16 %v240
    %v991 = vunpack.c.l.b16 %v241
    %v992 = vunpack.c.h.b16 %v241
    %v993 = vunpack.c.l.b16 %v242
    %v994 = vunpack.c.h.b16 %v242
    %v995 = vunpack.c.l.b16 %v243
    %v996 = vunpack.c.l.b16 %v244
    %v997 = vunpack.c.h.b16 %v244
    %v998 = vunpack.c.l.b16 %v245
    %v999 = vunpack.c.h.b16 %v245
    %v1000 = vunpack.c.l.b16 %v246
    %v1001 = vunpack.c.h.b16 %v246
    %v1002 = vunpack.c.l.b16 %v247
    %v1003 = vunpack.c.h.b16 %v247
    %v1004 = vunpack.c.l.b16 %v248
    %v1005 = vunpack.c.h.b16 %v248
    %v1006 = vunpack.c.l.b16 %v249
    %v1007 = vunpack.c.h.b16 %v249
    %v1008 = vunpack.c.l.b16 %v250
    %v1009 = vunpack.c.h.b16 %v250
    %v1010 = vunpack.c.l.b16 %v251
    %v1011 = vunpack.c.l.b16 %v252
    %v1012 = vunpack.c.h.b16 %v252
    %v1013 = vunpack.c.l.b16 %v253
    %v1014 = vunpack.c.h.b16 %v253
    %v1015 = vunpack.c.l.b16 %v254
    %v1016 = vunpack.c.h.b16 %v254
    %v1017 = vunpack.c.l.b16 %v255
    %v1018 = vunpack.c.h.b16 %v255
    %v1019 = vunpack.c.l.b16 %v256
    %v1020 = vunpack.c.h.b16 %v256
    %v1021 = vunpack.c.l.b16 %v257
    %v1022 = vunpack.c.h.b16 %v257
    %v1023 = vunpack.c.l.b16 %v258
    %v1024 = vunpack.c.h.b16 %v258
    %v1025 = vunpack.c.l.b16 %v259
    %v1026 = vunpack.c.l.b16 %v260
    %v1027 = vunpack.c.h.b16 %v260
    %v1028 = vunpack.c.l.b16 %v261
    %v1029 = vunpack.c.h.b16 %v261
    %v1030 = vunpack.c.l.b16 %v262
    %v1031 = vunpack.c.h.b16 %v262
    %v1032 = vunpack.c.l.b16 %v263
    %v1033 = vunpack.c.h.b16 %v263
    %v1034 = vunpack.c.l.b16 %v264
    %v1035 = vunpack.c.h.b16 %v264
    %v1036 = vunpack.c.l.b16 %v265
    %v1037 = vunpack.c.h.b16 %v265
    %v1038 = vunpack.c.l.b16 %v266
    %v1039 = vunpack.c.h.b16 %v266
    %v1040 = vunpack.c.l.b16 %v267
    %v1041 = vunpack.c.l.b16 %v268
    %v1042 = vunpack.c.h.b16 %v268
    %v1043 = vunpack.c.l.b16 %v269
    %v1044 = vunpack.c.h.b16 %v269
    %v1045 = vunpack.c.l.b16 %v270
    %v1046 = vunpack.c.h.b16 %v270
    %v1047 = vunpack.c.l.b16 %v271
    %v1048 = vunpack.c.h.b16 %v271
    %v1049 = vunpack.c.l.b16 %v272
    %v1050 = vunpack.c.h.b16 %v272
    %v1051 = vunpack.c.l.b16 %v273
    %v1052 = vunpack.c.h.b16 %v273
    %v1053 = vunpack.c.l.b16 %v274
    %v1054 = vunpack.c.h.b16 %v274
    %v1055 = vunpack.c.l.b16 %v275
    %v1056 = vunpack.c.l.b16 %v276
    %v1057 = vunpack.c.h.b16 %v276
    %v1058 = vunpack.c.l.b16 %v277
    %v1059 = vunpack.c.h.b16 %v277
    %v1060 = vunpack.c.l.b16 %v278
    %v1061 = vunpack.c.h.b16 %v278
    %v1062 = vunpack.c.l.b16 %v279
    %v1063 = vunpack.c.h.b16 %v279
    %v1064 = vunpack.c.l.b16 %v280
    %v1065 = vunpack.c.h.b16 %v280
    %v1066 = vunpack.c.l.b16 %v281
    %v1067 = vunpack.c.h.b16 %v281
    %v1068 = vunpack.c.l.b16 %v282
    %v1069 = vunpack.c.h.b16 %v282
    %v1070 = vunpack.c.l.b16 %v283
    %v1071 = vunpack.c.l.b16 %v284
    %v1072 = vunpack.c.h.b16 %v284
    %v1073 = vunpack.c.l.b16 %v285
    %v1074 = vunpack.c.h.b16 %v285
    %v1075 = vunpack.c.l.b16 %v286
    %v1076 = vunpack.c.h.b16 %v286
    %v1077 = vunpack.c.l.b16 %v287
    %v1078 = vunpack.c.h.b16 %v287
    %v1079 = vunpack.c.l.b16 %v288
    %v1080 = vunpack.c.h.b16 %v288
    %v1081 = vunpack.c.l.b16 %v289
    %v1082 = vunpack.c.h.b16 %v289
    %v1083 = vunpack.c.l.b16 %v290
    %v1084 = vunpack.c.h.b16 %v290
    %v1085 = vunpack.c.l.b16 %v291
    %v1086 = vunpack.c.l.b16 %v292
    %v1087 = vunpack.c.h.b16 %v292
    %v1088 = vunpack.c.l.b16 %v293
    %v1089 = vunpack.c.h.b16 %v293
    %v1090 = vunpack.c.l.b16 %v294
    %v1091 = vunpack.c.h.b16 %v294
    %v1092 = vunpack.c.l.b16 %v295
    %v1093 = vunpack.c.h.b16 %v295
    %v1094 = vunpack.c.l.b16 %v296
    %v1095 = vunpack.c.h.b16 %v296
    %v1096 = vunpack.c.l.b16 %v297
    %v1097 = vunpack.c.h.b16 %v297
    %v1098 = vunpack.c.l.b16 %v298
    %v1099 = vunpack.c.h.b16 %v298
    %v1100 = vunpack.c.l.b16 %v299
    %v1101 = vunpack.c.l.b16 %v300
    %v1102 = vunpack.c.h.b16 %v300
    %v1103 = vunpack.c.l.b16 %v301
    %v1104 = vunpack.c.h.b16 %v301
    %v1105 = vunpack.c.l.b16 %v302
    %v1106 = vunpack.c.h.b16 %v302
    %v1107 = vunpack.c.l.b16 %v303
    %v1108 = vunpack.c.h.b16 %v303
    %v1109 = vunpack.c.l.b16 %v304
    %v1110 = vunpack.c.h.b16 %v304
    %v1111 = vunpack.c.l.b16 %v305
    %v1112 = vunpack.c.h.b16 %v305
    %v1113 = vunpack.c.l.b16 %v306
    %v1114 = vunpack.c.h.b16 %v306
    %v1115 = vunpack.c.l.b16 %v307
    %v1116 = vunpack.c.l.b16 %v308
    %v1117 = vunpack.c.h.b16 %v308
    %v1118 = vunpack.c.l.b16 %v309
    %v1119 = vunpack.c.h.b16 %v309
    %v1120 = vunpack.c.l.b16 %v310
    %v1121 = vunpack.c.h.b16 %v310
    %v1122 = vunpack.c.l.b16 %v311
    %v1123 = vunpack.c.h.b16 %v311
    %v1124 = vunpack.c.l.b16 %v312
    %v1125 = vunpack.c.h.b16 %v312
    %v1126 = vunpack.c.l.b16 %v313
    %v1127 = vunpack.c.h.b16 %v313
    %v1128 = vunpack.c.l.b16 %v314
    %v1129 = vunpack.c.h.b16 %v314
    %v1130 = vunpack.c.l.b16 %v315
    %v1131 = vunpack.c.l.b16 %v316
    %v1132 = vunpack.c.h.b16 %v316
    %v1133 = vunpack.c.l.b16 %v317
    %v1134 = vunpack.c.h.b16 %v317
    %v1135 = vunpack.c.l.b16 %v318
    %v1136 = vunpack.c.h.b16 %v318
    %v1137 = vunpack.c.l.b16 %v319
    %v1138 = vunpack.c.h.b16 %v319
    %v1139 = vunpack.c.l.b16 %v320
    %v1140 = vunpack.c.h.b16 %v320
    %v1141 = vunpack.c.l.b16 %v321
    %v1142 = vunpack.c.h.b16 %v321
    %v1143 = vunpack.c.l.b16 %v322
    %v1144 = vunpack.c.h.b16 %v322
    %v1145 = vunpack.c.l.b16 %v323
    %v1146 = vpack.c.b16 %v681, %v666
    %v1147 = vpack.c.b16 %v682, %v667
    %v1148 = vpack.c.b16 %v683, %v668
    %v1149 = vpack.c.b16 %v684, %v669
    %v1150 = vpack.c.b16 %v685, %v670
    %v1151 = vpack.c.b16 %v686, %v671
    %v1152 = vpack.c.b16 %v687, %v672
    %v1153 = vpack.c.b16 %v688, %v673
    %v1154 = vpack.c.b16 %v689, %v674
    %v1155 = vpack.c.b16 %v690, %v675
    %v1156 = vpack.c.b16 %v691, %v676
    %v1157 = vpack.c.b16 %v692, %v677
    %v1158 = vpack.c.b16 %v693, %v678
    %v1159 = vpack.c.b16 %v694, %v679
    %v1160 = vpack.c.b16 %v695, %v680
    %v1161 = vpack.c.b16 %v711, %v696
    %v1162 = vpack.c.b16 %v712, %v697
    %v1163 = vpack.c.b16 %v713, %v698
    %v1164 = vpack.c.b16 %v714, %v699
    %v1165 = vpack.c.b16 %v715, %v700
    %v1166 = vpack.c.b16 %v716, %v701
    %v1167 = vpack.c.b16 %v717, %v702
    %v1168 = vpack.c.b16 %v718, %v703
    %v1169 = vpack.c.b16 %v719, %v704
    %v1170 = vpack.c.b16 %v720, %v705
    %v1171 = vpack.c.b16 %v721, %v706
    %v1172 = vpack.c.b16 %v722, %v707
    %v1173 = vpack.c.b16 %v723, %v708
    %v1174 = vpack.c.b16 %v724, %v709
    %v1175 = vpack.c.b16 %v725, %v710
    %v1176 = vpack.c.b16 %v741, %v726
    %v1177 = vpack.c.b16 %v742, %v727
    %v1178 = vpack.c.b16 %v743, %v728
    %v1179 = vpack.c.b16 %v744, %v729
    %v1180 = vpack.c.b16 %v745, %v730
    %v1181 = vpack.c.b16 %v746, %v731
    %v1182 = vpack.c.b16 %v747, %v732
    %v1183 = vpack.c.b16 %v748, %v733
    %v1184 = vpack.c.b16 %v749, %v734
    %v1185 = vpack.c.b16 %v750, %v735
    %v1186 = vpack.c.b16 %v751, %v736
    %v1187 = vpack.c.b16 %v752, %v737
    %v1188 = vpack.c.b16 %v753, %v738
    %v1189 = vpack.c.b16 %v754, %v739
    %v1190 = vpack.c.b16 %v755, %v740
    %v1191 = vpack.c.b16 %v771, %v756
    %v1192 = vpack.c.b16 %v772, %v757
    %v1193 = vpack.c.b16 %v773, %v758
    %v1194 = vpack.c.b16 %v774, %v759
    %v1195 = vpack.c.b16 %v775, %v760
    %v1196 = vpack.c.b16 %v776, %v761
    %v1197 = vpack.c.b16 %v777, %v762
    %v1198 = vpack.c.b16 %v778, %v763
    %v1199 = vpack.c.b16 %v779, %v764
    %v1200 = vpack.c.b16 %v780, %v765
    %v1201 = vpack.c.b16 %v781, %v766
    %v1202 = vpack.c.b16 %v782, %v767
    %v1203 = vpack.c.b16 %v783, %v768
    %v1204 = vpack.c.b16 %v784, %v769
    %v1205 = vpack.c.b16 %v785, %v770
    %v1206 = vpack.c.b16 %v801, %v786
    %v1207 = vpack.c.b16 %v802, %v787
    %v1208 = vpack.c.b16 %v803, %v788
    %v1209 = vpack.c.b16 %v804, %v789
    %v1210 = vpack.c.b16 %v805, %v790
    %v1211 = vpack.c.b16 %v806, %v791
    %v1212 = vpack.c.b16 %v807, %v792
    %v1213 = vpack.c.b16 %v808, %v793
    %v1214 = vpack.c.b16 %v809, %v794
    %v1215 = vpack.c.b16 %v810, %v795
    %v1216 = vpack.c.b16 %v811, %v796
    %v1217 = vpack.c.b16 %v812, %v797
    %v1218 = vpack.c.b16 %v813, %v798
    %v1219 = vpack.c.b16 %v814, %v799
    %v1220 = vpack.c.b16 %v815, %v800
    %v1221 = vpack.c.b16 %v831, %v816
    %v1222 = vpack.c.b16 %v832, %v817
    %v1223 = vpack.c.b16 %v833, %v818
    %v1224 = vpack.c.b16 %v834, %v819
    %v1225 = vpack.c.b16 %v835, %v820
    %v1226 = vpack.c.b16 %v836, %v821
    %v1227 = vpack.c.b16 %v837, %v822
    %v1228 = vpack.c.b16 %v838, %v823
    %v1229 = vpack.c.b16 %v839, %v824
    %v1230 = vpack.c.b16 %v840, %v825
    %v1231 = vpack.c.b16 %v841, %v826
    %v1232 = vpack.c.b16 %v842, %v827
    %v1233 = vpack.c.b16 %v843, %v828
    %v1234 = vpack.c.b16 %v844, %v829
    %v1235 = vpack.c.b16 %v845, %v830
    %v1236 = vpack.c.b16 %v861, %v846
    %v1237 = vpack.c.b16 %v862, %v847
    %v1238 = vpack.c.b16 %v863, %v848
    %v1239 = vpack.c.b16 %v864, %v849
    %v1240 = vpack.c.b16 %v865, %v850
    %v1241 = vpack.c.b16 %v866, %v851
    %v1242 = vpack.c.b16 %v867, %v852
    %v1243 = vpack.c.b16 %v868, %v853
    %v1244 = vpack.c.b16 %v869, %v854
    %v1245 = vpack.c.b16 %v870, %v855
    %v1246 = vpack.c.b16 %v871, %v856
    %v1247 = vpack.c.b16 %v872, %v857
    %v1248 = vpack.c.b16 %v873, %v858
    %v1249 = vpack.c.b16 %v874, %v859
    %v1250 = vpack.c.b16 %v875, %v860
    %v1251 = vpack.c.b16 %v891, %v876
    %v1252 = vpack.c.b16 %v892, %v877
    %v1253 = vpack.c.b16 %v893, %v878
    %v1254 = vpack.c.b16 %v894, %v879
    %v1255 = vpack.c.b16 %v895, %v880
    %v1256 = vpack.c.b16 %v896, %v881
    %v1257 = vpack.c.b16 %v897, %v882
    %v1258 = vpack.c.b16 %v898, %v883
    %v1259 = vpack.c.b16 %v899, %v884
    %v1260 = vpack.c.b16 %v900, %v885
    %v1261 = vpack.c.b16 %v901, %v886
    %v1262 = vpack.c.b16 %v902, %v887
    %v1263 = vpack.c.b16 %v903, %v888
    %v1264 = vpack.c.b16 %v904, %v889
    %v1265 = vpack.c.b16 %v905, %v890
    %v1266 = vpack.c.b16 %v921, %v906
    %v1267 = vpack.c.b16 %v922, %v907
    %v1268 = vpack.c.b16 %v923, %v908
    %v1269 = vpack.c.b16 %v924, %v909
    %v1270 = vpack.c.b16 %v925, %v910
    %v1271 = vpack.c.b16 %v926, %v911
    %v1272 = vpack.c.b16 %v927, %v912
    %v1273 = vpack.c.b16 %v928, %v913
    %v1274 = vpack.c.b16 %v929, %v914
    %v1275 = vpack.c.b16 %v930, %v915
    %v1276 = vpack.c.b16 %v931, %v916
    %v1277 = vpack.c.b16 %v932, %v917
    %v1278 = vpack.c.b16 %v933, %v918
    %v1279 = vpack.c.b16 %v934, %v919
    %v1280 = vpack.c.b16 %v935, %v920
    %v1281 = vpack.c.b16 %v951, %v936
    %v1282 = vpack.c.b16 %v952, %v937
    %v1283 = vpack.c.b16 %v953, %v938
    %v1284 = vpack.c.b16 %v954, %v939
    %v1285 = vpack.c.b16 %v955, %v940
    %v1286 = vpack.c.b16 %v956, %v941
    %v1287 = vpack.c.b16 %v957, %v942
    %v1288 = vpack.c.b16 %v958, %v943
    %v1289 = vpack.c.b16 %v959, %v944
    %v1290 = vpack.c.b16 %v960, %v945
    %v1291 = vpack.c.b16 %v961, %v946
    %v1292 = vpack.c.b16 %v962, %v947
    %v1293 = vpack.c.b16 %v963, %v948
    %v1294 = vpack.c.b16 %v964, %v949
    %v1295 = vpack.c.b16 %v965, %v950
    %v1296 = vpack.c.b16 %v981, %v966
    %v1297 = vpack.c.b16 %v982, %v967
    %v1298 = vpack.c.b16 %v983, %v968
    %v1299 = vpack.c.b16 %v984, %v969
    %v1300 = vpack.c.b16 %v985, %v970
    %v1301 = vpack.c.b16 %v986, %v971
    %v1302 = vpack.c.b16 %v987, %v972
    %v1303 = vpack.c.b16 %v988, %v973
    %v1304 = vpack.c.b16 %v989, %v974
    %v1305 = vpack.c.b16 %v990, %v975
    %v1306 = vpack.c.b16 %v991, %v976
    %v1307 = vpack.c.b16 %v992, %v977
    %v1308 = vpack.c.b16 %v993, %v978
    %v1309 = vpack.c.b16 %v994, %v979
    %v1310 = vpack.c.b16 %v995, %v980
    %v1311 = vpack.c.b16 %v1011, %v996
    %v1312 = vpack.c.b16 %v1012, %v997
    %v1313 = vpack.c.b16 %v1013, %v998
    %v1314 = vpack.c.b16 %v1014, %v999
    %v1315 = vpack.c.b16 %v1015, %v1000
    %v1316 = vpack.c.b16 %v1016, %v1001
    %v1317 = vpack.c.b16 %v1017, %v1002
    %v1318 = vpack.c.b16 %v1018, %v1003
    %v1319 = vpack.c.b16 %v1019, %v1004
    %v1320 = vpack.c.b16 %v1020, %v1005
    %v1321 = vpack.c.b16 %v1021, %v1006
    %v1322 = vpack.c.b16 %v1022, %v1007
    %v1323 = vpack.c.b16 %v1023, %v1008
    %v1324 = vpack.c.b16 %v1024, %v1009
    %v1325 = vpack.c.b16 %v1025, %v1010
    %v1326 = vpack.c.b16 %v1041, %v1026
    %v1327 = vpack.c.b16 %v1042, %v1027
    %v1328 = vpack.c.b16 %v1043, %v1028
    %v1329 = vpack.c.b16 %v1044, %v1029
    %v1330 = vpack.c.b16 %v1045, %v1030
    %v1331 = vpack.c.b16 %v1046, %v1031
    %v1332 = vpack.c.b16 %v1047, %v1032
    %v1333 = vpack.c.b16 %v1048, %v1033
    %v1334 = vpack.c.b16 %v1049, %v1034
    %v1335 = vpack.c.b16 %v1050, %v1035
    %v1336 = vpack.c.b16 %v1051, %v1036
    %v1337 = vpack.c.b16 %v1052, %v1037
    %v1338 = vpack.c.b16 %v1053, %v1038
    %v1339 = vpack.c.b16 %v1054, %v1039
    %v1340 = vpack.c.b16 %v1055, %v1040
    %v1341 = vpack.c.b16 %v1071, %v1056
    %v1342 = vpack.c.b16 %v1072, %v1057
    %v1343 = vpack.c.b16 %v1073, %v1058
    %v1344 = vpack.c.b16 %v1074, %v1059
    %v1345 = vpack.c.b16 %v1075, %v1060
    %v1346 = vpack.c.b16 %v1076, %v1061
    %v1347 = vpack.c.b16 %v1077, %v1062
    %v1348 = vpack.c.b16 %v1078, %v1063
    %v1349 = vpack.c.b16 %v1079, %v1064
    %v1350 = vpack.c.b16 %v1080, %v1065
    %v1351 = vpack.c.b16 %v1081, %v1066
    %v1352 = vpack.c.b16 %v1082, %v1067
    %v1353 = vpack.c.b16 %v1083, %v1068
    %v1354 = vpack.c.b16 %v1084, %v1069
    %v1355 = vpack.c.b16 %v1085, %v1070
    %v1356 = vpack.c.b16 %v1101, %v1086
    %v1357 = vpack.c.b16 %v1102, %v1087
    %v1358 = vpack.c.b16 %v1103, %v1088
    %v1359 = vpack.c.b16 %v1104, %v1089
    %v1360 = vpack.c.b16 %v1105, %v1090
    %v1361 = vpack.c.b16 %v1106, %v1091
    %v1362 = vpack.c.b16 %v1107, %v1092
    %v1363 = vpack.c.b16 %v1108, %v1093
    %v1364 = vpack.c.b16 %v1109, %v1094
    %v1365 = vpack.c.b16 %v1110, %v1095
    %v1366 = vpack.c.b16 %v1111, %v1096
    %v1367 = vpack.c.b16 %v1112, %v1097
    %v1368 = vpack.c.b16 %v1113, %v1098
    %v1369 = vpack.c.b16 %v1114, %v1099
    %v1370 = vpack.c.b16 %v1115, %v1100
    %v1371 = vpack.c.b16 %v1131, %v1116
    %v1372 = vpack.c.b16 %v1132, %v1117
    %v1373 = vpack.c.b16 %v1133, %v1118
    %v1374 = vpack.c.b16 %v1134, %v1119
    %v1375 = vpack.c.b16 %v1135, %v1120
    %v1376 = vpack.c.b16 %v1136, %v1121
    %v1377 = vpack.c.b16 %v1137, %v1122
    %v1378 = vpack.c.b16 %v1138, %v1123
    %v1379 = vpack.c.b16 %v1139, %v1124
    %v1380 = vpack.c.b16 %v1140, %v1125
    %v1381 = vpack.c.b16 %v1141, %v1126
    %v1382 = vpack.c.b16 %v1142, %v1127
    %v1383 = vpack.c.b16 %v1143, %v1128
    %v1384 = vpack.c.b16 %v1144, %v1129
    %v1385 = vpack.c.b16 %v1145, %v1130
    %1626 = vmatprep.subr.bf16.mxu0 %v1147
    %1627 = vmatpush1.bf16.msra.mxu0 %v1146
    %1628 = vmatprep.subr.bf16.mxu0 %v1162
    %1629 = vmatpush1.bf16.msra.mxu0 %v1161
    %1630 = vmatprep.subr.bf16.mxu0 %v1177
    %1631 = vmatpush1.bf16.msra.mxu0 %v1176
    %1632 = vmatprep.subr.bf16.mxu0 %v1192
    %1633 = vmatpush1.bf16.msra.mxu0 %v1191
    %1634 = vmatprep.subr.bf16.mxu0 %v1207
    %1635 = vmatpush1.bf16.msra.mxu0 %v1206
    %1636 = vmatprep.subr.bf16.mxu0 %v1222
    %1637 = vmatpush1.bf16.msra.mxu0 %v1221
    %1638 = vmatprep.subr.bf16.mxu0 %v1237
    %1639 = vmatpush1.bf16.msra.mxu0 %v1236
    %1640 = vmatprep.subr.bf16.mxu0 %v1252
    %1641 = vmatpush1.bf16.msra.mxu0 %v1251
    %1642 = vmatprep.subr.bf16.mxu0 %v1267
    %1643 = vmatpush1.bf16.msra.mxu0 %v1266
    %1644 = vmatprep.subr.bf16.mxu0 %v1282
    %1645 = vmatpush1.bf16.msra.mxu0 %v1281
    %1646 = vmatprep.subr.bf16.mxu0 %v1297
    %1647 = vmatpush1.bf16.msra.mxu0 %v1296
    %1648 = vmatprep.subr.bf16.mxu0 %v1312
    %1649 = vmatpush1.bf16.msra.mxu0 %v1311
    %1650 = vmatprep.subr.bf16.mxu0 %v1327
    %1651 = vmatpush1.bf16.msra.mxu0 %v1326
    %1652 = vmatprep.subr.bf16.mxu0 %v1342
    %1653 = vmatpush1.bf16.msra.mxu0 %v1341
    %1654 = vmatprep.subr.bf16.mxu0 %v1357
    %1655 = vmatpush1.bf16.msra.mxu0 %v1356
    %1656 = vmatprep.subr.bf16.mxu0 %v1372
    %1657 = vmatpush1.bf16.msra.mxu0 %v1371
    %1658 = vmatprep.mubr.bf16.mxu0 %v407
    %1659 = vmatmul.mubr.bf16.gmra.mrb[0].mxu0 %v406
    %v1660 = vpop.f32.mrb[0].mxu0
    %v1661 = vadd.f32 %v331, %v1660
    %v1662 = vpop.f32.mrb[0].mxu0
    %v1663 = vadd.f32 %v335, %v1662
    %v1664 = vpop.f32.mrb[0].mxu0
    %v1665 = vpop.f32.mrb[0].mxu0
    %1666 = vdwg.mxu0
    %1667 = vmatprep.subr.bf16.mxu0 %v1149
    %1668 = vmatpush1.bf16.msra.mxu0 %v1148
    %1669 = vmatprep.subr.bf16.mxu0 %v1164
    %1670 = vmatpush1.bf16.msra.mxu0 %v1163
    %1671 = vmatprep.subr.bf16.mxu0 %v1179
    %1672 = vmatpush1.bf16.msra.mxu0 %v1178
    %1673 = vmatprep.subr.bf16.mxu0 %v1194
    %1674 = vmatpush1.bf16.msra.mxu0 %v1193
    %1675 = vmatprep.subr.bf16.mxu0 %v1209
    %1676 = vmatpush1.bf16.msra.mxu0 %v1208
    %1677 = vmatprep.subr.bf16.mxu0 %v1224
    %1678 = vmatpush1.bf16.msra.mxu0 %v1223
    %1679 = vmatprep.subr.bf16.mxu0 %v1239
    %1680 = vmatpush1.bf16.msra.mxu0 %v1238
    %1681 = vmatprep.subr.bf16.mxu0 %v1254
    %1682 = vmatpush1.bf16.msra.mxu0 %v1253
    %1683 = vmatprep.subr.bf16.mxu0 %v1269
    %1684 = vmatpush1.bf16.msra.mxu0 %v1268
    %1685 = vmatprep.subr.bf16.mxu0 %v1284
    %1686 = vmatpush1.bf16.msra.mxu0 %v1283
    %1687 = vmatprep.subr.bf16.mxu0 %v1299
    %1688 = vmatpush1.bf16.msra.mxu0 %v1298
    %1689 = vmatprep.subr.bf16.mxu0 %v1314
    %1690 = vmatpush1.bf16.msra.mxu0 %v1313
    %1691 = vmatprep.subr.bf16.mxu0 %v1329
    %1692 = vmatpush1.bf16.msra.mxu0 %v1328
    %1693 = vmatprep.subr.bf16.mxu0 %v1344
    %1694 = vmatpush1.bf16.msra.mxu0 %v1343
    %1695 = vmatprep.subr.bf16.mxu0 %v1359
    %1696 = vmatpush1.bf16.msra.mxu0 %v1358
    %1697 = vmatprep.subr.bf16.mxu0 %v1374
    %1698 = vmatpush1.bf16.msra.mxu0 %v1373
    %1699 = vmatprep.mubr.bf16.mxu0 %v407
    %1700 = vmatmul.mubr.bf16.gmra.mrb[0].mxu0 %v406
    %v1701 = vpop.f32.mrb[0].mxu0
    %v1702 = vadd.f32 %v339, %v1701
    %v1703 = vpop.f32.mrb[0].mxu0
    %v1704 = vadd.f32 %v343, %v1703
    %v1705 = vpop.f32.mrb[0].mxu0
    %v1706 = vpop.f32.mrb[0].mxu0
    %1707 = vdwg.mxu0
    %1708 = vmatprep.subr.bf16.mxu0 %v1151
    %1709 = vmatpush1.bf16.msra.mxu0 %v1150
    %1710 = vmatprep.subr.bf16.mxu0 %v1166
    %1711 = vmatpush1.bf16.msra.mxu0 %v1165
    %1712 = vmatprep.subr.bf16.mxu0 %v1181
    %1713 = vmatpush1.bf16.msra.mxu0 %v1180
    %1714 = vmatprep.subr.bf16.mxu0 %v1196
    %1715 = vmatpush1.bf16.msra.mxu0 %v1195
    %1716 = vmatprep.subr.bf16.mxu0 %v1211
    %1717 = vmatpush1.bf16.msra.mxu0 %v1210
    %1718 = vmatprep.subr.bf16.mxu0 %v1226
    %1719 = vmatpush1.bf16.msra.mxu0 %v1225
    %1720 = vmatprep.subr.bf16.mxu0 %v1241
    %1721 = vmatpush1.bf16.msra.mxu0 %v1240
    %1722 = vmatprep.subr.bf16.mxu0 %v1256
    %1723 = vmatpush1.bf16.msra.mxu0 %v1255
    %1724 = vmatprep.subr.bf16.mxu0 %v1271
    %1725 = vmatpush1.bf16.msra.mxu0 %v1270
    %1726 = vmatprep.subr.bf16.mxu0 %v1286
    %1727 = vmatpush1.bf16.msra.mxu0 %v1285
    %1728 = vmatprep.subr.bf16.mxu0 %v1301
    %1729 = vmatpush1.bf16.msra.mxu0 %v1300
    %1730 = vmatprep.subr.bf16.mxu0 %v1316
    %1731 = vmatpush1.bf16.msra.mxu0 %v1315
    %1732 = vmatprep.subr.bf16.mxu0 %v1331
    %1733 = vmatpush1.bf16.msra.mxu0 %v1330
    %1734 = vmatprep.subr.bf16.mxu0 %v1346
    %1735 = vmatpush1.bf16.msra.mxu0 %v1345
    %1736 = vmatprep.subr.bf16.mxu0 %v1361
    %1737 = vmatpush1.bf16.msra.mxu0 %v1360
    %1738 = vmatprep.subr.bf16.mxu0 %v1376
    %1739 = vmatpush1.bf16.msra.mxu0 %v1375
    %1740 = vmatprep.mubr.bf16.mxu0 %v407
    %1741 = vmatmul.mubr.bf16.gmra.mrb[0].mxu0 %v406
    %v1742 = vpop.f32.mrb[0].mxu0
    %v1743 = vadd.f32 %v347, %v1742
    %v1744 = vpop.f32.mrb[0].mxu0
    %v1745 = vadd.f32 %v351, %v1744
    %v1746 = vpop.f32.mrb[0].mxu0
    %v1747 = vpop.f32.mrb[0].mxu0
    %1748 = vdwg.mxu0
    %1749 = vmatprep.subr.bf16.mxu0 %v1153
    %1750 = vmatpush1.bf16.msra.mxu0 %v1152
    %1751 = vmatprep.subr.bf16.mxu0 %v1168
    %1752 = vmatpush1.bf16.msra.mxu0 %v1167
    %1753 = vmatprep.subr.bf16.mxu0 %v1183
    %1754 = vmatpush1.bf16.msra.mxu0 %v1182
    %1755 = vmatprep.subr.bf16.mxu0 %v1198
    %1756 = vmatpush1.bf16.msra.mxu0 %v1197
    %1757 = vmatprep.subr.bf16.mxu0 %v1213
    %1758 = vmatpush1.bf16.msra.mxu0 %v1212
    %1759 = vmatprep.subr.bf16.mxu0 %v1228
    %1760 = vmatpush1.bf16.msra.mxu0 %v1227
    %1761 = vmatprep.subr.bf16.mxu0 %v1243
    %1762 = vmatpush1.bf16.msra.mxu0 %v1242
    %1763 = vmatprep.subr.bf16.mxu0 %v1258
    %1764 = vmatpush1.bf16.msra.mxu0 %v1257
    %1765 = vmatprep.subr.bf16.mxu0 %v1273
    %1766 = vmatpush1.bf16.msra.mxu0 %v1272
    %1767 = vmatprep.subr.bf16.mxu0 %v1288
    %1768 = vmatpush1.bf16.msra.mxu0 %v1287
    %1769 = vmatprep.subr.bf16.mxu0 %v1303
    %1770 = vmatpush1.bf16.msra.mxu0 %v1302
    %1771 = vmatprep.subr.bf16.mxu0 %v1318
    %1772 = vmatpush1.bf16.msra.mxu0 %v1317
    %1773 = vmatprep.subr.bf16.mxu0 %v1333
    %1774 = vmatpush1.bf16.msra.mxu0 %v1332
    %1775 = vmatprep.subr.bf16.mxu0 %v1348
    %1776 = vmatpush1.bf16.msra.mxu0 %v1347
    %1777 = vmatprep.subr.bf16.mxu0 %v1363
    %1778 = vmatpush1.bf16.msra.mxu0 %v1362
    %1779 = vmatprep.subr.bf16.mxu0 %v1378
    %1780 = vmatpush1.bf16.msra.mxu0 %v1377
    %1781 = vmatprep.mubr.bf16.mxu0 %v407
    %1782 = vmatmul.mubr.bf16.gmra.mrb[0].mxu0 %v406
    %v1783 = vpop.f32.mrb[0].mxu0
    %v1784 = vadd.f32 %v355, %v1783
    %v1785 = vpop.f32.mrb[0].mxu0
    %v1786 = vadd.f32 %v359, %v1785
    %v1787 = vpop.f32.mrb[0].mxu0
    %v1788 = vpop.f32.mrb[0].mxu0
    %1789 = vdwg.mxu0
    %1790 = vmatprep.subr.bf16.mxu0 %v1155
    %1791 = vmatpush1.bf16.msra.mxu0 %v1154
    %1792 = vmatprep.subr.bf16.mxu0 %v1170
    %1793 = vmatpush1.bf16.msra.mxu0 %v1169
    %1794 = vmatprep.subr.bf16.mxu0 %v1185
    %1795 = vmatpush1.bf16.msra.mxu0 %v1184
    %1796 = vmatprep.subr.bf16.mxu0 %v1200
    %1797 = vmatpush1.bf16.msra.mxu0 %v1199
    %1798 = vmatprep.subr.bf16.mxu0 %v1215
    %1799 = vmatpush1.bf16.msra.mxu0 %v1214
    %1800 = vmatprep.subr.bf16.mxu0 %v1230
    %1801 = vmatpush1.bf16.msra.mxu0 %v1229
    %1802 = vmatprep.subr.bf16.mxu0 %v1245
    %1803 = vmatpush1.bf16.msra.mxu0 %v1244
    %1804 = vmatprep.subr.bf16.mxu0 %v1260
    %1805 = vmatpush1.bf16.msra.mxu0 %v1259
    %1806 = vmatprep.subr.bf16.mxu0 %v1275
    %1807 = vmatpush1.bf16.msra.mxu0 %v1274
    %1808 = vmatprep.subr.bf16.mxu0 %v1290
    %1809 = vmatpush1.bf16.msra.mxu0 %v1289
    %1810 = vmatprep.subr.bf16.mxu0 %v1305
    %1811 = vmatpush1.bf16.msra.mxu0 %v1304
    %1812 = vmatprep.subr.bf16.mxu0 %v1320
    %1813 = vmatpush1.bf16.msra.mxu0 %v1319
    %1814 = vmatprep.subr.bf16.mxu0 %v1335
    %1815 = vmatpush1.bf16.msra.mxu0 %v1334
    %1816 = vmatprep.subr.bf16.mxu0 %v1350
    %1817 = vmatpush1.bf16.msra.mxu0 %v1349
    %1818 = vmatprep.subr.bf16.mxu0 %v1365
    %1819 = vmatpush1.bf16.msra.mxu0 %v1364
    %1820 = vmatprep.subr.bf16.mxu0 %v1380
    %1821 = vmatpush1.bf16.msra.mxu0 %v1379
    %1822 = vmatprep.mubr.bf16.mxu0 %v407
    %1823 = vmatmul.mubr.bf16.gmra.mrb[0].mxu0 %v406
    %v1824 = vpop.f32.mrb[0].mxu0
    %v1825 = vadd.f32 %v363, %v1824
    %v1826 = vpop.f32.mrb[0].mxu0
    %v1827 = vadd.f32 %v367, %v1826
    %v1828 = vpop.f32.mrb[0].mxu0
    %v1829 = vpop.f32.mrb[0].mxu0
    %1830 = vdwg.mxu0
    %1831 = vmatprep.subr.bf16.mxu0 %v1157
    %1832 = vmatpush1.bf16.msra.mxu0 %v1156
    %1833 = vmatprep.subr.bf16.mxu0 %v1172
    %1834 = vmatpush1.bf16.msra.mxu0 %v1171
    %1835 = vmatprep.subr.bf16.mxu0 %v1187
    %1836 = vmatpush1.bf16.msra.mxu0 %v1186
    %1837 = vmatprep.subr.bf16.mxu0 %v1202
    %1838 = vmatpush1.bf16.msra.mxu0 %v1201
    %1839 = vmatprep.subr.bf16.mxu0 %v1217
    %1840 = vmatpush1.bf16.msra.mxu0 %v1216
    %1841 = vmatprep.subr.bf16.mxu0 %v1232
    %1842 = vmatpush1.bf16.msra.mxu0 %v1231
    %1843 = vmatprep.subr.bf16.mxu0 %v1247
    %1844 = vmatpush1.bf16.msra.mxu0 %v1246
    %1845 = vmatprep.subr.bf16.mxu0 %v1262
    %1846 = vmatpush1.bf16.msra.mxu0 %v1261
    %1847 = vmatprep.subr.bf16.mxu0 %v1277
    %1848 = vmatpush1.bf16.msra.mxu0 %v1276
    %1849 = vmatprep.subr.bf16.mxu0 %v1292
    %1850 = vmatpush1.bf16.msra.mxu0 %v1291
    %1851 = vmatprep.subr.bf16.mxu0 %v1307
    %1852 = vmatpush1.bf16.msra.mxu0 %v1306
    %1853 = vmatprep.subr.bf16.mxu0 %v1322
    %1854 = vmatpush1.bf16.msra.mxu0 %v1321
    %1855 = vmatprep.subr.bf16.mxu0 %v1337
    %1856 = vmatpush1.bf16.msra.mxu0 %v1336
    %1857 = vmatprep.subr.bf16.mxu0 %v1352
    %1858 = vmatpush1.bf16.msra.mxu0 %v1351
    %1859 = vmatprep.subr.bf16.mxu0 %v1367
    %1860 = vmatpush1.bf16.msra.mxu0 %v1366
    %1861 = vmatprep.subr.bf16.mxu0 %v1382
    %1862 = vmatpush1.bf16.msra.mxu0 %v1381
    %1863 = vmatprep.mubr.bf16.mxu0 %v407
    %1864 = vmatmul.mubr.bf16.gmra.mrb[0].mxu0 %v406
    %v1865 = vpop.f32.mrb[0].mxu0
    %v1866 = vadd.f32 %v371, %v1865
    %v1867 = vpop.f32.mrb[0].mxu0
    %v1868 = vadd.f32 %v375, %v1867
    %v1869 = vpop.f32.mrb[0].mxu0
    %v1870 = vpop.f32.mrb[0].mxu0
    %1871 = vdwg.mxu0
    %1872 = vmatprep.subr.bf16.mxu0 %v1159
    %1873 = vmatpush1.bf16.msra.mxu0 %v1158
    %1874 = vmatprep.subr.bf16.mxu0 %v1174
    %1875 = vmatpush1.bf16.msra.mxu0 %v1173
    %1876 = vmatprep.subr.bf16.mxu0 %v1189
    %1877 = vmatpush1.bf16.msra.mxu0 %v1188
    %1878 = vmatprep.subr.bf16.mxu0 %v1204
    %1879 = vmatpush1.bf16.msra.mxu0 %v1203
    %1880 = vmatprep.subr.bf16.mxu0 %v1219
    %1881 = vmatpush1.bf16.msra.mxu0 %v1218
    %1882 = vmatprep.subr.bf16.mxu0 %v1234
    %1883 = vmatpush1.bf16.msra.mxu0 %v1233
    %1884 = vmatprep.subr.bf16.mxu0 %v1249
    %1885 = vmatpush1.bf16.msra.mxu0 %v1248
    %1886 = vmatprep.subr.bf16.mxu0 %v1264
    %1887 = vmatpush1.bf16.msra.mxu0 %v1263
    %1888 = vmatprep.subr.bf16.mxu0 %v1279
    %1889 = vmatpush1.bf16.msra.mxu0 %v1278
    %1890 = vmatprep.subr.bf16.mxu0 %v1294
    %1891 = vmatpush1.bf16.msra.mxu0 %v1293
    %1892 = vmatprep.subr.bf16.mxu0 %v1309
    %1893 = vmatpush1.bf16.msra.mxu0 %v1308
    %1894 = vmatprep.subr.bf16.mxu0 %v1324
    %1895 = vmatpush1.bf16.msra.mxu0 %v1323
    %1896 = vmatprep.subr.bf16.mxu0 %v1339
    %1897 = vmatpush1.bf16.msra.mxu0 %v1338
    %1898 = vmatprep.subr.bf16.mxu0 %v1354
    %1899 = vmatpush1.bf16.msra.mxu0 %v1353
    %1900 = vmatprep.subr.bf16.mxu0 %v1369
    %1901 = vmatpush1.bf16.msra.mxu0 %v1368
    %1902 = vmatprep.subr.bf16.mxu0 %v1384
    %1903 = vmatpush1.bf16.msra.mxu0 %v1383
    %1904 = vmatprep.mubr.bf16.mxu0 %v407
    %1905 = vmatmul.mubr.bf16.gmra.mrb[0].mxu0 %v406
    %v1906 = vpop.f32.mrb[0].mxu0
    %v1907 = vadd.f32 %v379, %v1906
    %v1908 = vpop.f32.mrb[0].mxu0
    %v1909 = vadd.f32 %v383, %v1908
    %v1910 = vpop.f32.mrb[0].mxu0
    %v1911 = vpop.f32.mrb[0].mxu0
    %1912 = vdwg.mxu0
    %1913 = vmatprep.subr.bf16.mxu0 0
    %1914 = vmatpush1.bf16.msra.mxu0 %v1160
    %1915 = vmatprep.subr.bf16.mxu0 0
    %1916 = vmatpush1.bf16.msra.mxu0 %v1175
    %1917 = vmatprep.subr.bf16.mxu0 0
    %1918 = vmatpush1.bf16.msra.mxu0 %v1190
    %1919 = vmatprep.subr.bf16.mxu0 0
    %1920 = vmatpush1.bf16.msra.mxu0 %v1205
    %1921 = vmatprep.subr.bf16.mxu0 0
    %1922 = vmatpush1.bf16.msra.mxu0 %v1220
    %1923 = vmatprep.subr.bf16.mxu0 0
    %1924 = vmatpush1.bf16.msra.mxu0 %v1235
    %1925 = vmatprep.subr.bf16.mxu0 0
    %1926 = vmatpush1.bf16.msra.mxu0 %v1250
    %1927 = vmatprep.subr.bf16.mxu0 0
    %1928 = vmatpush1.bf16.msra.mxu0 %v1265
    %1929 = vmatprep.subr.bf16.mxu0 0
    %1930 = vmatpush1.bf16.msra.mxu0 %v1280
    %1931 = vmatprep.subr.bf16.mxu0 0
    %1932 = vmatpush1.bf16.msra.mxu0 %v1295
    %1933 = vmatprep.subr.bf16.mxu0 0
    %1934 = vmatpush1.bf16.msra.mxu0 %v1310
    %1935 = vmatprep.subr.bf16.mxu0 0
    %1936 = vmatpush1.bf16.msra.mxu0 %v1325
    %1937 = vmatprep.subr.bf16.mxu0 0
    %1938 = vmatpush1.bf16.msra.mxu0 %v1340
    %1939 = vmatprep.subr.bf16.mxu0 0
    %1940 = vmatpush1.bf16.msra.mxu0 %v1355
    %1941 = vmatprep.subr.bf16.mxu0 0
    %1942 = vmatpush1.bf16.msra.mxu0 %v1370
    %1943 = vmatprep.subr.bf16.mxu0 0
    %1944 = vmatpush1.bf16.msra.mxu0 %v1385
    %1945 = vmatprep.mubr.bf16.mxu0 %v407
    %1946 = vmatmul.mubr.bf16.gmra.mrb[0].mxu0 %v406
    %v1947 = vpop.f32.mrb[0].mxu0
    %v1948 = vadd.f32 %v387, %v1947
    %v1949 = vpop.f32.mrb[0].mxu0
    %v1950 = vpop.f32.mrb[0].mxu0
    %v1951 = vpop.f32.mrb[0].mxu0
    %1952 = vdwg.mxu0
    %v1953 = vmax.f32 %v1661, 0.0
    %v1954 = vmax.f32 %v1663, 0.0
    %v1955 = vmax.f32 %v1702, 0.0
    %v1956 = vmax.f32 %v1704, 0.0
    %v1957 = vmax.f32 %v1743, 0.0
    %v1958 = vmax.f32 %v1745, 0.0
    %v1959 = vmax.f32 %v1784, 0.0
    %v1960 = vmax.f32 %v1786, 0.0
    %v1961 = vmax.f32 %v1825, 0.0
    %v1962 = vmax.f32 %v1827, 0.0
    %v1963 = vmax.f32 %v1866, 0.0
    %v1964 = vmax.f32 %v1868, 0.0
    %v1965 = vmax.f32 %v1907, 0.0
    %v1966 = vmax.f32 %v1909, 0.0
    %v1967 = vmax.f32 %v1948, 0.0
    %v1968 = vpack.c.bf16 %v1953, %v1953
    %v1969 = vpack.c.bf16 %v1954, %v1954
    %v1970 = vpack.c.bf16 %v1955, %v1955
    %v1971 = vpack.c.bf16 %v1956, %v1956
    %v1972 = vpack.c.bf16 %v1957, %v1957
    %v1973 = vpack.c.bf16 %v1958, %v1958
    %v1974 = vpack.c.bf16 %v1959, %v1959
    %v1975 = vpack.c.bf16 %v1960, %v1960
    %v1976 = vpack.c.bf16 %v1961, %v1961
    %v1977 = vpack.c.bf16 %v1962, %v1962
    %v1978 = vpack.c.bf16 %v1963, %v1963
    %v1979 = vpack.c.bf16 %v1964, %v1964
    %v1980 = vpack.c.bf16 %v1965, %v1965
    %v1981 = vpack.c.bf16 %v1966, %v1966
    %v1982 = vpack.c.bf16 %v1967, %v1967
    %v1983 = vld [vmem:[%s3] sm:$0xf]
    %v1984 = vld [vmem:[%s3 + $0x4] sm:$0xf]
    %v1985 = vld [vmem:[%s3 + $0x8] sm:$0xf]
    %v1986 = vld [vmem:[%s3 + $0xc] sm:$0xf]
    %v1987 = vld [vmem:[%s3 + $0x10] sm:$0xf]
    %v1988 = vld [vmem:[%s3 + $0x14] sm:$0xf]
    %v1989 = vld [vmem:[%s3 + $0x18] sm:$0xf]
    %v1990 = vld [vmem:[%s3 + $0x1c] sm:$0xf]
    %v1991 = vld [vmem:[%s3 + $0x20] sm:$0xf]
    %v1992 = vld [vmem:[%s3 + $0x24] sm:$0xf]
    %v1993 = vld [vmem:[%s3 + $0x28] sm:$0xf]
    %v1994 = vld [vmem:[%s3 + $0x2c] sm:$0xf]
    %v1995 = vld [vmem:[%s3 + $0x30] sm:$0xf]
    %v1996 = vld [vmem:[%s3 + $0x34] sm:$0xf]
    %v1997 = vld [vmem:[%s3 + $0x38] sm:$0xf]
    %v1998 = vld [vmem:[%s3 + $0x3c] sm:$0xf]
    %v1999 = vld [vmem:[%s3 + $0x40] sm:$0xf]
    %v2000 = vld [vmem:[%s3 + $0x44] sm:$0xf]
    %v2001 = vld [vmem:[%s3 + $0x48] sm:$0xf]
    %v2002 = vld [vmem:[%s3 + $0x4c] sm:$0xf]
    %v2003 = vld [vmem:[%s3 + $0x50] sm:$0xf]
    %v2004 = vld [vmem:[%s3 + $0x54] sm:$0xf]
    %v2005 = vld [vmem:[%s3 + $0x58] sm:$0xf]
    %v2006 = vld [vmem:[%s3 + $0x5c] sm:$0xf]
    %v2007 = vld [vmem:[%s3 + $0x60] sm:$0xf]
    %v2008 = vld [vmem:[%s3 + $0x64] sm:$0xf]
    %v2009 = vld [vmem:[%s3 + $0x68] sm:$0xf]
    %v2010 = vld [vmem:[%s3 + $0x6c] sm:$0xf]
    %v2011 = vld [vmem:[%s3 + $0x70] sm:$0xf]
    %v2012 = vld [vmem:[%s3 + $0x74] sm:$0xf]
    %v2013 = vld [vmem:[%s4] sm:$0x1]
    %v2015 = vlaneseq
    %v2016 = vshrl.u32 %v2015, 7
    %v2017 = vsub.s32 0, %v2016
    %v2018 = vrot.slane %v2013, %v2017
    %v2050 = vunpack.c.l.b16 %v1983
    %v2051 = vunpack.c.l.b16 %v1984
    %v2052 = vunpack.c.l.b16 %v1985
    %v2053 = vunpack.c.l.b16 %v1986
    %v2054 = vunpack.c.l.b16 %v1987
    %v2055 = vunpack.c.l.b16 %v1988
    %v2056 = vunpack.c.l.b16 %v1989
    %v2057 = vunpack.c.l.b16 %v1990
    %v2058 = vunpack.c.l.b16 %v1991
    %v2059 = vunpack.c.l.b16 %v1992
    %v2060 = vunpack.c.l.b16 %v1993
    %v2061 = vunpack.c.l.b16 %v1994
    %v2062 = vunpack.c.l.b16 %v1995
    %v2063 = vunpack.c.l.b16 %v1996
    %v2064 = vunpack.c.l.b16 %v1997
    %v2065 = vunpack.c.l.b16 %v1998
    %v2066 = vunpack.c.l.b16 %v1999
    %v2067 = vunpack.c.l.b16 %v2000
    %v2068 = vunpack.c.l.b16 %v2001
    %v2069 = vunpack.c.l.b16 %v2002
    %v2070 = vunpack.c.l.b16 %v2003
    %v2071 = vunpack.c.l.b16 %v2004
    %v2072 = vunpack.c.l.b16 %v2005
    %v2073 = vunpack.c.l.b16 %v2006
    %v2074 = vunpack.c.l.b16 %v2007
    %v2075 = vunpack.c.l.b16 %v2008
    %v2076 = vunpack.c.l.b16 %v2009
    %v2077 = vunpack.c.l.b16 %v2010
    %v2078 = vunpack.c.l.b16 %v2011
    %v2079 = vunpack.c.l.b16 %v2012
    %v2080 = vpack.c.b16 %v2051, %v2050
    %v2081 = vpack.c.b16 %v2053, %v2052
    %v2082 = vpack.c.b16 %v2055, %v2054
    %v2083 = vpack.c.b16 %v2057, %v2056
    %v2084 = vpack.c.b16 %v2059, %v2058
    %v2085 = vpack.c.b16 %v2061, %v2060
    %v2086 = vpack.c.b16 %v2063, %v2062
    %v2087 = vpack.c.b16 %v2065, %v2064
    %v2088 = vpack.c.b16 %v2067, %v2066
    %v2089 = vpack.c.b16 %v2069, %v2068
    %v2090 = vpack.c.b16 %v2071, %v2070
    %v2091 = vpack.c.b16 %v2073, %v2072
    %v2092 = vpack.c.b16 %v2075, %v2074
    %v2093 = vpack.c.b16 %v2077, %v2076
    %v2094 = vpack.c.b16 %v2079, %v2078
    %vm2110 = vcmask 916480
    %v2112 = vsel %vm2110, %v1969, 0
    %2114 = vmatprep.subr.bf16.mxu0 0
    %2115 = vmatpush1.bf16.msra.mxu0 %v2080
    %2116 = vmatprep.subr.bf16.mxu0 0
    %2117 = vmatpush1.bf16.msra.mxu0 %v2081
    %2118 = vmatprep.subr.bf16.mxu0 0
    %2119 = vmatpush1.bf16.msra.mxu0 %v2082
    %2120 = vmatprep.subr.bf16.mxu0 0
    %2121 = vmatpush1.bf16.msra.mxu0 %v2083
    %2122 = vmatprep.subr.bf16.mxu0 0
    %2123 = vmatpush1.bf16.msra.mxu0 %v2084
    %2124 = vmatprep.subr.bf16.mxu0 0
    %2125 = vmatpush1.bf16.msra.mxu0 %v2085
    %2126 = vmatprep.subr.bf16.mxu0 0
    %2127 = vmatpush1.bf16.msra.mxu0 %v2086
    %2128 = vmatprep.subr.bf16.mxu0 0
    %2129 = vmatpush1.bf16.msra.mxu0 %v2087
    %2130 = vmatprep.subr.bf16.mxu0 0
    %2131 = vmatpush1.bf16.msra.mxu0 %v2088
    %2132 = vmatprep.subr.bf16.mxu0 0
    %2133 = vmatpush1.bf16.msra.mxu0 %v2089
    %2134 = vmatprep.subr.bf16.mxu0 0
    %2135 = vmatpush1.bf16.msra.mxu0 %v2090
    %2136 = vmatprep.subr.bf16.mxu0 0
    %2137 = vmatpush1.bf16.msra.mxu0 %v2091
    %2138 = vmatprep.subr.bf16.mxu0 0
    %2139 = vmatpush1.bf16.msra.mxu0 %v2092
    %2140 = vmatprep.subr.bf16.mxu0 0
    %2141 = vmatpush1.bf16.msra.mxu0 %v2093
    %2142 = vmatprep.subr.bf16.mxu0 0
    %2143 = vmatpush1.bf16.msra.mxu0 %v2094
    %2144 = vmatprep.subr.bf16.mxu0 0
    %2145 = vmatpush1.bf16.msra.mxu0 0
    %2146 = vmatprep.mubr.bf16.mxu0 %v2112
    %2147 = vmatmul.mubr.bf16.gmra.mrb[0].mxu0 %v1968
    %v2148 = vpop.f32.mrb[0].mxu0
    %v2149 = vadd.f32 %v2018, %v2148
    %v2150 = vpop.f32.mrb[0].mxu0
    %v2151 = vpop.f32.mrb[0].mxu0
    %v2152 = vpop.f32.mrb[0].mxu0
    %2153 = vdwg.mxu0
    %v2154 = vmax.f32 %v2149, 0.0
    %v2155 = vpack.c.bf16 %v2154, %v2154
    %v2156 = vld [vmem:[#allocation4] sm:$0xff]
    %v2157 = vld [vmem:[#allocation4 + $0x8] sm:$0xff]
    %v2158 = vld [vmem:[#allocation4 + $0x10] sm:$0xff]
    %v2159 = vld [vmem:[#allocation4 + $0x18] sm:$0xff]
    %v2160 = vld [vmem:[#allocation4 + $0x20] sm:$0xff]
    %v2161 = vld [vmem:[#allocation4 + $0x28] sm:$0xff]
    %2165 = vrot.lane.b32.xlu0 %v1969, 106
    %v2166 = vpop.permute.xlu0 %2165
    %2167 = vrot.lane.b32.xlu0 %v1970, 106
    %v2168 = vpop.permute.xlu0 %2167
    %2169 = vrot.lane.b32.xlu0 %v1971, 106
    %v2170 = vpop.permute.xlu0 %2169
    %vm2171 = vcmask 867328
    %v2172 = vsel %vm2171, %v2166, %v2168
    %v2173 = vsel %vm2171, %v2168, %v2170
    %v2176 = vsel %vm2110, %v2173, 0
    %2178 = vmatprep.subr.bf16.mxu0 0
    %2179 = vmatpush1.bf16.msra.mxu0 %v2080
    %2180 = vmatprep.subr.bf16.mxu0 0
    %2181 = vmatpush1.bf16.msra.mxu0 %v2081
    %2182 = vmatprep.subr.bf16.mxu0 0
    %2183 = vmatpush1.bf16.msra.mxu0 %v2082
    %2184 = vmatprep.subr.bf16.mxu0 0
    %2185 = vmatpush1.bf16.msra.mxu0 %v2083
    %2186 = vmatprep.subr.bf16.mxu0 0
    %2187 = vmatpush1.bf16.msra.mxu0 %v2084
    %2188 = vmatprep.subr.bf16.mxu0 0
    %2189 = vmatpush1.bf16.msra.mxu0 %v2085
    %2190 = vmatprep.subr.bf16.mxu0 0
    %2191 = vmatpush1.bf16.msra.mxu0 %v2086
    %2192 = vmatprep.subr.bf16.mxu0 0
    %2193 = vmatpush1.bf16.msra.mxu0 %v2087
    %2194 = vmatprep.subr.bf16.mxu0 0
    %2195 = vmatpush1.bf16.msra.mxu0 %v2088
    %2196 = vmatprep.subr.bf16.mxu0 0
    %2197 = vmatpush1.bf16.msra.mxu0 %v2089
    %2198 = vmatprep.subr.bf16.mxu0 0
    %2199 = vmatpush1.bf16.msra.mxu0 %v2090
    %2200 = vmatprep.subr.bf16.mxu0 0
    %2201 = vmatpush1.bf16.msra.mxu0 %v2091
    %2202 = vmatprep.subr.bf16.mxu0 0
    %2203 = vmatpush1.bf16.msra.mxu0 %v2092
    %2204 = vmatprep.subr.bf16.mxu0 0
    %2205 = vmatpush1.bf16.msra.mxu0 %v2093
    %2206 = vmatprep.subr.bf16.mxu0 0
    %2207 = vmatpush1.bf16.msra.mxu0 %v2094
    %2208 = vmatprep.subr.bf16.mxu0 0
    %2209 = vmatpush1.bf16.msra.mxu0 0
    %2210 = vmatprep.mubr.bf16.mxu0 %v2176
    %2211 = vmatmul.mubr.bf16.gmra.mrb[0].mxu0 %v2172
    %v2212 = vpop.f32.mrb[0].mxu0
    %v2213 = vadd.f32 %v2018, %v2212
    %v2214 = vpop.f32.mrb[0].mxu0
    %v2215 = vpop.f32.mrb[0].mxu0
    %v2216 = vpop.f32.mrb[0].mxu0
    %2217 = vdwg.mxu0
    %v2218 = vmax.f32 %v2213, 0.0
    %v2219 = vpack.c.bf16 %v2218, %v2218
    %v2220 = vld [vmem:[#allocation4 + $0x30] sm:$0xff]
    %v2221 = vld [vmem:[#allocation4 + $0x38] sm:$0xff]
    %v2222 = vld [vmem:[#allocation4 + $0x40] sm:$0xff]
    %v2223 = vld [vmem:[#allocation4 + $0x48] sm:$0xff]
    %v2224 = vld [vmem:[#allocation4 + $0x50] sm:$0xff]
    %v2225 = vld [vmem:[#allocation4 + $0x58] sm:$0xff]
    %v2232 = vunpack.c.l.b16 %v2220
    %v2233 = vunpack.c.h.b16 %v2220
    %v2234 = vunpack.c.l.b16 %v2221
    %v2235 = vunpack.c.h.b16 %v2221
    %v2236 = vunpack.c.l.b16 %v2222
    %v2237 = vunpack.c.h.b16 %v2222
    %v2238 = vunpack.c.l.b16 %v2223
    %v2239 = vunpack.c.h.b16 %v2223
    %v2240 = vunpack.c.l.b16 %v2224
    %v2241 = vunpack.c.h.b16 %v2224
    %v2242 = vunpack.c.l.b16 %v2225
    %v2243 = vunpack.c.h.b16 %v2225
    %v2244 = vpack.c.b16 %v2234, %v2232
    %v2245 = vpack.c.b16 %v2235, %v2233
    %v2246 = vpack.c.b16 %v2238, %v2236
    %v2247 = vpack.c.b16 %v2239, %v2237
    %v2248 = vpack.c.b16 %v2242, %v2240
    %v2249 = vpack.c.b16 %v2243, %v2241
    %vm2256 = vcmask 392192
    %v2258 = vsel %vm2256, %v2219, 0
    %2260 = vmatprep.subr.bf16.mxu0 %v2245
    %2261 = vmatpush1.bf16.msra.mxu0 %v2244
    %2262 = vmatprep.subr.bf16.mxu0 %v2247
    %2263 = vmatpush1.bf16.msra.mxu0 %v2246
    %2264 = vmatprep.subr.bf16.mxu0 %v2249
    %2265 = vmatpush1.bf16.msra.mxu0 %v2248
    %2266 = vmatprep.subr.bf16.mxu0 0
    %2267 = vmatpush1.bf16.msra.mxu0 0
    %2268 = vmatprep.subr.bf16.mxu0 0
    %2269 = vmatpush1.bf16.msra.mxu0 0
    %2270 = vmatprep.subr.bf16.mxu0 0
    %2271 = vmatpush1.bf16.msra.mxu0 0
    %2272 = vmatprep.subr.bf16.mxu0 0
    %2273 = vmatpush1.bf16.msra.mxu0 0
    %2274 = vmatprep.subr.bf16.mxu0 0
    %2275 = vmatpush1.bf16.msra.mxu0 0
    %2276 = vmatprep.subr.bf16.mxu0 0
    %2277 = vmatpush1.bf16.msra.mxu0 0
    %2278 = vmatprep.subr.bf16.mxu0 0
    %2279 = vmatpush1.bf16.msra.mxu0 0
    %2280 = vmatprep.subr.bf16.mxu0 0
    %2281 = vmatpush1.bf16.msra.mxu0 0
    %2282 = vmatprep.subr.bf16.mxu0 0
    %2283 = vmatpush1.bf16.msra.mxu0 0
    %2284 = vmatprep.subr.bf16.mxu0 0
    %2285 = vmatpush1.bf16.msra.mxu0 0
    %2286 = vmatprep.subr.bf16.mxu0 0
    %2287 = vmatpush1.bf16.msra.mxu0 0
    %2288 = vmatprep.subr.bf16.mxu0 0
    %2289 = vmatpush1.bf16.msra.mxu0 0
    %2290 = vmatprep.subr.bf16.mxu0 0
    %2291 = vmatpush1.bf16.msra.mxu0 0
    %2292 = vmatprep.mubr.bf16.mxu0 0
    %2293 = vmatmul.mubr.bf16.gmra.mrb[0].mxu0 %v2258
    %v2294 = vpop.f32.mrb[0].mxu0
    %v2295 = vadd.f32 0.0, %v2294
    %v2296 = vpop.f32.mrb[0].mxu0
    %v2297 = vadd.f32 0.0, %v2296
    %v2298 = vpop.f32.mrb[0].mxu0
    %v2299 = vpop.f32.mrb[0].mxu0
    %2300 = vdwg.mxu0
    %v2307 = vunpack.c.l.b16 %v2156
    %v2308 = vunpack.c.h.b16 %v2156
    %v2309 = vunpack.c.l.b16 %v2157
    %v2310 = vunpack.c.h.b16 %v2157
    %v2311 = vunpack.c.l.b16 %v2158
    %v2312 = vunpack.c.h.b16 %v2158
    %v2313 = vunpack.c.l.b16 %v2159
    %v2314 = vunpack.c.h.b16 %v2159
    %v2315 = vunpack.c.l.b16 %v2160
    %v2316 = vunpack.c.h.b16 %v2160
    %v2317 = vunpack.c.l.b16 %v2161
    %v2318 = vunpack.c.h.b16 %v2161
    %v2319 = vpack.c.b16 %v2309, %v2307
    %v2320 = vpack.c.b16 %v2310, %v2308
    %v2321 = vpack.c.b16 %v2313, %v2311
    %v2322 = vpack.c.b16 %v2314, %v2312
    %v2323 = vpack.c.b16 %v2317, %v2315
    %v2324 = vpack.c.b16 %v2318, %v2316
    %v2332 = vsel %vm2256, %v2155, 0
    %2334 = vmatprep.subr.bf16.mxu0 %v2320
    %2335 = vmatpush1.bf16.msra.mxu0 %v2319
    %2336 = vmatprep.subr.bf16.mxu0 %v2322
    %2337 = vmatpush1.bf16.msra.mxu0 %v2321
    %2338 = vmatprep.subr.bf16.mxu0 %v2324
    %2339 = vmatpush1.bf16.msra.mxu0 %v2323
    %2340 = vmatprep.subr.bf16.mxu0 0
    %2341 = vmatpush1.bf16.msra.mxu0 0
    %2342 = vmatprep.subr.bf16.mxu0 0
    %2343 = vmatpush1.bf16.msra.mxu0 0
    %2344 = vmatprep.subr.bf16.mxu0 0
    %2345 = vmatpush1.bf16.msra.mxu0 0
    %2346 = vmatprep.subr.bf16.mxu0 0
    %2347 = vmatpush1.bf16.msra.mxu0 0
    %2348 = vmatprep.subr.bf16.mxu0 0
    %2349 = vmatpush1.bf16.msra.mxu0 0
    %2350 = vmatprep.subr.bf16.mxu0 0
    %2351 = vmatpush1.bf16.msra.mxu0 0
    %2352 = vmatprep.subr.bf16.mxu0 0
    %2353 = vmatpush1.bf16.msra.mxu0 0
    %2354 = vmatprep.subr.bf16.mxu0 0
    %2355 = vmatpush1.bf16.msra.mxu0 0
    %2356 = vmatprep.subr.bf16.mxu0 0
    %2357 = vmatpush1.bf16.msra.mxu0 0
    %2358 = vmatprep.subr.bf16.mxu0 0
    %2359 = vmatpush1.bf16.msra.mxu0 0
    %2360 = vmatprep.subr.bf16.mxu0 0
    %2361 = vmatpush1.bf16.msra.mxu0 0
    %2362 = vmatprep.subr.bf16.mxu0 0
    %2363 = vmatpush1.bf16.msra.mxu0 0
    %2364 = vmatprep.subr.bf16.mxu0 0
    %2365 = vmatpush1.bf16.msra.mxu0 0
    %2366 = vmatprep.mubr.bf16.mxu0 0
    %2367 = vmatmul.mubr.bf16.gmra.mrb[0].mxu0 %v2332
    %v2368 = vpop.f32.mrb[0].mxu0
    %v2369 = vadd.f32 %v2295, %v2368
    %v2370 = vpop.f32.mrb[0].mxu0
    %v2371 = vadd.f32 %v2297, %v2370
    %v2372 = vpop.f32.mrb[0].mxu0
    %v2373 = vpop.f32.mrb[0].mxu0
    %2374 = vdwg.mxu0
    %2376 = vrot.lane.b32.xlu0 %v1970, 84
    %v2377 = vpop.permute.xlu0 %2376
    %2378 = vrot.lane.b32.xlu0 %v1971, 84
    %v2379 = vpop.permute.xlu0 %2378
    %2380 = vrot.lane.b32.xlu0 %v1972, 84
    %v2381 = vpop.permute.xlu0 %2380
    %vm2382 = vcmask 687104
    %v2383 = vsel %vm2382, %v2377, %v2379
    %v2384 = vsel %vm2382, %v2379, %v2381
    %v2387 = vsel %vm2110, %v2384, 0
    %2389 = vmatprep.subr.bf16.mxu0 0
    %2390 = vmatpush1.bf16.msra.mxu0 %v2080
    %2391 = vmatprep.subr.bf16.mxu0 0
    %2392 = vmatpush1.bf16.msra.mxu0 %v2081
    %2393 = vmatprep.subr.bf16.mxu0 0
    %2394 = vmatpush1.bf16.msra.mxu0 %v2082
    %2395 = vmatprep.subr.bf16.mxu0 0
    %2396 = vmatpush1.bf16.msra.mxu0 %v2083
    %2397 = vmatprep.subr.bf16.mxu0 0
    %2398 = vmatpush1.bf16.msra.mxu0 %v2084
    %2399 = vmatprep.subr.bf16.mxu0 0
    %2400 = vmatpush1.bf16.msra.mxu0 %v2085
    %2401 = vmatprep.subr.bf16.mxu0 0
    %2402 = vmatpush1.bf16.msra.mxu0 %v2086
    %2403 = vmatprep.subr.bf16.mxu0 0
    %2404 = vmatpush1.bf16.msra.mxu0 %v2087
    %2405 = vmatprep.subr.bf16.mxu0 0
    %2406 = vmatpush1.bf16.msra.mxu0 %v2088
    %2407 = vmatprep.subr.bf16.mxu0 0
    %2408 = vmatpush1.bf16.msra.mxu0 %v2089
    %2409 = vmatprep.subr.bf16.mxu0 0
    %2410 = vmatpush1.bf16.msra.mxu0 %v2090
    %2411 = vmatprep.subr.bf16.mxu0 0
    %2412 = vmatpush1.bf16.msra.mxu0 %v2091
    %2413 = vmatprep.subr.bf16.mxu0 0
    %2414 = vmatpush1.bf16.msra.mxu0 %v2092
    %2415 = vmatprep.subr.bf16.mxu0 0
    %2416 = vmatpush1.bf16.msra.mxu0 %v2093
    %2417 = vmatprep.subr.bf16.mxu0 0
    %2418 = vmatpush1.bf16.msra.mxu0 %v2094
    %2419 = vmatprep.subr.bf16.mxu0 0
    %2420 = vmatpush1.bf16.msra.mxu0 0
    %2421 = vmatprep.mubr.bf16.mxu0 %v2387
    %2422 = vmatmul.mubr.bf16.gmra.mrb[0].mxu0 %v2383
    %v2423 = vpop.f32.mrb[0].mxu0
    %v2424 = vadd.f32 %v2018, %v2423
    %v2425 = vpop.f32.mrb[0].mxu0
    %v2426 = vpop.f32.mrb[0].mxu0
    %v2427 = vpop.f32.mrb[0].mxu0
    %2428 = vdwg.mxu0
    %v2429 = vmax.f32 %v2424, 0.0
    %v2430 = vpack.c.bf16 %v2429, %v2429
    %v2431 = vld [vmem:[#allocation4 + $0x60] sm:$0xff]
    %v2432 = vld [vmem:[#allocation4 + $0x68] sm:$0xff]
    %v2433 = vld [vmem:[#allocation4 + $0x70] sm:$0xff]
    %v2434 = vld [vmem:[#allocation4 + $0x78] sm:$0xff]
    %v2435 = vld [vmem:[#allocation4 + $0x80] sm:$0xff]
    %v2436 = vld [vmem:[#allocation4 + $0x88] sm:$0xff]
    %v2443 = vunpack.c.l.b16 %v2431
    %v2444 = vunpack.c.h.b16 %v2431
    %v2445 = vunpack.c.l.b16 %v2432
    %v2446 = vunpack.c.h.b16 %v2432
    %v2447 = vunpack.c.l.b16 %v2433
    %v2448 = vunpack.c.h.b16 %v2433
    %v2449 = vunpack.c.l.b16 %v2434
    %v2450 = vunpack.c.h.b16 %v2434
    %v2451 = vunpack.c.l.b16 %v2435
    %v2452 = vunpack.c.h.b16 %v2435
    %v2453 = vunpack.c.l.b16 %v2436
    %v2454 = vunpack.c.h.b16 %v2436
    %v2455 = vpack.c.b16 %v2445, %v2443
    %v2456 = vpack.c.b16 %v2446, %v2444
    %v2457 = vpack.c.b16 %v2449, %v2447
    %v2458 = vpack.c.b16 %v2450, %v2448
    %v2459 = vpack.c.b16 %v2453, %v2451
    %v2460 = vpack.c.b16 %v2454, %v2452
    %v2468 = vsel %vm2256, %v2430, 0
    %2470 = vmatprep.subr.bf16.mxu0 %v2456
    %2471 = vmatpush1.bf16.msra.mxu0 %v2455
    %2472 = vmatprep.subr.bf16.mxu0 %v2458
    %2473 = vmatpush1.bf16.msra.mxu0 %v2457
    %2474 = vmatprep.subr.bf16.mxu0 %v2460
    %2475 = vmatpush1.bf16.msra.mxu0 %v2459
    %2476 = vmatprep.subr.bf16.mxu0 0
    %2477 = vmatpush1.bf16.msra.mxu0 0
    %2478 = vmatprep.subr.bf16.mxu0 0
    %2479 = vmatpush1.bf16.msra.mxu0 0
    %2480 = vmatprep.subr.bf16.mxu0 0
    %2481 = vmatpush1.bf16.msra.mxu0 0
    %2482 = vmatprep.subr.bf16.mxu0 0
    %2483 = vmatpush1.bf16.msra.mxu0 0
    %2484 = vmatprep.subr.bf16.mxu0 0
    %2485 = vmatpush1.bf16.msra.mxu0 0
    %2486 = vmatprep.subr.bf16.mxu0 0
    %2487 = vmatpush1.bf16.msra.mxu0 0
    %2488 = vmatprep.subr.bf16.mxu0 0
    %2489 = vmatpush1.bf16.msra.mxu0 0
    %2490 = vmatprep.subr.bf16.mxu0 0
    %2491 = vmatpush1.bf16.msra.mxu0 0
    %2492 = vmatprep.subr.bf16.mxu0 0
    %2493 = vmatpush1.bf16.msra.mxu0 0
    %2494 = vmatprep.subr.bf16.mxu0 0
    %2495 = vmatpush1.bf16.msra.mxu0 0
    %2496 = vmatprep.subr.bf16.mxu0 0
    %2497 = vmatpush1.bf16.msra.mxu0 0
    %2498 = vmatprep.subr.bf16.mxu0 0
    %2499 = vmatpush1.bf16.msra.mxu0 0
    %2500 = vmatprep.subr.bf16.mxu0 0
    %2501 = vmatpush1.bf16.msra.mxu0 0
    %2502 = vmatprep.mubr.bf16.mxu0 0
    %2503 = vmatmul.mubr.bf16.gmra.mrb[0].mxu0 %v2468
    %v2504 = vpop.f32.mrb[0].mxu0
    %v2505 = vadd.f32 0.0, %v2504
    %v2506 = vpop.f32.mrb[0].mxu0
    %v2507 = vadd.f32 0.0, %v2506
    %v2508 = vpop.f32.mrb[0].mxu0
    %v2509 = vpop.f32.mrb[0].mxu0
    %2510 = vdwg.mxu0
    %v2511 = vadd.f32 %v2369, %v2505
    %v2512 = vadd.f32 %v2371, %v2507
    %2514 = vrot.lane.b32.xlu0 %v1971, 62
    %v2515 = vpop.permute.xlu0 %2514
    %2516 = vrot.lane.b32.xlu0 %v1972, 62
    %v2517 = vpop.permute.xlu0 %2516
    %2518 = vrot.lane.b32.xlu0 %v1973, 62
    %v2519 = vpop.permute.xlu0 %2518
    %vm2520 = vcmask 506880
    %v2521 = vsel %vm2520, %v2515, %v2517
    %v2522 = vsel %vm2520, %v2517, %v2519
    %v2525 = vsel %vm2110, %v2522, 0
    %2527 = vmatprep.subr.bf16.mxu0 0
    %2528 = vmatpush1.bf16.msra.mxu0 %v2080
    %2529 = vmatprep.subr.bf16.mxu0 0
    %2530 = vmatpush1.bf16.msra.mxu0 %v2081
    %2531 = vmatprep.subr.bf16.mxu0 0
    %2532 = vmatpush1.bf16.msra.mxu0 %v2082
    %2533 = vmatprep.subr.bf16.mxu0 0
    %2534 = vmatpush1.bf16.msra.mxu0 %v2083
    %2535 = vmatprep.subr.bf16.mxu0 0
    %2536 = vmatpush1.bf16.msra.mxu0 %v2084
    %2537 = vmatprep.subr.bf16.mxu0 0
    %2538 = vmatpush1.bf16.msra.mxu0 %v2085
    %2539 = vmatprep.subr.bf16.mxu0 0
    %2540 = vmatpush1.bf16.msra.mxu0 %v2086
    %2541 = vmatprep.subr.bf16.mxu0 0
    %2542 = vmatpush1.bf16.msra.mxu0 %v2087
    %2543 = vmatprep.subr.bf16.mxu0 0
    %2544 = vmatpush1.bf16.msra.mxu0 %v2088
    %2545 = vmatprep.subr.bf16.mxu0 0
    %2546 = vmatpush1.bf16.msra.mxu0 %v2089
    %2547 = vmatprep.subr.bf16.mxu0 0
    %2548 = vmatpush1.bf16.msra.mxu0 %v2090
    %2549 = vmatprep.subr.bf16.mxu0 0
    %2550 = vmatpush1.bf16.msra.mxu0 %v2091
    %2551 = vmatprep.subr.bf16.mxu0 0
    %2552 = vmatpush1.bf16.msra.mxu0 %v2092
    %2553 = vmatprep.subr.bf16.mxu0 0
    %2554 = vmatpush1.bf16.msra.mxu0 %v2093
    %2555 = vmatprep.subr.bf16.mxu0 0
    %2556 = vmatpush1.bf16.msra.mxu0 %v2094
    %2557 = vmatprep.subr.bf16.mxu0 0
    %2558 = vmatpush1.bf16.msra.mxu0 0
    %2559 = vmatprep.mubr.bf16.mxu0 %v2525
    %2560 = vmatmul.mubr.bf16.gmra.mrb[0].mxu0 %v2521
    %v2561 = vpop.f32.mrb[0].mxu0
    %v2562 = vadd.f32 %v2018, %v2561
    %v2563 = vpop.f32.mrb[0].mxu0
    %v2564 = vpop.f32.mrb[0].mxu0
    %v2565 = vpop.f32.mrb[0].mxu0
    %2566 = vdwg.mxu0
    %v2567 = vmax.f32 %v2562, 0.0
    %v2568 = vpack.c.bf16 %v2567, %v2567
    %v2569 = vld [vmem:[#allocation4 + $0x90] sm:$0xff]
    %v2570 = vld [vmem:[#allocation4 + $0x98] sm:$0xff]
    %v2571 = vld [vmem:[#allocation4 + $0xa0] sm:$0xff]
    %v2572 = vld [vmem:[#allocation4 + $0xa8] sm:$0xff]
    %v2573 = vld [vmem:[#allocation4 + $0xb0] sm:$0xff]
    %v2574 = vld [vmem:[#allocation4 + $0xb8] sm:$0xff]
    %v2581 = vunpack.c.l.b16 %v2569
    %v2582 = vunpack.c.h.b16 %v2569
    %v2583 = vunpack.c.l.b16 %v2570
    %v2584 = vunpack.c.h.b16 %v2570
    %v2585 = vunpack.c.l.b16 %v2571
    %v2586 = vunpack.c.h.b16 %v2571
    %v2587 = vunpack.c.l.b16 %v2572
    %v2588 = vunpack.c.h.b16 %v2572
    %v2589 = vunpack.c.l.b16 %v2573
    %v2590 = vunpack.c.h.b16 %v2573
    %v2591 = vunpack.c.l.b16 %v2574
    %v2592 = vunpack.c.h.b16 %v2574
    %v2593 = vpack.c.b16 %v2583, %v2581
    %v2594 = vpack.c.b16 %v2584, %v2582
    %v2595 = vpack.c.b16 %v2587, %v2585
    %v2596 = vpack.c.b16 %v2588, %v2586
    %v2597 = vpack.c.b16 %v2591, %v2589
    %v2598 = vpack.c.b16 %v2592, %v2590
    %v2606 = vsel %vm2256, %v2568, 0
    %2608 = vmatprep.subr.bf16.mxu0 %v2594
    %2609 = vmatpush1.bf16.msra.mxu0 %v2593
    %2610 = vmatprep.subr.bf16.mxu0 %v2596
    %2611 = vmatpush1.bf16.msra.mxu0 %v2595
    %2612 = vmatprep.subr.bf16.mxu0 %v2598
    %2613 = vmatpush1.bf16.msra.mxu0 %v2597
    %2614 = vmatprep.subr.bf16.mxu0 0
    %2615 = vmatpush1.bf16.msra.mxu0 0
    %2616 = vmatprep.subr.bf16.mxu0 0
    %2617 = vmatpush1.bf16.msra.mxu0 0
    %2618 = vmatprep.subr.bf16.mxu0 0
    %2619 = vmatpush1.bf16.msra.mxu0 0
    %2620 = vmatprep.subr.bf16.mxu0 0
    %2621 = vmatpush1.bf16.msra.mxu0 0
    %2622 = vmatprep.subr.bf16.mxu0 0
    %2623 = vmatpush1.bf16.msra.mxu0 0
    %2624 = vmatprep.subr.bf16.mxu0 0
    %2625 = vmatpush1.bf16.msra.mxu0 0
    %2626 = vmatprep.subr.bf16.mxu0 0
    %2627 = vmatpush1.bf16.msra.mxu0 0
    %2628 = vmatprep.subr.bf16.mxu0 0
    %2629 = vmatpush1.bf16.msra.mxu0 0
    %2630 = vmatprep.subr.bf16.mxu0 0
    %2631 = vmatpush1.bf16.msra.mxu0 0
    %2632 = vmatprep.subr.bf16.mxu0 0
    %2633 = vmatpush1.bf16.msra.mxu0 0
    %2634 = vmatprep.subr.bf16.mxu0 0
    %2635 = vmatpush1.bf16.msra.mxu0 0
    %2636 = vmatprep.subr.bf16.mxu0 0
    %2637 = vmatpush1.bf16.msra.mxu0 0
    %2638 = vmatprep.subr.bf16.mxu0 0
    %2639 = vmatpush1.bf16.msra.mxu0 0
    %2640 = vmatprep.mubr.bf16.mxu0 0
    %2641 = vmatmul.mubr.bf16.gmra.mrb[0].mxu0 %v2606
    %v2642 = vpop.f32.mrb[0].mxu0
    %v2643 = vadd.f32 0.0, %v2642
    %v2644 = vpop.f32.mrb[0].mxu0
    %v2645 = vadd.f32 0.0, %v2644
    %v2646 = vpop.f32.mrb[0].mxu0
    %v2647 = vpop.f32.mrb[0].mxu0
    %2648 = vdwg.mxu0
    %v2649 = vadd.f32 %v2511, %v2643
    %v2650 = vadd.f32 %v2512, %v2645
    %2652 = vrot.lane.b32.xlu0 %v1972, 40
    %v2653 = vpop.permute.xlu0 %2652
    %2654 = vrot.lane.b32.xlu0 %v1973, 40
    %v2655 = vpop.permute.xlu0 %2654
    %2656 = vrot.lane.b32.xlu0 %v1974, 40
    %v2657 = vpop.permute.xlu0 %2656
    %vm2658 = vcmask 326656
    %v2659 = vsel %vm2658, %v2653, %v2655
    %v2660 = vsel %vm2658, %v2655, %v2657
    %v2663 = vsel %vm2110, %v2660, 0
    %2665 = vmatprep.subr.bf16.mxu0 0
    %2666 = vmatpush1.bf16.msra.mxu0 %v2080
    %2667 = vmatprep.subr.bf16.mxu0 0
    %2668 = vmatpush1.bf16.msra.mxu0 %v2081
    %2669 = vmatprep.subr.bf16.mxu0 0
    %2670 = vmatpush1.bf16.msra.mxu0 %v2082
    %2671 = vmatprep.subr.bf16.mxu0 0
    %2672 = vmatpush1.bf16.msra.mxu0 %v2083
    %2673 = vmatprep.subr.bf16.mxu0 0
    %2674 = vmatpush1.bf16.msra.mxu0 %v2084
    %2675 = vmatprep.subr.bf16.mxu0 0
    %2676 = vmatpush1.bf16.msra.mxu0 %v2085
    %2677 = vmatprep.subr.bf16.mxu0 0
    %2678 = vmatpush1.bf16.msra.mxu0 %v2086
    %2679 = vmatprep.subr.bf16.mxu0 0
    %2680 = vmatpush1.bf16.msra.mxu0 %v2087
    %2681 = vmatprep.subr.bf16.mxu0 0
    %2682 = vmatpush1.bf16.msra.mxu0 %v2088
    %2683 = vmatprep.subr.bf16.mxu0 0
    %2684 = vmatpush1.bf16.msra.mxu0 %v2089
    %2685 = vmatprep.subr.bf16.mxu0 0
    %2686 = vmatpush1.bf16.msra.mxu0 %v2090
    %2687 = vmatprep.subr.bf16.mxu0 0
    %2688 = vmatpush1.bf16.msra.mxu0 %v2091
    %2689 = vmatprep.subr.bf16.mxu0 0
    %2690 = vmatpush1.bf16.msra.mxu0 %v2092
    %2691 = vmatprep.subr.bf16.mxu0 0
    %2692 = vmatpush1.bf16.msra.mxu0 %v2093
    %2693 = vmatprep.subr.bf16.mxu0 0
    %2694 = vmatpush1.bf16.msra.mxu0 %v2094
    %2695 = vmatprep.subr.bf16.mxu0 0
    %2696 = vmatpush1.bf16.msra.mxu0 0
    %2697 = vmatprep.mubr.bf16.mxu0 %v2663
    %2698 = vmatmul.mubr.bf16.gmra.mrb[0].mxu0 %v2659
    %v2699 = vpop.f32.mrb[0].mxu0
    %v2700 = vadd.f32 %v2018, %v2699
    %v2701 = vpop.f32.mrb[0].mxu0
    %v2702 = vpop.f32.mrb[0].mxu0
    %v2703 = vpop.f32.mrb[0].mxu0
    %2704 = vdwg.mxu0
    %v2705 = vmax.f32 %v2700, 0.0
    %v2706 = vpack.c.bf16 %v2705, %v2705
    %v2707 = vld [vmem:[#allocation4 + $0xc0] sm:$0xff]
    %v2708 = vld [vmem:[#allocation4 + $0xc8] sm:$0xff]
    %v2709 = vld [vmem:[#allocation4 + $0xd0] sm:$0xff]
    %v2710 = vld [vmem:[#allocation4 + $0xd8] sm:$0xff]
    %v2711 = vld [vmem:[#allocation4 + $0xe0] sm:$0xff]
    %v2712 = vld [vmem:[#allocation4 + $0xe8] sm:$0xff]
    %v2719 = vunpack.c.l.b16 %v2707
    %v2720 = vunpack.c.h.b16 %v2707
    %v2721 = vunpack.c.l.b16 %v2708
    %v2722 = vunpack.c.h.b16 %v2708
    %v2723 = vunpack.c.l.b16 %v2709
    %v2724 = vunpack.c.h.b16 %v2709
    %v2725 = vunpack.c.l.b16 %v2710
    %v2726 = vunpack.c.h.b16 %v2710
    %v2727 = vunpack.c.l.b16 %v2711
    %v2728 = vunpack.c.h.b16 %v2711
    %v2729 = vunpack.c.l.b16 %v2712
    %v2730 = vunpack.c.h.b16 %v2712
    %v2731 = vpack.c.b16 %v2721, %v2719
    %v2732 = vpack.c.b16 %v2722, %v2720
    %v2733 = vpack.c.b16 %v2725, %v2723
    %v2734 = vpack.c.b16 %v2726, %v2724
    %v2735 = vpack.c.b16 %v2729, %v2727
    %v2736 = vpack.c.b16 %v2730, %v2728
    %v2744 = vsel %vm2256, %v2706, 0
    %2746 = vmatprep.subr.bf16.mxu0 %v2732
    %2747 = vmatpush1.bf16.msra.mxu0 %v2731
    %2748 = vmatprep.subr.bf16.mxu0 %v2734
    %2749 = vmatpush1.bf16.msra.mxu0 %v2733
    %2750 = vmatprep.subr.bf16.mxu0 %v2736
    %2751 = vmatpush1.bf16.msra.mxu0 %v2735
    %2752 = vmatprep.subr.bf16.mxu0 0
    %2753 = vmatpush1.bf16.msra.mxu0 0
    %2754 = vmatprep.subr.bf16.mxu0 0
    %2755 = vmatpush1.bf16.msra.mxu0 0
    %2756 = vmatprep.subr.bf16.mxu0 0
    %2757 = vmatpush1.bf16.msra.mxu0 0
    %2758 = vmatprep.subr.bf16.mxu0 0
    %2759 = vmatpush1.bf16.msra.mxu0 0
    %2760 = vmatprep.subr.bf16.mxu0 0
    %2761 = vmatpush1.bf16.msra.mxu0 0
    %2762 = vmatprep.subr.bf16.mxu0 0
    %2763 = vmatpush1.bf16.msra.mxu0 0
    %2764 = vmatprep.subr.bf16.mxu0 0
    %2765 = vmatpush1.bf16.msra.mxu0 0
    %2766 = vmatprep.subr.bf16.mxu0 0
    %2767 = vmatpush1.bf16.msra.mxu0 0
    %2768 = vmatprep.subr.bf16.mxu0 0
    %2769 = vmatpush1.bf16.msra.mxu0 0
    %2770 = vmatprep.subr.bf16.mxu0 0
    %2771 = vmatpush1.bf16.msra.mxu0 0
    %2772 = vmatprep.subr.bf16.mxu0 0
    %2773 = vmatpush1.bf16.msra.mxu0 0
    %2774 = vmatprep.subr.bf16.mxu0 0
    %2775 = vmatpush1.bf16.msra.mxu0 0
    %2776 = vmatprep.subr.bf16.mxu0 0
    %2777 = vmatpush1.bf16.msra.mxu0 0
    %2778 = vmatprep.mubr.bf16.mxu0 0
    %2779 = vmatmul.mubr.bf16.gmra.mrb[0].mxu0 %v2744
    %v2780 = vpop.f32.mrb[0].mxu0
    %v2781 = vadd.f32 0.0, %v2780
    %v2782 = vpop.f32.mrb[0].mxu0
    %v2783 = vadd.f32 0.0, %v2782
    %v2784 = vpop.f32.mrb[0].mxu0
    %v2785 = vpop.f32.mrb[0].mxu0
    %2786 = vdwg.mxu0
    %v2787 = vadd.f32 %v2649, %v2781
    %v2788 = vadd.f32 %v2650, %v2783
    %2790 = vrot.lane.b32.xlu0 %v1973, 18
    %v2791 = vpop.permute.xlu0 %2790
    %2792 = vrot.lane.b32.xlu0 %v1974, 18
    %v2793 = vpop.permute.xlu0 %2792
    %2794 = vrot.lane.b32.xlu0 %v1975, 18
    %v2795 = vpop.permute.xlu0 %2794
    %vm2796 = vcmask 146432
    %v2797 = vsel %vm2796, %v2791, %v2793
    %v2798 = vsel %vm2796, %v2793, %v2795
    %v2801 = vsel %vm2110, %v2798, 0
    %2803 = vmatprep.subr.bf16.mxu0 0
    %2804 = vmatpush1.bf16.msra.mxu0 %v2080
    %2805 = vmatprep.subr.bf16.mxu0 0
    %2806 = vmatpush1.bf16.msra.mxu0 %v2081
    %2807 = vmatprep.subr.bf16.mxu0 0
    %2808 = vmatpush1.bf16.msra.mxu0 %v2082
    %2809 = vmatprep.subr.bf16.mxu0 0
    %2810 = vmatpush1.bf16.msra.mxu0 %v2083
    %2811 = vmatprep.subr.bf16.mxu0 0
    %2812 = vmatpush1.bf16.msra.mxu0 %v2084
    %2813 = vmatprep.subr.bf16.mxu0 0
    %2814 = vmatpush1.bf16.msra.mxu0 %v2085
    %2815 = vmatprep.subr.bf16.mxu0 0
    %2816 = vmatpush1.bf16.msra.mxu0 %v2086
    %2817 = vmatprep.subr.bf16.mxu0 0
    %2818 = vmatpush1.bf16.msra.mxu0 %v2087
    %2819 = vmatprep.subr.bf16.mxu0 0
    %2820 = vmatpush1.bf16.msra.mxu0 %v2088
    %2821 = vmatprep.subr.bf16.mxu0 0
    %2822 = vmatpush1.bf16.msra.mxu0 %v2089
    %2823 = vmatprep.subr.bf16.mxu0 0
    %2824 = vmatpush1.bf16.msra.mxu0 %v2090
    %2825 = vmatprep.subr.bf16.mxu0 0
    %2826 = vmatpush1.bf16.msra.mxu0 %v2091
    %2827 = vmatprep.subr.bf16.mxu0 0
    %2828 = vmatpush1.bf16.msra.mxu0 %v2092
    %2829 = vmatprep.subr.bf16.mxu0 0
    %2830 = vmatpush1.bf16.msra.mxu0 %v2093
    %2831 = vmatprep.subr.bf16.mxu0 0
    %2832 = vmatpush1.bf16.msra.mxu0 %v2094
    %2833 = vmatprep.subr.bf16.mxu0 0
    %2834 = vmatpush1.bf16.msra.mxu0 0
    %2835 = vmatprep.mubr.bf16.mxu0 %v2801
    %2836 = vmatmul.mubr.bf16.gmra.mrb[0].mxu0 %v2797
    %v2837 = vpop.f32.mrb[0].mxu0
    %v2838 = vadd.f32 %v2018, %v2837
    %v2839 = vpop.f32.mrb[0].mxu0
    %v2840 = vpop.f32.mrb[0].mxu0
    %v2841 = vpop.f32.mrb[0].mxu0
    %2842 = vdwg.mxu0
    %v2843 = vmax.f32 %v2838, 0.0
    %v2844 = vpack.c.bf16 %v2843, %v2843
    %v2845 = vld [vmem:[#allocation4 + $0xf0] sm:$0xff]
    %v2846 = vld [vmem:[#allocation4 + $0xf8] sm:$0xff]
    %v2847 = vld [vmem:[#allocation4 + $0x100] sm:$0xff]
    %v2848 = vld [vmem:[#allocation4 + $0x108] sm:$0xff]
    %v2849 = vld [vmem:[#allocation4 + $0x110] sm:$0xff]
    %v2850 = vld [vmem:[#allocation4 + $0x118] sm:$0xff]
    %v2857 = vunpack.c.l.b16 %v2845
    %v2858 = vunpack.c.h.b16 %v2845
    %v2859 = vunpack.c.l.b16 %v2846
    %v2860 = vunpack.c.h.b16 %v2846
    %v2861 = vunpack.c.l.b16 %v2847
    %v2862 = vunpack.c.h.b16 %v2847
    %v2863 = vunpack.c.l.b16 %v2848
    %v2864 = vunpack.c.h.b16 %v2848
    %v2865 = vunpack.c.l.b16 %v2849
    %v2866 = vunpack.c.h.b16 %v2849
    %v2867 = vunpack.c.l.b16 %v2850
    %v2868 = vunpack.c.h.b16 %v2850
    %v2869 = vpack.c.b16 %v2859, %v2857
    %v2870 = vpack.c.b16 %v2860, %v2858
    %v2871 = vpack.c.b16 %v2863, %v2861
    %v2872 = vpack.c.b16 %v2864, %v2862
    %v2873 = vpack.c.b16 %v2867, %v2865
    %v2874 = vpack.c.b16 %v2868, %v2866
    %v2882 = vsel %vm2256, %v2844, 0
    %2884 = vmatprep.subr.bf16.mxu0 %v2870
    %2885 = vmatpush1.bf16.msra.mxu0 %v2869
    %2886 = vmatprep.subr.bf16.mxu0 %v2872
    %2887 = vmatpush1.bf16.msra.mxu0 %v2871
    %2888 = vmatprep.subr.bf16.mxu0 %v2874
    %2889 = vmatpush1.bf16.msra.mxu0 %v2873
    %2890 = vmatprep.subr.bf16.mxu0 0
    %2891 = vmatpush1.bf16.msra.mxu0 0
    %2892 = vmatprep.subr.bf16.mxu0 0
    %2893 = vmatpush1.bf16.msra.mxu0 0
    %2894 = vmatprep.subr.bf16.mxu0 0
    %2895 = vmatpush1.bf16.msra.mxu0 0
    %2896 = vmatprep.subr.bf16.mxu0 0
    %2897 = vmatpush1.bf16.msra.mxu0 0
    %2898 = vmatprep.subr.bf16.mxu0 0
    %2899 = vmatpush1.bf16.msra.mxu0 0
    %2900 = vmatprep.subr.bf16.mxu0 0
    %2901 = vmatpush1.bf16.msra.mxu0 0
    %2902 = vmatprep.subr.bf16.mxu0 0
    %2903 = vmatpush1.bf16.msra.mxu0 0
    %2904 = vmatprep.subr.bf16.mxu0 0
    %2905 = vmatpush1.bf16.msra.mxu0 0
    %2906 = vmatprep.subr.bf16.mxu0 0
    %2907 = vmatpush1.bf16.msra.mxu0 0
    %2908 = vmatprep.subr.bf16.mxu0 0
    %2909 = vmatpush1.bf16.msra.mxu0 0
    %2910 = vmatprep.subr.bf16.mxu0 0
    %2911 = vmatpush1.bf16.msra.mxu0 0
    %2912 = vmatprep.subr.bf16.mxu0 0
    %2913 = vmatpush1.bf16.msra.mxu0 0
    %2914 = vmatprep.subr.bf16.mxu0 0
    %2915 = vmatpush1.bf16.msra.mxu0 0
    %2916 = vmatprep.mubr.bf16.mxu0 0
    %2917 = vmatmul.mubr.bf16.gmra.mrb[0].mxu0 %v2882
    %v2918 = vpop.f32.mrb[0].mxu0
    %v2919 = vadd.f32 0.0, %v2918
    %v2920 = vpop.f32.mrb[0].mxu0
    %v2921 = vadd.f32 0.0, %v2920
    %v2922 = vpop.f32.mrb[0].mxu0
    %v2923 = vpop.f32.mrb[0].mxu0
    %2924 = vdwg.mxu0
    %v2925 = vadd.f32 %v2787, %v2919
    %v2926 = vadd.f32 %v2788, %v2921
    %2928 = vrot.lane.b32.xlu0 %v1975, 124
    %v2929 = vpop.permute.xlu0 %2928
    %2930 = vrot.lane.b32.xlu0 %v1976, 124
    %v2931 = vpop.permute.xlu0 %2930
    %vm2932 = vcmask 1014784
    %v2933 = vsel %vm2932, %v2929, %v2931
    %v2936 = vsel %vm2110, %v2931, 0
    %2938 = vmatprep.subr.bf16.mxu0 0
    %2939 = vmatpush1.bf16.msra.mxu0 %v2080
    %2940 = vmatprep.subr.bf16.mxu0 0
    %2941 = vmatpush1.bf16.msra.mxu0 %v2081
    %2942 = vmatprep.subr.bf16.mxu0 0
    %2943 = vmatpush1.bf16.msra.mxu0 %v2082
    %2944 = vmatprep.subr.bf16.mxu0 0
    %2945 = vmatpush1.bf16.msra.mxu0 %v2083
    %2946 = vmatprep.subr.bf16.mxu0 0
    %2947 = vmatpush1.bf16.msra.mxu0 %v2084
    %2948 = vmatprep.subr.bf16.mxu0 0
    %2949 = vmatpush1.bf16.msra.mxu0 %v2085
    %2950 = vmatprep.subr.bf16.mxu0 0
    %2951 = vmatpush1.bf16.msra.mxu0 %v2086
    %2952 = vmatprep.subr.bf16.mxu0 0
    %2953 = vmatpush1.bf16.msra.mxu0 %v2087
    %2954 = vmatprep.subr.bf16.mxu0 0
    %2955 = vmatpush1.bf16.msra.mxu0 %v2088
    %2956 = vmatprep.subr.bf16.mxu0 0
    %2957 = vmatpush1.bf16.msra.mxu0 %v2089
    %2958 = vmatprep.subr.bf16.mxu0 0
    %2959 = vmatpush1.bf16.msra.mxu0 %v2090
    %2960 = vmatprep.subr.bf16.mxu0 0
    %2961 = vmatpush1.bf16.msra.mxu0 %v2091
    %2962 = vmatprep.subr.bf16.mxu0 0
    %2963 = vmatpush1.bf16.msra.mxu0 %v2092
    %2964 = vmatprep.subr.bf16.mxu0 0
    %2965 = vmatpush1.bf16.msra.mxu0 %v2093
    %2966 = vmatprep.subr.bf16.mxu0 0
    %2967 = vmatpush1.bf16.msra.mxu0 %v2094
    %2968 = vmatprep.subr.bf16.mxu0 0
    %2969 = vmatpush1.bf16.msra.mxu0 0
    %2970 = vmatprep.mubr.bf16.mxu0 %v2936
    %2971 = vmatmul.mubr.bf16.gmra.mrb[0].mxu0 %v2933
    %v2972 = vpop.f32.mrb[0].mxu0
    %v2973 = vadd.f32 %v2018, %v2972
    %v2974 = vpop.f32.mrb[0].mxu0
    %v2975 = vpop.f32.mrb[0].mxu0
    %v2976 = vpop.f32.mrb[0].mxu0
    %2977 = vdwg.mxu0
    %v2978 = vmax.f32 %v2973, 0.0
    %v2979 = vpack.c.bf16 %v2978, %v2978
    %v2980 = vld [vmem:[#allocation4 + $0x120] sm:$0xff]
    %v2981 = vld [vmem:[#allocation4 + $0x128] sm:$0xff]
    %v2982 = vld [vmem:[#allocation4 + $0x130] sm:$0xff]
    %v2983 = vld [vmem:[#allocation4 + $0x138] sm:$0xff]
    %v2984 = vld [vmem:[#allocation4 + $0x140] sm:$0xff]
    %v2985 = vld [vmem:[#allocation4 + $0x148] sm:$0xff]
    %v2992 = vunpack.c.l.b16 %v2980
    %v2993 = vunpack.c.h.b16 %v2980
    %v2994 = vunpack.c.l.b16 %v2981
    %v2995 = vunpack.c.h.b16 %v2981
    %v2996 = vunpack.c.l.b16 %v2982
    %v2997 = vunpack.c.h.b16 %v2982
    %v2998 = vunpack.c.l.b16 %v2983
    %v2999 = vunpack.c.h.b16 %v2983
    %v3000 = vunpack.c.l.b16 %v2984
    %v3001 = vunpack.c.h.b16 %v2984
    %v3002 = vunpack.c.l.b16 %v2985
    %v3003 = vunpack.c.h.b16 %v2985
    %v3004 = vpack.c.b16 %v2994, %v2992
    %v3005 = vpack.c.b16 %v2995, %v2993
    %v3006 = vpack.c.b16 %v2998, %v2996
    %v3007 = vpack.c.b16 %v2999, %v2997
    %v3008 = vpack.c.b16 %v3002, %v3000
    %v3009 = vpack.c.b16 %v3003, %v3001
    %v3017 = vsel %vm2256, %v2979, 0
    %3019 = vmatprep.subr.bf16.mxu0 %v3005
    %3020 = vmatpush1.bf16.msra.mxu0 %v3004
    %3021 = vmatprep.subr.bf16.mxu0 %v3007
    %3022 = vmatpush1.bf16.msra.mxu0 %v3006
    %3023 = vmatprep.subr.bf16.mxu0 %v3009
    %3024 = vmatpush1.bf16.msra.mxu0 %v3008
    %3025 = vmatprep.subr.bf16.mxu0 0
    %3026 = vmatpush1.bf16.msra.mxu0 0
    %3027 = vmatprep.subr.bf16.mxu0 0
    %3028 = vmatpush1.bf16.msra.mxu0 0
    %3029 = vmatprep.subr.bf16.mxu0 0
    %3030 = vmatpush1.bf16.msra.mxu0 0
    %3031 = vmatprep.subr.bf16.mxu0 0
    %3032 = vmatpush1.bf16.msra.mxu0 0
    %3033 = vmatprep.subr.bf16.mxu0 0
    %3034 = vmatpush1.bf16.msra.mxu0 0
    %3035 = vmatprep.subr.bf16.mxu0 0
    %3036 = vmatpush1.bf16.msra.mxu0 0
    %3037 = vmatprep.subr.bf16.mxu0 0
    %3038 = vmatpush1.bf16.msra.mxu0 0
    %3039 = vmatprep.subr.bf16.mxu0 0
    %3040 = vmatpush1.bf16.msra.mxu0 0
    %3041 = vmatprep.subr.bf16.mxu0 0
    %3042 = vmatpush1.bf16.msra.mxu0 0
    %3043 = vmatprep.subr.bf16.mxu0 0
    %3044 = vmatpush1.bf16.msra.mxu0 0
    %3045 = vmatprep.subr.bf16.mxu0 0
    %3046 = vmatpush1.bf16.msra.mxu0 0
    %3047 = vmatprep.subr.bf16.mxu0 0
    %3048 = vmatpush1.bf16.msra.mxu0 0
    %3049 = vmatprep.subr.bf16.mxu0 0
    %3050 = vmatpush1.bf16.msra.mxu0 0
    %3051 = vmatprep.mubr.bf16.mxu0 0
    %3052 = vmatmul.mubr.bf16.gmra.mrb[0].mxu0 %v3017
    %v3053 = vpop.f32.mrb[0].mxu0
    %v3054 = vadd.f32 0.0, %v3053
    %v3055 = vpop.f32.mrb[0].mxu0
    %v3056 = vadd.f32 0.0, %v3055
    %v3057 = vpop.f32.mrb[0].mxu0
    %v3058 = vpop.f32.mrb[0].mxu0
    %3059 = vdwg.mxu0
    %v3060 = vadd.f32 %v2925, %v3054
    %v3061 = vadd.f32 %v2926, %v3056
    %3064 = vrot.lane.b32.xlu0 %v1976, 102
    %v3065 = vpop.permute.xlu0 %3064
    %3066 = vrot.lane.b32.xlu0 %v1977, 102
    %v3067 = vpop.permute.xlu0 %3066
    %3068 = vrot.lane.b32.xlu0 %v1978, 102
    %v3069 = vpop.permute.xlu0 %3068
    %vm3070 = vcmask 834560
    %v3071 = vsel %vm3070, %v3065, %v3067
    %v3072 = vsel %vm3070, %v3067, %v3069
    %v3075 = vsel %vm2110, %v3072, 0
    %3077 = vmatprep.subr.bf16.mxu0 0
    %3078 = vmatpush1.bf16.msra.mxu0 %v2080
    %3079 = vmatprep.subr.bf16.mxu0 0
    %3080 = vmatpush1.bf16.msra.mxu0 %v2081
    %3081 = vmatprep.subr.bf16.mxu0 0
    %3082 = vmatpush1.bf16.msra.mxu0 %v2082
    %3083 = vmatprep.subr.bf16.mxu0 0
    %3084 = vmatpush1.bf16.msra.mxu0 %v2083
    %3085 = vmatprep.subr.bf16.mxu0 0
    %3086 = vmatpush1.bf16.msra.mxu0 %v2084
    %3087 = vmatprep.subr.bf16.mxu0 0
    %3088 = vmatpush1.bf16.msra.mxu0 %v2085
    %3089 = vmatprep.subr.bf16.mxu0 0
    %3090 = vmatpush1.bf16.msra.mxu0 %v2086
    %3091 = vmatprep.subr.bf16.mxu0 0
    %3092 = vmatpush1.bf16.msra.mxu0 %v2087
    %3093 = vmatprep.subr.bf16.mxu0 0
    %3094 = vmatpush1.bf16.msra.mxu0 %v2088
    %3095 = vmatprep.subr.bf16.mxu0 0
    %3096 = vmatpush1.bf16.msra.mxu0 %v2089
    %3097 = vmatprep.subr.bf16.mxu0 0
    %3098 = vmatpush1.bf16.msra.mxu0 %v2090
    %3099 = vmatprep.subr.bf16.mxu0 0
    %3100 = vmatpush1.bf16.msra.mxu0 %v2091
    %3101 = vmatprep.subr.bf16.mxu0 0
    %3102 = vmatpush1.bf16.msra.mxu0 %v2092
    %3103 = vmatprep.subr.bf16.mxu0 0
    %3104 = vmatpush1.bf16.msra.mxu0 %v2093
    %3105 = vmatprep.subr.bf16.mxu0 0
    %3106 = vmatpush1.bf16.msra.mxu0 %v2094
    %3107 = vmatprep.subr.bf16.mxu0 0
    %3108 = vmatpush1.bf16.msra.mxu0 0
    %3109 = vmatprep.mubr.bf16.mxu0 %v3075
    %3110 = vmatmul.mubr.bf16.gmra.mrb[0].mxu0 %v3071
    %v3111 = vpop.f32.mrb[0].mxu0
    %v3112 = vadd.f32 %v2018, %v3111
    %v3113 = vpop.f32.mrb[0].mxu0
    %v3114 = vpop.f32.mrb[0].mxu0
    %v3115 = vpop.f32.mrb[0].mxu0
    %3116 = vdwg.mxu0
    %v3117 = vmax.f32 %v3112, 0.0
    %v3118 = vpack.c.bf16 %v3117, %v3117
    %v3119 = vld [vmem:[#allocation4 + $0x150] sm:$0xff]
    %v3120 = vld [vmem:[#allocation4 + $0x158] sm:$0xff]
    %v3121 = vld [vmem:[#allocation4 + $0x160] sm:$0xff]
    %v3122 = vld [vmem:[#allocation4 + $0x168] sm:$0xff]
    %v3123 = vld [vmem:[#allocation4 + $0x170] sm:$0xff]
    %v3124 = vld [vmem:[#allocation4 + $0x178] sm:$0xff]
    %v3131 = vunpack.c.l.b16 %v3119
    %v3132 = vunpack.c.h.b16 %v3119
    %v3133 = vunpack.c.l.b16 %v3120
    %v3134 = vunpack.c.h.b16 %v3120
    %v3135 = vunpack.c.l.b16 %v3121
    %v3136 = vunpack.c.h.b16 %v3121
    %v3137 = vunpack.c.l.b16 %v3122
    %v3138 = vunpack.c.h.b16 %v3122
    %v3139 = vunpack.c.l.b16 %v3123
    %v3140 = vunpack.c.h.b16 %v3123
    %v3141 = vunpack.c.l.b16 %v3124
    %v3142 = vunpack.c.h.b16 %v3124
    %v3143 = vpack.c.b16 %v3133, %v3131
    %v3144 = vpack.c.b16 %v3134, %v3132
    %v3145 = vpack.c.b16 %v3137, %v3135
    %v3146 = vpack.c.b16 %v3138, %v3136
    %v3147 = vpack.c.b16 %v3141, %v3139
    %v3148 = vpack.c.b16 %v3142, %v3140
    %v3156 = vsel %vm2256, %v3118, 0
    %3158 = vmatprep.subr.bf16.mxu0 %v3144
    %3159 = vmatpush1.bf16.msra.mxu0 %v3143
    %3160 = vmatprep.subr.bf16.mxu0 %v3146
    %3161 = vmatpush1.bf16.msra.mxu0 %v3145
    %3162 = vmatprep.subr.bf16.mxu0 %v3148
    %3163 = vmatpush1.bf16.msra.mxu0 %v3147
    %3164 = vmatprep.subr.bf16.mxu0 0
    %3165 = vmatpush1.bf16.msra.mxu0 0
    %3166 = vmatprep.subr.bf16.mxu0 0
    %3167 = vmatpush1.bf16.msra.mxu0 0
    %3168 = vmatprep.subr.bf16.mxu0 0
    %3169 = vmatpush1.bf16.msra.mxu0 0
    %3170 = vmatprep.subr.bf16.mxu0 0
    %3171 = vmatpush1.bf16.msra.mxu0 0
    %3172 = vmatprep.subr.bf16.mxu0 0
    %3173 = vmatpush1.bf16.msra.mxu0 0
    %3174 = vmatprep.subr.bf16.mxu0 0
    %3175 = vmatpush1.bf16.msra.mxu0 0
    %3176 = vmatprep.subr.bf16.mxu0 0
    %3177 = vmatpush1.bf16.msra.mxu0 0
    %3178 = vmatprep.subr.bf16.mxu0 0
    %3179 = vmatpush1.bf16.msra.mxu0 0
    %3180 = vmatprep.subr.bf16.mxu0 0
    %3181 = vmatpush1.bf16.msra.mxu0 0
    %3182 = vmatprep.subr.bf16.mxu0 0
    %3183 = vmatpush1.bf16.msra.mxu0 0
    %3184 = vmatprep.subr.bf16.mxu0 0
    %3185 = vmatpush1.bf16.msra.mxu0 0
    %3186 = vmatprep.subr.bf16.mxu0 0
    %3187 = vmatpush1.bf16.msra.mxu0 0
    %3188 = vmatprep.subr.bf16.mxu0 0
    %3189 = vmatpush1.bf16.msra.mxu0 0
    %3190 = vmatprep.mubr.bf16.mxu0 0
    %3191 = vmatmul.mubr.bf16.gmra.mrb[0].mxu0 %v3156
    %v3192 = vpop.f32.mrb[0].mxu0
    %v3193 = vadd.f32 0.0, %v3192
    %v3194 = vpop.f32.mrb[0].mxu0
    %v3195 = vadd.f32 0.0, %v3194
    %v3196 = vpop.f32.mrb[0].mxu0
    %v3197 = vpop.f32.mrb[0].mxu0
    %3198 = vdwg.mxu0
    %v3199 = vadd.f32 %v3060, %v3193
    %v3200 = vadd.f32 %v3061, %v3195
    %3202 = vrot.lane.b32.xlu0 %v1977, 80
    %v3203 = vpop.permute.xlu0 %3202
    %3204 = vrot.lane.b32.xlu0 %v1978, 80
    %v3205 = vpop.permute.xlu0 %3204
    %3206 = vrot.lane.b32.xlu0 %v1979, 80
    %v3207 = vpop.permute.xlu0 %3206
    %vm3208 = vcmask 654336
    %v3209 = vsel %vm3208, %v3203, %v3205
    %v3210 = vsel %vm3208, %v3205, %v3207
    %v3213 = vsel %vm2110, %v3210, 0
    %3215 = vmatprep.subr.bf16.mxu0 0
    %3216 = vmatpush1.bf16.msra.mxu0 %v2080
    %3217 = vmatprep.subr.bf16.mxu0 0
    %3218 = vmatpush1.bf16.msra.mxu0 %v2081
    %3219 = vmatprep.subr.bf16.mxu0 0
    %3220 = vmatpush1.bf16.msra.mxu0 %v2082
    %3221 = vmatprep.subr.bf16.mxu0 0
    %3222 = vmatpush1.bf16.msra.mxu0 %v2083
    %3223 = vmatprep.subr.bf16.mxu0 0
    %3224 = vmatpush1.bf16.msra.mxu0 %v2084
    %3225 = vmatprep.subr.bf16.mxu0 0
    %3226 = vmatpush1.bf16.msra.mxu0 %v2085
    %3227 = vmatprep.subr.bf16.mxu0 0
    %3228 = vmatpush1.bf16.msra.mxu0 %v2086
    %3229 = vmatprep.subr.bf16.mxu0 0
    %3230 = vmatpush1.bf16.msra.mxu0 %v2087
    %3231 = vmatprep.subr.bf16.mxu0 0
    %3232 = vmatpush1.bf16.msra.mxu0 %v2088
    %3233 = vmatprep.subr.bf16.mxu0 0
    %3234 = vmatpush1.bf16.msra.mxu0 %v2089
    %3235 = vmatprep.subr.bf16.mxu0 0
    %3236 = vmatpush1.bf16.msra.mxu0 %v2090
    %3237 = vmatprep.subr.bf16.mxu0 0
    %3238 = vmatpush1.bf16.msra.mxu0 %v2091
    %3239 = vmatprep.subr.bf16.mxu0 0
    %3240 = vmatpush1.bf16.msra.mxu0 %v2092
    %3241 = vmatprep.subr.bf16.mxu0 0
    %3242 = vmatpush1.bf16.msra.mxu0 %v2093
    %3243 = vmatprep.subr.bf16.mxu0 0
    %3244 = vmatpush1.bf16.msra.mxu0 %v2094
    %3245 = vmatprep.subr.bf16.mxu0 0
    %3246 = vmatpush1.bf16.msra.mxu0 0
    %3247 = vmatprep.mubr.bf16.mxu0 %v3213
    %3248 = vmatmul.mubr.bf16.gmra.mrb[0].mxu0 %v3209
    %v3249 = vpop.f32.mrb[0].mxu0
    %v3250 = vadd.f32 %v2018, %v3249
    %v3251 = vpop.f32.mrb[0].mxu0
    %v3252 = vpop.f32.mrb[0].mxu0
    %v3253 = vpop.f32.mrb[0].mxu0
    %3254 = vdwg.mxu0
    %v3255 = vmax.f32 %v3250, 0.0
    %v3256 = vpack.c.bf16 %v3255, %v3255
    %v3257 = vld [vmem:[#allocation4 + $0x180] sm:$0xff]
    %v3258 = vld [vmem:[#allocation4 + $0x188] sm:$0xff]
    %v3259 = vld [vmem:[#allocation4 + $0x190] sm:$0xff]
    %v3260 = vld [vmem:[#allocation4 + $0x198] sm:$0xff]
    %v3261 = vld [vmem:[#allocation4 + $0x1a0] sm:$0xff]
    %v3262 = vld [vmem:[#allocation4 + $0x1a8] sm:$0xff]
    %v3269 = vunpack.c.l.b16 %v3257
    %v3270 = vunpack.c.h.b16 %v3257
    %v3271 = vunpack.c.l.b16 %v3258
    %v3272 = vunpack.c.h.b16 %v3258
    %v3273 = vunpack.c.l.b16 %v3259
    %v3274 = vunpack.c.h.b16 %v3259
    %v3275 = vunpack.c.l.b16 %v3260
    %v3276 = vunpack.c.h.b16 %v3260
    %v3277 = vunpack.c.l.b16 %v3261
    %v3278 = vunpack.c.h.b16 %v3261
    %v3279 = vunpack.c.l.b16 %v3262
    %v3280 = vunpack.c.h.b16 %v3262
    %v3281 = vpack.c.b16 %v3271, %v3269
    %v3282 = vpack.c.b16 %v3272, %v3270
    %v3283 = vpack.c.b16 %v3275, %v3273
    %v3284 = vpack.c.b16 %v3276, %v3274
    %v3285 = vpack.c.b16 %v3279, %v3277
    %v3286 = vpack.c.b16 %v3280, %v3278
    %v3294 = vsel %vm2256, %v3256, 0
    %3296 = vmatprep.subr.bf16.mxu0 %v3282
    %3297 = vmatpush1.bf16.msra.mxu0 %v3281
    %3298 = vmatprep.subr.bf16.mxu0 %v3284
    %3299 = vmatpush1.bf16.msra.mxu0 %v3283
    %3300 = vmatprep.subr.bf16.mxu0 %v3286
    %3301 = vmatpush1.bf16.msra.mxu0 %v3285
    %3302 = vmatprep.subr.bf16.mxu0 0
    %3303 = vmatpush1.bf16.msra.mxu0 0
    %3304 = vmatprep.subr.bf16.mxu0 0
    %3305 = vmatpush1.bf16.msra.mxu0 0
    %3306 = vmatprep.subr.bf16.mxu0 0
    %3307 = vmatpush1.bf16.msra.mxu0 0
    %3308 = vmatprep.subr.bf16.mxu0 0
    %3309 = vmatpush1.bf16.msra.mxu0 0
    %3310 = vmatprep.subr.bf16.mxu0 0
    %3311 = vmatpush1.bf16.msra.mxu0 0
    %3312 = vmatprep.subr.bf16.mxu0 0
    %3313 = vmatpush1.bf16.msra.mxu0 0
    %3314 = vmatprep.subr.bf16.mxu0 0
    %3315 = vmatpush1.bf16.msra.mxu0 0
    %3316 = vmatprep.subr.bf16.mxu0 0
    %3317 = vmatpush1.bf16.msra.mxu0 0
    %3318 = vmatprep.subr.bf16.mxu0 0
    %3319 = vmatpush1.bf16.msra.mxu0 0
    %3320 = vmatprep.subr.bf16.mxu0 0
    %3321 = vmatpush1.bf16.msra.mxu0 0
    %3322 = vmatprep.subr.bf16.mxu0 0
    %3323 = vmatpush1.bf16.msra.mxu0 0
    %3324 = vmatprep.subr.bf16.mxu0 0
    %3325 = vmatpush1.bf16.msra.mxu0 0
    %3326 = vmatprep.subr.bf16.mxu0 0
    %3327 = vmatpush1.bf16.msra.mxu0 0
    %3328 = vmatprep.mubr.bf16.mxu0 0
    %3329 = vmatmul.mubr.bf16.gmra.mrb[0].mxu0 %v3294
    %v3330 = vpop.f32.mrb[0].mxu0
    %v3331 = vadd.f32 0.0, %v3330
    %v3332 = vpop.f32.mrb[0].mxu0
    %v3333 = vadd.f32 0.0, %v3332
    %v3334 = vpop.f32.mrb[0].mxu0
    %v3335 = vpop.f32.mrb[0].mxu0
    %3336 = vdwg.mxu0
    %v3337 = vadd.f32 %v3199, %v3331
    %v3338 = vadd.f32 %v3200, %v3333
    %3340 = vrot.lane.b32.xlu0 %v1978, 58
    %v3341 = vpop.permute.xlu0 %3340
    %3342 = vrot.lane.b32.xlu0 %v1979, 58
    %v3343 = vpop.permute.xlu0 %3342
    %3344 = vrot.lane.b32.xlu0 %v1980, 58
    %v3345 = vpop.permute.xlu0 %3344
    %vm3346 = vcmask 474112
    %v3347 = vsel %vm3346, %v3341, %v3343
    %v3348 = vsel %vm3346, %v3343, %v3345
    %v3351 = vsel %vm2110, %v3348, 0
    %3353 = vmatprep.subr.bf16.mxu0 0
    %3354 = vmatpush1.bf16.msra.mxu0 %v2080
    %3355 = vmatprep.subr.bf16.mxu0 0
    %3356 = vmatpush1.bf16.msra.mxu0 %v2081
    %3357 = vmatprep.subr.bf16.mxu0 0
    %3358 = vmatpush1.bf16.msra.mxu0 %v2082
    %3359 = vmatprep.subr.bf16.mxu0 0
    %3360 = vmatpush1.bf16.msra.mxu0 %v2083
    %3361 = vmatprep.subr.bf16.mxu0 0
    %3362 = vmatpush1.bf16.msra.mxu0 %v2084
    %3363 = vmatprep.subr.bf16.mxu0 0
    %3364 = vmatpush1.bf16.msra.mxu0 %v2085
    %3365 = vmatprep.subr.bf16.mxu0 0
    %3366 = vmatpush1.bf16.msra.mxu0 %v2086
    %3367 = vmatprep.subr.bf16.mxu0 0
    %3368 = vmatpush1.bf16.msra.mxu0 %v2087
    %3369 = vmatprep.subr.bf16.mxu0 0
    %3370 = vmatpush1.bf16.msra.mxu0 %v2088
    %3371 = vmatprep.subr.bf16.mxu0 0
    %3372 = vmatpush1.bf16.msra.mxu0 %v2089
    %3373 = vmatprep.subr.bf16.mxu0 0
    %3374 = vmatpush1.bf16.msra.mxu0 %v2090
    %3375 = vmatprep.subr.bf16.mxu0 0
    %3376 = vmatpush1.bf16.msra.mxu0 %v2091
    %3377 = vmatprep.subr.bf16.mxu0 0
    %3378 = vmatpush1.bf16.msra.mxu0 %v2092
    %3379 = vmatprep.subr.bf16.mxu0 0
    %3380 = vmatpush1.bf16.msra.mxu0 %v2093
    %3381 = vmatprep.subr.bf16.mxu0 0
    %3382 = vmatpush1.bf16.msra.mxu0 %v2094
    %3383 = vmatprep.subr.bf16.mxu0 0
    %3384 = vmatpush1.bf16.msra.mxu0 0
    %3385 = vmatprep.mubr.bf16.mxu0 %v3351
    %3386 = vmatmul.mubr.bf16.gmra.mrb[0].mxu0 %v3347
    %v3387 = vpop.f32.mrb[0].mxu0
    %v3388 = vadd.f32 %v2018, %v3387
    %v3389 = vpop.f32.mrb[0].mxu0
    %v3390 = vpop.f32.mrb[0].mxu0
    %v3391 = vpop.f32.mrb[0].mxu0
    %3392 = vdwg.mxu0
    %v3393 = vmax.f32 %v3388, 0.0
    %v3394 = vpack.c.bf16 %v3393, %v3393
    %v3395 = vld [vmem:[#allocation4 + $0x1b0] sm:$0xff]
    %v3396 = vld [vmem:[#allocation4 + $0x1b8] sm:$0xff]
    %v3397 = vld [vmem:[#allocation4 + $0x1c0] sm:$0xff]
    %v3398 = vld [vmem:[#allocation4 + $0x1c8] sm:$0xff]
    %v3399 = vld [vmem:[#allocation4 + $0x1d0] sm:$0xff]
    %v3400 = vld [vmem:[#allocation4 + $0x1d8] sm:$0xff]
    %v3407 = vunpack.c.l.b16 %v3395
    %v3408 = vunpack.c.h.b16 %v3395
    %v3409 = vunpack.c.l.b16 %v3396
    %v3410 = vunpack.c.h.b16 %v3396
    %v3411 = vunpack.c.l.b16 %v3397
    %v3412 = vunpack.c.h.b16 %v3397
    %v3413 = vunpack.c.l.b16 %v3398
    %v3414 = vunpack.c.h.b16 %v3398
    %v3415 = vunpack.c.l.b16 %v3399
    %v3416 = vunpack.c.h.b16 %v3399
    %v3417 = vunpack.c.l.b16 %v3400
    %v3418 = vunpack.c.h.b16 %v3400
    %v3419 = vpack.c.b16 %v3409, %v3407
    %v3420 = vpack.c.b16 %v3410, %v3408
    %v3421 = vpack.c.b16 %v3413, %v3411
    %v3422 = vpack.c.b16 %v3414, %v3412
    %v3423 = vpack.c.b16 %v3417, %v3415
    %v3424 = vpack.c.b16 %v3418, %v3416
    %v3432 = vsel %vm2256, %v3394, 0
    %3434 = vmatprep.subr.bf16.mxu0 %v3420
    %3435 = vmatpush1.bf16.msra.mxu0 %v3419
    %3436 = vmatprep.subr.bf16.mxu0 %v3422
    %3437 = vmatpush1.bf16.msra.mxu0 %v3421
    %3438 = vmatprep.subr.bf16.mxu0 %v3424
    %3439 = vmatpush1.bf16.msra.mxu0 %v3423
    %3440 = vmatprep.subr.bf16.mxu0 0
    %3441 = vmatpush1.bf16.msra.mxu0 0
    %3442 = vmatprep.subr.bf16.mxu0 0
    %3443 = vmatpush1.bf16.msra.mxu0 0
    %3444 = vmatprep.subr.bf16.mxu0 0
    %3445 = vmatpush1.bf16.msra.mxu0 0
    %3446 = vmatprep.subr.bf16.mxu0 0
    %3447 = vmatpush1.bf16.msra.mxu0 0
    %3448 = vmatprep.subr.bf16.mxu0 0
    %3449 = vmatpush1.bf16.msra.mxu0 0
    %3450 = vmatprep.subr.bf16.mxu0 0
    %3451 = vmatpush1.bf16.msra.mxu0 0
    %3452 = vmatprep.subr.bf16.mxu0 0
    %3453 = vmatpush1.bf16.msra.mxu0 0
    %3454 = vmatprep.subr.bf16.mxu0 0
    %3455 = vmatpush1.bf16.msra.mxu0 0
    %3456 = vmatprep.subr.bf16.mxu0 0
    %3457 = vmatpush1.bf16.msra.mxu0 0
    %3458 = vmatprep.subr.bf16.mxu0 0
    %3459 = vmatpush1.bf16.msra.mxu0 0
    %3460 = vmatprep.subr.bf16.mxu0 0
    %3461 = vmatpush1.bf16.msra.mxu0 0
    %3462 = vmatprep.subr.bf16.mxu0 0
    %3463 = vmatpush1.bf16.msra.mxu0 0
    %3464 = vmatprep.subr.bf16.mxu0 0
    %3465 = vmatpush1.bf16.msra.mxu0 0
    %3466 = vmatprep.mubr.bf16.mxu0 0
    %3467 = vmatmul.mubr.bf16.gmra.mrb[0].mxu0 %v3432
    %v3468 = vpop.f32.mrb[0].mxu0
    %v3469 = vadd.f32 0.0, %v3468
    %v3470 = vpop.f32.mrb[0].mxu0
    %v3471 = vadd.f32 0.0, %v3470
    %v3472 = vpop.f32.mrb[0].mxu0
    %v3473 = vpop.f32.mrb[0].mxu0
    %3474 = vdwg.mxu0
    %v3475 = vadd.f32 %v3337, %v3469
    %v3476 = vadd.f32 %v3338, %v3471
    %3478 = vrot.lane.b32.xlu0 %v1979, 36
    %v3479 = vpop.permute.xlu0 %3478
    %3480 = vrot.lane.b32.xlu0 %v1980, 36
    %v3481 = vpop.permute.xlu0 %3480
    %3482 = vrot.lane.b32.xlu0 %v1981, 36
    %v3483 = vpop.permute.xlu0 %3482
    %vm3484 = vcmask 293888
    %v3485 = vsel %vm3484, %v3479, %v3481
    %v3486 = vsel %vm3484, %v3481, %v3483
    %v3489 = vsel %vm2110, %v3486, 0
    %3491 = vmatprep.subr.bf16.mxu0 0
    %3492 = vmatpush1.bf16.msra.mxu0 %v2080
    %3493 = vmatprep.subr.bf16.mxu0 0
    %3494 = vmatpush1.bf16.msra.mxu0 %v2081
    %3495 = vmatprep.subr.bf16.mxu0 0
    %3496 = vmatpush1.bf16.msra.mxu0 %v2082
    %3497 = vmatprep.subr.bf16.mxu0 0
    %3498 = vmatpush1.bf16.msra.mxu0 %v2083
    %3499 = vmatprep.subr.bf16.mxu0 0
    %3500 = vmatpush1.bf16.msra.mxu0 %v2084
    %3501 = vmatprep.subr.bf16.mxu0 0
    %3502 = vmatpush1.bf16.msra.mxu0 %v2085
    %3503 = vmatprep.subr.bf16.mxu0 0
    %3504 = vmatpush1.bf16.msra.mxu0 %v2086
    %3505 = vmatprep.subr.bf16.mxu0 0
    %3506 = vmatpush1.bf16.msra.mxu0 %v2087
    %3507 = vmatprep.subr.bf16.mxu0 0
    %3508 = vmatpush1.bf16.msra.mxu0 %v2088
    %3509 = vmatprep.subr.bf16.mxu0 0
    %3510 = vmatpush1.bf16.msra.mxu0 %v2089
    %3511 = vmatprep.subr.bf16.mxu0 0
    %3512 = vmatpush1.bf16.msra.mxu0 %v2090
    %3513 = vmatprep.subr.bf16.mxu0 0
    %3514 = vmatpush1.bf16.msra.mxu0 %v2091
    %3515 = vmatprep.subr.bf16.mxu0 0
    %3516 = vmatpush1.bf16.msra.mxu0 %v2092
    %3517 = vmatprep.subr.bf16.mxu0 0
    %3518 = vmatpush1.bf16.msra.mxu0 %v2093
    %3519 = vmatprep.subr.bf16.mxu0 0
    %3520 = vmatpush1.bf16.msra.mxu0 %v2094
    %3521 = vmatprep.subr.bf16.mxu0 0
    %3522 = vmatpush1.bf16.msra.mxu0 0
    %3523 = vmatprep.mubr.bf16.mxu0 %v3489
    %3524 = vmatmul.mubr.bf16.gmra.mrb[0].mxu0 %v3485
    %v3525 = vpop.f32.mrb[0].mxu0
    %v3526 = vadd.f32 %v2018, %v3525
    %v3527 = vpop.f32.mrb[0].mxu0
    %v3528 = vpop.f32.mrb[0].mxu0
    %v3529 = vpop.f32.mrb[0].mxu0
    %3530 = vdwg.mxu0
    %v3531 = vmax.f32 %v3526, 0.0
    %v3532 = vpack.c.bf16 %v3531, %v3531
    %v3533 = vld [vmem:[#allocation4 + $0x1e0] sm:$0xff]
    %v3534 = vld [vmem:[#allocation4 + $0x1e8] sm:$0xff]
    %v3535 = vld [vmem:[#allocation4 + $0x1f0] sm:$0xff]
    %v3536 = vld [vmem:[#allocation4 + $0x1f8] sm:$0xff]
    %v3537 = vld [vmem:[#allocation4 + $0x200] sm:$0xff]
    %v3538 = vld [vmem:[#allocation4 + $0x208] sm:$0xff]
    %v3545 = vunpack.c.l.b16 %v3533
    %v3546 = vunpack.c.h.b16 %v3533
    %v3547 = vunpack.c.l.b16 %v3534
    %v3548 = vunpack.c.h.b16 %v3534
    %v3549 = vunpack.c.l.b16 %v3535
    %v3550 = vunpack.c.h.b16 %v3535
    %v3551 = vunpack.c.l.b16 %v3536
    %v3552 = vunpack.c.h.b16 %v3536
    %v3553 = vunpack.c.l.b16 %v3537
    %v3554 = vunpack.c.h.b16 %v3537
    %v3555 = vunpack.c.l.b16 %v3538
    %v3556 = vunpack.c.h.b16 %v3538
    %v3557 = vpack.c.b16 %v3547, %v3545
    %v3558 = vpack.c.b16 %v3548, %v3546
    %v3559 = vpack.c.b16 %v3551, %v3549
    %v3560 = vpack.c.b16 %v3552, %v3550
    %v3561 = vpack.c.b16 %v3555, %v3553
    %v3562 = vpack.c.b16 %v3556, %v3554
    %v3570 = vsel %vm2256, %v3532, 0
    %3572 = vmatprep.subr.bf16.mxu0 %v3558
    %3573 = vmatpush1.bf16.msra.mxu0 %v3557
    %3574 = vmatprep.subr.bf16.mxu0 %v3560
    %3575 = vmatpush1.bf16.msra.mxu0 %v3559
    %3576 = vmatprep.subr.bf16.mxu0 %v3562
    %3577 = vmatpush1.bf16.msra.mxu0 %v3561
    %3578 = vmatprep.subr.bf16.mxu0 0
    %3579 = vmatpush1.bf16.msra.mxu0 0
    %3580 = vmatprep.subr.bf16.mxu0 0
    %3581 = vmatpush1.bf16.msra.mxu0 0
    %3582 = vmatprep.subr.bf16.mxu0 0
    %3583 = vmatpush1.bf16.msra.mxu0 0
    %3584 = vmatprep.subr.bf16.mxu0 0
    %3585 = vmatpush1.bf16.msra.mxu0 0
    %3586 = vmatprep.subr.bf16.mxu0 0
    %3587 = vmatpush1.bf16.msra.mxu0 0
    %3588 = vmatprep.subr.bf16.mxu0 0
    %3589 = vmatpush1.bf16.msra.mxu0 0
    %3590 = vmatprep.subr.bf16.mxu0 0
    %3591 = vmatpush1.bf16.msra.mxu0 0
    %3592 = vmatprep.subr.bf16.mxu0 0
    %3593 = vmatpush1.bf16.msra.mxu0 0
    %3594 = vmatprep.subr.bf16.mxu0 0
    %3595 = vmatpush1.bf16.msra.mxu0 0
    %3596 = vmatprep.subr.bf16.mxu0 0
    %3597 = vmatpush1.bf16.msra.mxu0 0
    %3598 = vmatprep.subr.bf16.mxu0 0
    %3599 = vmatpush1.bf16.msra.mxu0 0
    %3600 = vmatprep.subr.bf16.mxu0 0
    %3601 = vmatpush1.bf16.msra.mxu0 0
    %3602 = vmatprep.subr.bf16.mxu0 0
    %3603 = vmatpush1.bf16.msra.mxu0 0
    %3604 = vmatprep.mubr.bf16.mxu0 0
    %3605 = vmatmul.mubr.bf16.gmra.mrb[0].mxu0 %v3570
    %v3606 = vpop.f32.mrb[0].mxu0
    %v3607 = vadd.f32 0.0, %v3606
    %v3608 = vpop.f32.mrb[0].mxu0
    %v3609 = vadd.f32 0.0, %v3608
    %v3610 = vpop.f32.mrb[0].mxu0
    %v3611 = vpop.f32.mrb[0].mxu0
    %3612 = vdwg.mxu0
    %v3613 = vadd.f32 %v3475, %v3607
    %v3614 = vadd.f32 %v3476, %v3609
    %3616 = vrot.lane.b32.xlu0 %v1980, 14
    %v3617 = vpop.permute.xlu0 %3616
    %3618 = vrot.lane.b32.xlu0 %v1981, 14
    %v3619 = vpop.permute.xlu0 %3618
    %3620 = vrot.lane.b32.xlu0 %v1982, 14
    %v3621 = vpop.permute.xlu0 %3620
    %vm3622 = vcmask 113664
    %v3623 = vsel %vm3622, %v3617, %v3619
    %v3624 = vsel %vm3622, %v3619, %v3621
    %v3627 = vsel %vm2110, %v3624, 0
    %3629 = vmatprep.subr.bf16.mxu0 0
    %3630 = vmatpush1.bf16.msra.mxu0 %v2080
    %3631 = vmatprep.subr.bf16.mxu0 0
    %3632 = vmatpush1.bf16.msra.mxu0 %v2081
    %3633 = vmatprep.subr.bf16.mxu0 0
    %3634 = vmatpush1.bf16.msra.mxu0 %v2082
    %3635 = vmatprep.subr.bf16.mxu0 0
    %3636 = vmatpush1.bf16.msra.mxu0 %v2083
    %3637 = vmatprep.subr.bf16.mxu0 0
    %3638 = vmatpush1.bf16.msra.mxu0 %v2084
    %3639 = vmatprep.subr.bf16.mxu0 0
    %3640 = vmatpush1.bf16.msra.mxu0 %v2085
    %3641 = vmatprep.subr.bf16.mxu0 0
    %3642 = vmatpush1.bf16.msra.mxu0 %v2086
    %3643 = vmatprep.subr.bf16.mxu0 0
    %3644 = vmatpush1.bf16.msra.mxu0 %v2087
    %3645 = vmatprep.subr.bf16.mxu0 0
    %3646 = vmatpush1.bf16.msra.mxu0 %v2088
    %3647 = vmatprep.subr.bf16.mxu0 0
    %3648 = vmatpush1.bf16.msra.mxu0 %v2089
    %3649 = vmatprep.subr.bf16.mxu0 0
    %3650 = vmatpush1.bf16.msra.mxu0 %v2090
    %3651 = vmatprep.subr.bf16.mxu0 0
    %3652 = vmatpush1.bf16.msra.mxu0 %v2091
    %3653 = vmatprep.subr.bf16.mxu0 0
    %3654 = vmatpush1.bf16.msra.mxu0 %v2092
    %3655 = vmatprep.subr.bf16.mxu0 0
    %3656 = vmatpush1.bf16.msra.mxu0 %v2093
    %3657 = vmatprep.subr.bf16.mxu0 0
    %3658 = vmatpush1.bf16.msra.mxu0 %v2094
    %3659 = vmatprep.subr.bf16.mxu0 0
    %3660 = vmatpush1.bf16.msra.mxu0 0
    %3661 = vmatprep.mubr.bf16.mxu0 %v3627
    %3662 = vmatmul.mubr.bf16.gmra.mrb[0].mxu0 %v3623
    %v3663 = vpop.f32.mrb[0].mxu0
    %v3664 = vadd.f32 %v2018, %v3663
    %v3665 = vpop.f32.mrb[0].mxu0
    %v3666 = vpop.f32.mrb[0].mxu0
    %v3667 = vpop.f32.mrb[0].mxu0
    %3668 = vdwg.mxu0
    %v3669 = vmax.f32 %v3664, 0.0
    %v3670 = vpack.c.bf16 %v3669, %v3669
    %v3671 = vld [vmem:[#allocation4 + $0x210] sm:$0xff]
    %v3672 = vld [vmem:[#allocation4 + $0x218] sm:$0xff]
    %v3673 = vld [vmem:[#allocation4 + $0x220] sm:$0xff]
    %v3674 = vld [vmem:[#allocation4 + $0x228] sm:$0xff]
    %v3675 = vld [vmem:[#allocation4 + $0x230] sm:$0xff]
    %v3676 = vld [vmem:[#allocation4 + $0x238] sm:$0xff]
    %v3683 = vunpack.c.l.b16 %v3671
    %v3684 = vunpack.c.h.b16 %v3671
    %v3685 = vunpack.c.l.b16 %v3672
    %v3686 = vunpack.c.h.b16 %v3672
    %v3687 = vunpack.c.l.b16 %v3673
    %v3688 = vunpack.c.h.b16 %v3673
    %v3689 = vunpack.c.l.b16 %v3674
    %v3690 = vunpack.c.h.b16 %v3674
    %v3691 = vunpack.c.l.b16 %v3675
    %v3692 = vunpack.c.h.b16 %v3675
    %v3693 = vunpack.c.l.b16 %v3676
    %v3694 = vunpack.c.h.b16 %v3676
    %v3695 = vpack.c.b16 %v3685, %v3683
    %v3696 = vpack.c.b16 %v3686, %v3684
    %v3697 = vpack.c.b16 %v3689, %v3687
    %v3698 = vpack.c.b16 %v3690, %v3688
    %v3699 = vpack.c.b16 %v3693, %v3691
    %v3700 = vpack.c.b16 %v3694, %v3692
    %v3708 = vsel %vm2256, %v3670, 0
    %3710 = vmatprep.subr.bf16.mxu0 %v3696
    %3711 = vmatpush1.bf16.msra.mxu0 %v3695
    %3712 = vmatprep.subr.bf16.mxu0 %v3698
    %3713 = vmatpush1.bf16.msra.mxu0 %v3697
    %3714 = vmatprep.subr.bf16.mxu0 %v3700
    %3715 = vmatpush1.bf16.msra.mxu0 %v3699
    %3716 = vmatprep.subr.bf16.mxu0 0
    %3717 = vmatpush1.bf16.msra.mxu0 0
    %3718 = vmatprep.subr.bf16.mxu0 0
    %3719 = vmatpush1.bf16.msra.mxu0 0
    %3720 = vmatprep.subr.bf16.mxu0 0
    %3721 = vmatpush1.bf16.msra.mxu0 0
    %3722 = vmatprep.subr.bf16.mxu0 0
    %3723 = vmatpush1.bf16.msra.mxu0 0
    %3724 = vmatprep.subr.bf16.mxu0 0
    %3725 = vmatpush1.bf16.msra.mxu0 0
    %3726 = vmatprep.subr.bf16.mxu0 0
    %3727 = vmatpush1.bf16.msra.mxu0 0
    %3728 = vmatprep.subr.bf16.mxu0 0
    %3729 = vmatpush1.bf16.msra.mxu0 0
    %3730 = vmatprep.subr.bf16.mxu0 0
    %3731 = vmatpush1.bf16.msra.mxu0 0
    %3732 = vmatprep.subr.bf16.mxu0 0
    %3733 = vmatpush1.bf16.msra.mxu0 0
    %3734 = vmatprep.subr.bf16.mxu0 0
    %3735 = vmatpush1.bf16.msra.mxu0 0
    %3736 = vmatprep.subr.bf16.mxu0 0
    %3737 = vmatpush1.bf16.msra.mxu0 0
    %3738 = vmatprep.subr.bf16.mxu0 0
    %3739 = vmatpush1.bf16.msra.mxu0 0
    %3740 = vmatprep.subr.bf16.mxu0 0
    %3741 = vmatpush1.bf16.msra.mxu0 0
    %3742 = vmatprep.mubr.bf16.mxu0 0
    %3743 = vmatmul.mubr.bf16.gmra.mrb[0].mxu0 %v3708
    %v3744 = vpop.f32.mrb[0].mxu0
    %v3745 = vadd.f32 0.0, %v3744
    %v3746 = vpop.f32.mrb[0].mxu0
    %v3747 = vadd.f32 0.0, %v3746
    %v3748 = vpop.f32.mrb[0].mxu0
    %v3749 = vpop.f32.mrb[0].mxu0
    %3750 = vdwg.mxu0
    %v3751 = vadd.f32 %v3613, %v3745
    %v3752 = vadd.f32 %v3614, %v3747
    %v3753 = vld [vmem:[%s6] sm:$0x3]
    %v3755 = vlaneseq
    %v3756 = vshrl.u32 %v3755, 7
    %v3757 = vsub.s32 0, %v3756
    %v3758 = vrot.slane %v3753, %v3757
    %v3759 = vlaneseq
    %v3760 = vshrl.u32 %v3759, 7
    %v3761 = vsub.s32 1, %v3760
    %v3762 = vrot.slane %v3753, %v3761
    %v3765 = vadd.f32 %v3751, %v3758
    %v3766 = vadd.f32 %v3752, %v3762
    %v3767 = vmax.f32 %v3765, 0.0
    %v3768 = vmax.f32 %v3766, 0.0
    %v3769 = vpack.c.bf16 %v3767, %v3767
    %v3770 = vpack.c.bf16 %v3768, %v3768
    %v3771 = vld [vmem:[%s7] sm:$0xf]
    %v3772 = vld [vmem:[%s7 + $0x4] sm:$0xf]
    %v3773 = vld [vmem:[%s7 + $0x8] sm:$0xf]
    %v3774 = vld [vmem:[%s7 + $0xc] sm:$0xf]
    %v3775 = vld [vmem:[%s7 + $0x10] sm:$0xf]
    %v3776 = vld [vmem:[%s7 + $0x14] sm:$0xf]
    %v3777 = vld [vmem:[%s7 + $0x18] sm:$0xf]
    %v3778 = vld [vmem:[%s7 + $0x1c] sm:$0xf]
    %v3779 = vld [vmem:[%s7 + $0x20] sm:$0xf]
    %v3780 = vld [vmem:[%s7 + $0x24] sm:$0xf]
    %v3781 = vld [vmem:[%s7 + $0x28] sm:$0xf]
    %v3782 = vld [vmem:[%s7 + $0x2c] sm:$0xf]
    %v3783 = vld [vmem:[%s7 + $0x30] sm:$0xf]
    %v3784 = vld [vmem:[%s7 + $0x34] sm:$0xf]
    %v3785 = vld [vmem:[%s7 + $0x38] sm:$0xf]
    %v3786 = vld [vmem:[%s7 + $0x3c] sm:$0xf]
    %v3787 = vld [vmem:[%s7 + $0x40] sm:$0xf]
    %v3788 = vld [vmem:[%s7 + $0x44] sm:$0xf]
    %v3789 = vld [vmem:[%s7 + $0x48] sm:$0xf]
    %v3790 = vld [vmem:[%s7 + $0x4c] sm:$0xf]
    %v3791 = vld [vmem:[%s7 + $0x50] sm:$0xf]
    %v3792 = vld [vmem:[%s7 + $0x54] sm:$0xf]
    %v3793 = vld [vmem:[%s7 + $0x58] sm:$0xf]
    %v3794 = vld [vmem:[%s7 + $0x5c] sm:$0xf]
    %v3795 = vld [vmem:[%s7 + $0x60] sm:$0xf]
    %v3796 = vld [vmem:[%s7 + $0x64] sm:$0xf]
    %v3797 = vld [vmem:[%s7 + $0x68] sm:$0xf]
    %v3798 = vld [vmem:[%s7 + $0x6c] sm:$0xf]
    %v3799 = vld [vmem:[%s7 + $0x70] sm:$0xf]
    %v3800 = vld [vmem:[%s7 + $0x74] sm:$0xf]
    %v3801 = vld [vmem:[%s7 + $0x78] sm:$0xf]
    %v3802 = vld [vmem:[%s7 + $0x7c] sm:$0xf]
    %v3803 = vld [vmem:[%s8] sm:$0x1]
    %v3805 = vlaneseq
    %v3806 = vshrl.u32 %v3805, 7
    %v3807 = vsub.s32 0, %v3806
    %v3808 = vrot.slane %v3803, %v3807
    %v3842 = vunpack.c.l.b16 %v3771
    %v3843 = vunpack.c.l.b16 %v3772
    %v3844 = vunpack.c.l.b16 %v3773
    %v3845 = vunpack.c.l.b16 %v3774
    %v3846 = vunpack.c.l.b16 %v3775
    %v3847 = vunpack.c.l.b16 %v3776
    %v3848 = vunpack.c.l.b16 %v3777
    %v3849 = vunpack.c.l.b16 %v3778
    %v3850 = vunpack.c.l.b16 %v3779
    %v3851 = vunpack.c.l.b16 %v3780
    %v3852 = vunpack.c.l.b16 %v3781
    %v3853 = vunpack.c.l.b16 %v3782
    %v3854 = vunpack.c.l.b16 %v3783
    %v3855 = vunpack.c.l.b16 %v3784
    %v3856 = vunpack.c.l.b16 %v3785
    %v3857 = vunpack.c.l.b16 %v3786
    %v3858 = vunpack.c.l.b16 %v3787
    %v3859 = vunpack.c.l.b16 %v3788
    %v3860 = vunpack.c.l.b16 %v3789
    %v3861 = vunpack.c.l.b16 %v3790
    %v3862 = vunpack.c.l.b16 %v3791
    %v3863 = vunpack.c.l.b16 %v3792
    %v3864 = vunpack.c.l.b16 %v3793
    %v3865 = vunpack.c.l.b16 %v3794
    %v3866 = vunpack.c.l.b16 %v3795
    %v3867 = vunpack.c.l.b16 %v3796
    %v3868 = vunpack.c.l.b16 %v3797
    %v3869 = vunpack.c.l.b16 %v3798
    %v3870 = vunpack.c.l.b16 %v3799
    %v3871 = vunpack.c.l.b16 %v3800
    %v3872 = vunpack.c.l.b16 %v3801
    %v3873 = vunpack.c.l.b16 %v3802
    %v3874 = vpack.c.b16 %v3843, %v3842
    %v3875 = vpack.c.b16 %v3845, %v3844
    %v3876 = vpack.c.b16 %v3847, %v3846
    %v3877 = vpack.c.b16 %v3849, %v3848
    %v3878 = vpack.c.b16 %v3851, %v3850
    %v3879 = vpack.c.b16 %v3853, %v3852
    %v3880 = vpack.c.b16 %v3855, %v3854
    %v3881 = vpack.c.b16 %v3857, %v3856
    %v3882 = vpack.c.b16 %v3859, %v3858
    %v3883 = vpack.c.b16 %v3861, %v3860
    %v3884 = vpack.c.b16 %v3863, %v3862
    %v3885 = vpack.c.b16 %v3865, %v3864
    %v3886 = vpack.c.b16 %v3867, %v3866
    %v3887 = vpack.c.b16 %v3869, %v3868
    %v3888 = vpack.c.b16 %v3871, %v3870
    %v3889 = vpack.c.b16 %v3873, %v3872
    %3906 = vmatprep.subr.bf16.mxu0 0
    %3907 = vmatpush1.bf16.msra.mxu0 %v3874
    %3908 = vmatprep.subr.bf16.mxu0 0
    %3909 = vmatpush1.bf16.msra.mxu0 %v3875
    %3910 = vmatprep.subr.bf16.mxu0 0
    %3911 = vmatpush1.bf16.msra.mxu0 %v3876
    %3912 = vmatprep.subr.bf16.mxu0 0
    %3913 = vmatpush1.bf16.msra.mxu0 %v3877
    %3914 = vmatprep.subr.bf16.mxu0 0
    %3915 = vmatpush1.bf16.msra.mxu0 %v3878
    %3916 = vmatprep.subr.bf16.mxu0 0
    %3917 = vmatpush1.bf16.msra.mxu0 %v3879
    %3918 = vmatprep.subr.bf16.mxu0 0
    %3919 = vmatpush1.bf16.msra.mxu0 %v3880
    %3920 = vmatprep.subr.bf16.mxu0 0
    %3921 = vmatpush1.bf16.msra.mxu0 %v3881
    %3922 = vmatprep.subr.bf16.mxu0 0
    %3923 = vmatpush1.bf16.msra.mxu0 %v3882
    %3924 = vmatprep.subr.bf16.mxu0 0
    %3925 = vmatpush1.bf16.msra.mxu0 %v3883
    %3926 = vmatprep.subr.bf16.mxu0 0
    %3927 = vmatpush1.bf16.msra.mxu0 %v3884
    %3928 = vmatprep.subr.bf16.mxu0 0
    %3929 = vmatpush1.bf16.msra.mxu0 %v3885
    %3930 = vmatprep.subr.bf16.mxu0 0
    %3931 = vmatpush1.bf16.msra.mxu0 %v3886
    %3932 = vmatprep.subr.bf16.mxu0 0
    %3933 = vmatpush1.bf16.msra.mxu0 %v3887
    %3934 = vmatprep.subr.bf16.mxu0 0
    %3935 = vmatpush1.bf16.msra.mxu0 %v3888
    %3936 = vmatprep.subr.bf16.mxu0 0
    %3937 = vmatpush1.bf16.msra.mxu0 %v3889
    %3938 = vmatprep.mubr.bf16.mxu0 %v3770
    %3939 = vmatmul.mubr.bf16.gmra.mrb[0].mxu0 %v3769
    %v3940 = vpop.f32.mrb[0].mxu0
    %v3941 = vadd.f32 %v3808, %v3940
    %v3942 = vpop.f32.mrb[0].mxu0
    %v3943 = vpop.f32.mrb[0].mxu0
    %v3944 = vpop.f32.mrb[0].mxu0
    %3945 = vdwg.mxu0
    %v3946 = vmax.f32 %v3941, 0.0
    %v3947 = vpack.c.bf16 %v3946, %v3946
    %v3948 = vld [vmem:[%s9] sm:$0xf]
    %v3949 = vld [vmem:[%s9 + $0x4] sm:$0xf]
    %v3950 = vld [vmem:[%s9 + $0x8] sm:$0xf]
    %v3951 = vld [vmem:[%s9 + $0xc] sm:$0xf]
    %v3952 = vld [vmem:[%s9 + $0x10] sm:$0xf]
    %v3953 = vld [vmem:[%s9 + $0x14] sm:$0xf]
    %v3954 = vld [vmem:[%s9 + $0x18] sm:$0xf]
    %v3955 = vld [vmem:[%s9 + $0x1c] sm:$0xf]
    %v3956 = vld [vmem:[%s9 + $0x20] sm:$0xf]
    %v3957 = vld [vmem:[%s9 + $0x24] sm:$0xf]
    %v3958 = vld [vmem:[%s9 + $0x28] sm:$0xf]
    %v3959 = vld [vmem:[%s9 + $0x2c] sm:$0xf]
    %v3960 = vld [vmem:[%s9 + $0x30] sm:$0xf]
    %v3961 = vld [vmem:[%s9 + $0x34] sm:$0xf]
    %v3962 = vld [vmem:[%s9 + $0x38] sm:$0xf]
    %v3963 = vld [vmem:[%s9 + $0x3c] sm:$0xf]
    %v3964 = vld [vmem:[%s10] sm:$0x1]
    %v3966 = vlaneseq
    %v3967 = vshrl.u32 %v3966, 7
    %v3968 = vsub.s32 0, %v3967
    %v3969 = vrot.slane %v3964, %v3968
    %v3987 = vunpack.c.l.b16 %v3948
    %v3988 = vunpack.c.l.b16 %v3949
    %v3989 = vunpack.c.l.b16 %v3950
    %v3990 = vunpack.c.l.b16 %v3951
    %v3991 = vunpack.c.l.b16 %v3952
    %v3992 = vunpack.c.l.b16 %v3953
    %v3993 = vunpack.c.l.b16 %v3954
    %v3994 = vunpack.c.l.b16 %v3955
    %v3995 = vunpack.c.l.b16 %v3956
    %v3996 = vunpack.c.l.b16 %v3957
    %v3997 = vunpack.c.l.b16 %v3958
    %v3998 = vunpack.c.l.b16 %v3959
    %v3999 = vunpack.c.l.b16 %v3960
    %v4000 = vunpack.c.l.b16 %v3961
    %v4001 = vunpack.c.l.b16 %v3962
    %v4002 = vunpack.c.l.b16 %v3963
    %v4003 = vpack.c.b16 %v3988, %v3987
    %v4004 = vpack.c.b16 %v3990, %v3989
    %v4005 = vpack.c.b16 %v3992, %v3991
    %v4006 = vpack.c.b16 %v3994, %v3993
    %v4007 = vpack.c.b16 %v3996, %v3995
    %v4008 = vpack.c.b16 %v3998, %v3997
    %v4009 = vpack.c.b16 %v4000, %v3999
    %v4010 = vpack.c.b16 %v4002, %v4001
    %4019 = vmatprep.subr.bf16.mxu0 0
    %4020 = vmatpush1.bf16.msra.mxu0 %v4003
    %4021 = vmatprep.subr.bf16.mxu0 0
    %4022 = vmatpush1.bf16.msra.mxu0 %v4004
    %4023 = vmatprep.subr.bf16.mxu0 0
    %4024 = vmatpush1.bf16.msra.mxu0 %v4005
    %4025 = vmatprep.subr.bf16.mxu0 0
    %4026 = vmatpush1.bf16.msra.mxu0 %v4006
    %4027 = vmatprep.subr.bf16.mxu0 0
    %4028 = vmatpush1.bf16.msra.mxu0 %v4007
    %4029 = vmatprep.subr.bf16.mxu0 0
    %4030 = vmatpush1.bf16.msra.mxu0 %v4008
    %4031 = vmatprep.subr.bf16.mxu0 0
    %4032 = vmatpush1.bf16.msra.mxu0 %v4009
    %4033 = vmatprep.subr.bf16.mxu0 0
    %4034 = vmatpush1.bf16.msra.mxu0 %v4010
    %4035 = vmatprep.subr.bf16.mxu0 0
    %4036 = vmatpush1.bf16.msra.mxu0 0
    %4037 = vmatprep.subr.bf16.mxu0 0
    %4038 = vmatpush1.bf16.msra.mxu0 0
    %4039 = vmatprep.subr.bf16.mxu0 0
    %4040 = vmatpush1.bf16.msra.mxu0 0
    %4041 = vmatprep.subr.bf16.mxu0 0
    %4042 = vmatpush1.bf16.msra.mxu0 0
    %4043 = vmatprep.subr.bf16.mxu0 0
    %4044 = vmatpush1.bf16.msra.mxu0 0
    %4045 = vmatprep.subr.bf16.mxu0 0
    %4046 = vmatpush1.bf16.msra.mxu0 0
    %4047 = vmatprep.subr.bf16.mxu0 0
    %4048 = vmatpush1.bf16.msra.mxu0 0
    %4049 = vmatprep.subr.bf16.mxu0 0
    %4050 = vmatpush1.bf16.msra.mxu0 0
    %4051 = vmatprep.mubr.bf16.mxu0 0
    %4052 = vmatmul.mubr.bf16.gmra.mrb[0].mxu0 %v3947
    %v4053 = vpop.f32.mrb[0].mxu0
    %v4054 = vadd.f32 %v3969, %v4053
    %v4055 = vpop.f32.mrb[0].mxu0
    %v4056 = vpop.f32.mrb[0].mxu0
    %v4057 = vpop.f32.mrb[0].mxu0
    %4058 = vdwg.mxu0
    %vm4059 = vcmask 261120
    %4060 = vst.msk [vmem:[%s11] sm:$0xff] %vm4059, %v4054
    // Predicated region
    $region54: #{siamese_forward.1} parent=1 // pred_check
      _
    $region55: #{siamese_forward.1} parent=1 // pred_check_branch
      %4062 = sbr.rel (0) target = $region57
    $region56: #{siamese_forward.1} parent=1 // pred_region
      _
    $region57: #{siamese_forward.1} parent=1 // pred_fallthru
      _
    // Predicated region
    $region58: #{siamese_forward.1} parent=1 // pred_check
      _
    $region59: #{siamese_forward.1} parent=1 // pred_check_branch
      %4064 = sbr.rel (0) target = $region61
    $region60: #{siamese_forward.1} parent=1 // pred_region
      _
    $region61: #{siamese_forward.1} parent=1 // pred_fallthru
      _
    %4065 = vsyncpa [#allocation3], 1
    %4066 = vsyncpa [#allocation5], 1

</llo_original>
